<compile_context>
chip_gen: v6e
topology: v6e:2x2x1
jax: 0.10.0
libtpu: 0.0.40
codegen_flags: <defaults>
</compile_context>

<pallas_src>
import functools

import numpy as np
import jax
import jax.numpy as jnp
from jax.experimental import pallas as pl
from jax.experimental.pallas import tpu as pltpu


def _cdiv(a, b):
    return (a + b - 1) // b


def _round_up(a, b):
    return _cdiv(a, b) * b


# --------------------------------------------------------------------------
# Fused AdaptivePool2d + Flatten + Linear kernel (layer < 5)
# --------------------------------------------------------------------------

def _build_pool_matrix(H, W, oh, ow, mode):
    """(H*W, oh*ow) matrix: window means (avg) or window top-left picks (max)."""
    sh, sw = H // oh, W // ow
    P = np.zeros((H * W, oh * ow), np.float32)
    for i in range(oh):
        for j in range(ow):
            o = i * ow + j
            if mode == "avg":
                for r in range(sh):
                    for s in range(sw):
                        P[(i * sh + r) * W + (j * sw + s), o] = 1.0 / (sh * sw)
            else:  # max: select the window's top-left corner lane
                P[(i * sh) * W + (j * sw), o] = 1.0
    return P


def _pool_linear_kernel(x_ref, p_ref, w_ref, b_ref, o_ref, acc_ref,
                        *, mode, shifts, nc, bsz):
    """grid = (N tiles, channel-group tiles); reduction axis last.

    x_ref: (nc*B, HW) f32, rows ordered (channel, batch) channel-major
    p_ref: (HW, oh*ow) f32 constant pooling matrix (resident in VMEM)
    w_ref: (tk, tn) bf16 weight tile, tk = nc * oh*ow
    b_ref: (1, tn) f32 bias
    o_ref: (B, tn) f32 logits
    """
    k = pl.program_id(1)

    @pl.when(k == 0)
    def _():
        acc_ref[...] = jnp.broadcast_to(b_ref[...], acc_ref.shape)

    x2 = x_ref[...]                                      # (nc*B, HW) f32
    if mode == "max":
        # max over the (sh, sw) window = max over lane shifts; zero tail never
        # reaches a selected window-corner lane, so it cannot corrupt results.
        m = x2
        for off in shifts:
            shifted = jnp.concatenate(
                [x2[:, off:], jnp.zeros((x2.shape[0], off), x2.dtype)], axis=1)
            m = jnp.maximum(m, shifted)
        x2 = m

    # Spatial pooling on the MXU (avg: window means; max: corner selection).
    pooled = jnp.dot(x2, p_ref[...],
                     preferred_element_type=jnp.float32)  # (nc*B, oh*ow)

    # Flatten to torch .view(B, -1) order: batch rows, channel-major columns.
    act = jnp.concatenate(
        [pooled[c * bsz:(c + 1) * bsz, :] for c in range(nc)], axis=1)  # (B, tk)

    acc_ref[...] += jnp.dot(act.astype(w_ref.dtype), w_ref[...],
                            preferred_element_type=jnp.float32)

    @pl.when(k == pl.num_programs(1) - 1)
    def _():
        o_ref[...] = acc_ref[...].astype(o_ref.dtype)


def pool_linear_pallas(xr, p, w_pad, b_pad, *, batch, n_label, nc_tile, tn,
                       mode, shifts):
    """Fused adaptive pool + flatten + linear.

    xr:    (Cp*B, HW) f32, rows ordered (channel, batch)
    p:     (HW, oh*ow) f32 pooling matrix
    w_pad: (Kp, Np) bf16 (Kp = Cp*oh*ow), b_pad: (1, Np) f32
    """
    CB, HW = xr.shape
    Kp, Np = w_pad.shape
    ohow = p.shape[1]
    tk = nc_tile * ohow
    k_tiles = Kp // tk
    n_tiles = _cdiv(n_label, tn)

    kernel = functools.partial(_pool_linear_kernel, mode=mode, shifts=shifts,
                               nc=nc_tile, bsz=batch)
    return pl.pallas_call(
        kernel,
        out_shape=jax.ShapeDtypeStruct((batch, n_label), jnp.float32),
        grid_spec=pltpu.PrefetchScalarGridSpec(
            num_scalar_prefetch=0,
            grid=(n_tiles, k_tiles),
            in_specs=[
                pl.BlockSpec((nc_tile * batch, HW), lambda n, k: (k, 0)),  # acts
                pl.BlockSpec((HW, ohow), lambda n, k: (0, 0)),             # pool mat
                pl.BlockSpec((tk, tn), lambda n, k: (k, n)),               # weight
                pl.BlockSpec((1, tn), lambda n, k: (0, n)),                # bias
            ],
            out_specs=pl.BlockSpec((batch, tn), lambda n, k: (0, n)),
            scratch_shapes=[pltpu.VMEM((batch, tn), jnp.float32)],
        ),
        compiler_params=pltpu.CompilerParams(
            dimension_semantics=("parallel", "arbitrary")),
    )(xr, p, w_pad, b_pad)


# --------------------------------------------------------------------------
# Plain Flatten + Linear kernel (layer >= 5, no pooling)
# --------------------------------------------------------------------------

def _linear_kernel(x_ref, w_ref, b_ref, o_ref, acc_ref):
    """grid = (N tiles, K tiles); K (reduction) last; bias folded into init."""
    k = pl.program_id(1)

    @pl.when(k == 0)
    def _():
        acc_ref[...] = jnp.broadcast_to(b_ref[...], acc_ref.shape)

    acc_ref[...] += jnp.dot(x_ref[...].astype(w_ref.dtype), w_ref[...],
                            preferred_element_type=jnp.float32)

    @pl.when(k == pl.num_programs(1) - 1)
    def _():
        o_ref[...] = acc_ref[...].astype(o_ref.dtype)


def linear_pallas(x, w_pad, b_pad, n_label, *, tk, tn):
    """y = x @ w + b; x stays f32 (bf16 cast happens inside the kernel)."""
    B, K = x.shape
    Kp, Np = w_pad.shape
    if Kp != K:
        x = jnp.pad(x, ((0, 0), (0, Kp - K)))   # not hit for supported configs

    return pl.pallas_call(
        _linear_kernel,
        out_shape=jax.ShapeDtypeStruct((B, n_label), jnp.float32),
        grid_spec=pltpu.PrefetchScalarGridSpec(
            num_scalar_prefetch=0,
            grid=(_cdiv(n_label, tn), Kp // tk),
            in_specs=[
                pl.BlockSpec((B, tk), lambda n, k: (0, k)),   # activations (f32)
                pl.BlockSpec((tk, tn), lambda n, k: (k, n)),  # weight tile (bf16)
                pl.BlockSpec((1, tn), lambda n, k: (0, n)),   # bias tile (f32)
            ],
            out_specs=pl.BlockSpec((B, tn), lambda n, k: (0, n)),
            scratch_shapes=[pltpu.VMEM((B, tn), jnp.float32)],
        ),
        compiler_params=pltpu.CompilerParams(
            dimension_semantics=("parallel", "arbitrary")),
    )(x, w_pad, b_pad)


# --------------------------------------------------------------------------
# Module
# --------------------------------------------------------------------------

class LinearClassifierResNet:
    def __init__(self, layer=6, n_label=1000, expansion=4, pool_type="avg",
                 width=1, key=None):
        base_width = 64 * expansion
        if layer == 1:
            pool_size, n_channels = 8, 128 * width
        elif layer == 2:
            pool_size, n_channels = 6, base_width * width
        elif layer == 3:
            pool_size, n_channels = 4, base_width * 2 * width
        elif layer == 4:
            pool_size, n_channels = 3, base_width * 4 * width
        elif layer == 5:
            pool_size, n_channels = 7, base_width * 8 * width
        elif layer == 6:
            pool_size, n_channels = 1, base_width * 8 * width
        else:
            raise NotImplementedError("layer not supported: {}".format(layer))

        self.layer = layer
        self.pool_type = pool_type
        self.pool_size = pool_size
        self.n_channels = n_channels
        self.n_label = n_label
        in_features = n_channels * pool_size * pool_size
        self.in_features = in_features

        # initilize(): weight ~ N(0, 0.01), bias = 0.  PyTorch layout (out, in).
        key = jax.random.PRNGKey(0) if key is None else key
        self.weight = 0.01 * jax.random.normal(
            key, (n_label, in_features), dtype=jnp.float32)
        self.bias = jnp.zeros((n_label,), dtype=jnp.float32)

        # --- N tiling: keep >= 2 "parallel" N tiles for v7x megacore ---------
        Np128 = _round_up(n_label, 128)
        tn = min(512, Np128)
        if Np128 // tn < 2 and Np128 >= 256 and (Np128 // 2) % 128 == 0:
            tn = Np128 // 2
        self.tn = tn
        Np = _round_up(n_label, tn)
        self.Np = Np

        # --- K tiling ---------------------------------------------------------
        if layer < 5:
            if pool_type not in ("avg", "max"):
                raise NotImplementedError("pool type not supported: " + pool_type)
            ohow = pool_size * pool_size
            C = n_channels
            nc = min(64, max(16, _round_up(_cdiv(C, 4), 16)))
            nc = min(nc, _round_up(C, 16))
            self.nc_tile = nc
            self.k_tiles = _cdiv(C, nc)
            self.Cp = nc * self.k_tiles
            self.tk = nc * ohow
            Kp = self.Cp * ohow
        else:
            # layer >= 5: no pooling (matches the PyTorch module, which only
            # adds Flatten + Linear; for layer 5 this assumes a 7x7 input map).
            self.tk = min(2048, _round_up(in_features, 8))
            Kp = _round_up(in_features, self.tk)
        self.Kp = Kp

        # --- one-time weight layout: transpose + pad + bf16 cast --------------
        w_t = jnp.pad(self.weight.T, ((0, Kp - in_features), (0, Np - n_label)))
        self.w_pad = w_t.astype(jnp.bfloat16)                    # (Kp, Np)
        self.b_pad = jnp.pad(self.bias, (0, Np - n_label)).reshape(1, Np)

        self._pool_mats = {}

    def _pool_matrix(self, H, W):
        cache_key = (H, W)
        if cache_key not in self._pool_mats:
            self._pool_mats[cache_key] = jnp.asarray(_build_pool_matrix(
                H, W, self.pool_size, self.pool_size, self.pool_type))
        return self._pool_mats[cache_key]

    def __call__(self, x):
        # x: NCHW float32
        B = x.shape[0]
        if self.layer < 5:
            _, C, H, W = x.shape
            oh = ow = self.pool_size
            # TODO(synk): non-divisible adaptive pooling (unequal window sizes,
            # as torch allows when H % oh != 0) is not implemented.
            assert C == self.n_channels, "channel mismatch"
            assert H % oh == 0 and W % ow == 0, \
                "adaptive pool requires divisible windows"
            sh, sw = H // oh, W // ow
            p = self._pool_matrix(H, W)
            # (B, C, HW) -> (C, B, HW): channel-major rows so each K tile is a
            # contiguous row block (tiny XLA transpose, << the weight stream).
            xr = jnp.transpose(x.reshape(B, C, H * W), (1, 0, 2))
            if self.Cp != C:
                xr = jnp.pad(xr, ((0, self.Cp - C), (0, 0), (0, 0)))
            xr = xr.reshape(self.Cp * B, H * W)
            if self.pool_type == "max":
                offs = [r * W + s for r in range(sh) for s in range(sw)]
                shifts = tuple(offs[1:])
            else:
                shifts = ()
            return pool_linear_pallas(
                xr, p, self.w_pad, self.b_pad,
                batch=B, n_label=self.n_label, nc_tile=self.nc_tile,
                tn=self.tn, mode=self.pool_type, shifts=shifts)
        else:
            xf = x.reshape(B, -1)                 # Flatten (torch .view(B, -1))
            return linear_pallas(xf, self.w_pad, self.b_pad, self.n_label,
                                 tk=self.tk, tn=self.tn)


# --------------------------------------------------------------------------
# Demo / self-check
# --------------------------------------------------------------------------

if __name__ == "__main__":
    key = jax.random.PRNGKey(0)
    k_in6, k_w6, k_in1, k_w1 = jax.random.split(key, 4)

    # --- default config: layer=6 -> Flatten + Linear(2048 -> 1000) -----------
    model6 = LinearClassifierResNet(layer=6, key=k_w6)
    x6 = jax.random.normal(k_in6, (2, 2048, 1, 1), dtype=jnp.float32)
    y6 = model6(x6)
    jax.block_until_ready(y6)
    assert y6.shape == (2, 1000)
    ref6 = (np.asarray(x6, np.float64).reshape(2, -1)
            @ np.asarray(model6.weight, np.float64).T
            + np.asarray(model6.bias, np.float64))
    assert np.allclose(np.asarray(y6), ref6, atol=2e-2, rtol=2e-2), \
        np.max(np.abs(np.asarray(y6) - ref6))

    # --- layer=1: fused AdaptiveAvgPool2d(8) + Flatten + Linear(8192 -> 1000) -
    model1 = LinearClassifierResNet(layer=1, key=k_w1)
    x1 = jax.random.normal(k_in1, (2, 128, 16, 16), dtype=jnp.float32)
    y1 = model1(x1)
    jax.block_until_ready(y1)
    assert y1.shape == (2, 1000)
    pooled = np.asarray(x1, np.float64).reshape(2, 128, 8, 2, 8, 2).mean(axis=(3, 5))
    ref1 = (pooled.reshape(2, -1)
            @ np.asarray(model1.weight, np.float64).T
            + np.asarray(model1.bias, np.float64))
    assert np.allclose(np.asarray(y1), ref1, atol=2e-2, rtol=2e-2), \
        np.max(np.abs(np.asarray(y1) - ref1))

    # --- max-pool variant exercises the other (VPU shift + corner-pick) path --
    model1m = LinearClassifierResNet(layer=1, pool_type="max", key=k_w1)
    y1m = model1m(x1)
    jax.block_until_ready(y1m)
    pooledm = np.asarray(x1, np.float64).reshape(2, 128, 8, 2, 8, 2).max(axis=(3, 5))
    ref1m = (pooledm.reshape(2, -1)
             @ np.asarray(model1m.weight, np.float64).T
             + np.asarray(model1m.bias, np.float64))
    assert np.allclose(np.asarray(y1m), ref1m, atol=2e-2, rtol=2e-2), \
        np.max(np.abs(np.asarray(y1m) - ref1m))

    print("KERNEL_OK")
</pallas_src>

<mosaic_0001>
module attributes {stable_mosaic.version = 11 : i64} {
  func.func @_linear_kernel(%arg0: i32, %arg1: i32, %arg2: memref<2x2048xf32, #tpu.memory_space<vmem>>, %arg3: memref<2048x512xbf16, #tpu.memory_space<vmem>>, %arg4: memref<1x512xf32, #tpu.memory_space<vmem>>, %arg5: memref<2x512xf32, #tpu.memory_space<vmem>>, %arg6: memref<2x512xf32, #tpu.memory_space<vmem>>) attributes {dimension_semantics = [#tpu.dimension_semantics<parallel>, #tpu.dimension_semantics<arbitrary>], iteration_bounds = array<i64: 2, 1>, scalar_prefetch = 0 : i64, scratch_operands = 1 : i64, tpu.core_type = #tpu.core_type<tc>, window_params = [{transform_indices = @transform_0, window_bounds = array<i64: 2, 2048>}, {transform_indices = @transform_1, window_bounds = array<i64: 2048, 512>}, {transform_indices = @transform_2, window_bounds = array<i64: 1, 512>}, {transform_indices = @transform_3, window_bounds = array<i64: 2, 512>}]} {
    %c0_i32 = arith.constant 0 : i32
    %0 = arith.cmpi eq, %arg1, %c0_i32 : i32
    %1 = arith.extui %0 : i1 to i32
    %c0_i32_0 = arith.constant 0 : i32
    %2 = arith.cmpi ne, %1, %c0_i32_0 : i32
    scf.if %2 {
      %c0_10 = arith.constant 0 : index
      %c0_11 = arith.constant 0 : index
      %13 = vector.load %arg4[%c0_10, %c0_11] : memref<1x512xf32, #tpu.memory_space<vmem>>, vector<1x512xf32>
      %14 = vector.shape_cast %13 : vector<1x512xf32> to vector<1x512xf32>
      %15 = vector.broadcast %14 : vector<1x512xf32> to vector<2x512xf32>
      %c0_12 = arith.constant 0 : index
      %c0_13 = arith.constant 0 : index
      %16 = vector.load %arg6[%c0_12, %c0_13] : memref<2x512xf32, #tpu.memory_space<vmem>>, vector<2x512xf32>
      tpu.vector_store %arg6[%c0_12, %c0_13], %15 {strides = array<i32>} : memref<2x512xf32, #tpu.memory_space<vmem>>, vector<2x512xf32>,
    } else {
    }
    %c0 = arith.constant 0 : index
    %c0_1 = arith.constant 0 : index
    %3 = vector.load %arg6[%c0, %c0_1] : memref<2x512xf32, #tpu.memory_space<vmem>>, vector<2x512xf32>
    %c0_2 = arith.constant 0 : index
    %c0_3 = arith.constant 0 : index
    %4 = vector.load %arg2[%c0_2, %c0_3] : memref<2x2048xf32, #tpu.memory_space<vmem>>, vector<2x2048xf32>
    %5 = arith.truncf %4 : vector<2x2048xf32> to vector<2x2048xbf16>
    %c0_4 = arith.constant 0 : index
    %c0_5 = arith.constant 0 : index
    %6 = vector.load %arg3[%c0_4, %c0_5] : memref<2048x512xbf16, #tpu.memory_space<vmem>>, vector<2048x512xbf16>
    %cst = arith.constant dense<0.000000e+00> : vector<2x512xf32>
    %7 = tpu.matmul %5, %6, %cst {dimension_numbers = #tpu.dot_dimension_numbers<[1], [0], [0], [1], [0, 0, 1, 1], [], []>} : vector<2x2048xbf16>, vector<2048x512xbf16>, vector<2x512xf32> -> vector<2x512xf32>
    %8 = arith.addf %3, %7 : vector<2x512xf32>
    %c0_6 = arith.constant 0 : index
    %c0_7 = arith.constant 0 : index
    %9 = vector.load %arg6[%c0_6, %c0_7] : memref<2x512xf32, #tpu.memory_space<vmem>>, vector<2x512xf32>
    tpu.vector_store %arg6[%c0_6, %c0_7], %8 {strides = array<i32>} : memref<2x512xf32, #tpu.memory_space<vmem>>, vector<2x512xf32>,
    %c0_i32_8 = arith.constant 0 : i32
    %10 = arith.cmpi eq, %arg1, %c0_i32_8 : i32
    %11 = arith.extui %10 : i1 to i32
    %c0_i32_9 = arith.constant 0 : i32
    %12 = arith.cmpi ne, %11, %c0_i32_9 : i32
    scf.if %12 {
      %c0_10 = arith.constant 0 : index
      %c0_11 = arith.constant 0 : index
      %13 = vector.load %arg6[%c0_10, %c0_11] : memref<2x512xf32, #tpu.memory_space<vmem>>, vector<2x512xf32>
      %c0_12 = arith.constant 0 : index
      %c0_13 = arith.constant 0 : index
      %14 = vector.load %arg5[%c0_12, %c0_13] : memref<2x512xf32, #tpu.memory_space<vmem>>, vector<2x512xf32>
      tpu.vector_store %arg5[%c0_12, %c0_13], %13 {strides = array<i32>} : memref<2x512xf32, #tpu.memory_space<vmem>>, vector<2x512xf32>,
    } else {
    }
    return
  }
  func.func @transform_0(%arg0: i32, %arg1: i32) -> (i32, i32) {
    %c0_i32 = arith.constant 0 : i32
    %c0_i32_0 = arith.constant 0 : i32
    return %c0_i32, %arg1 : i32, i32
  }
  func.func @transform_1(%arg0: i32, %arg1: i32) -> (i32, i32) {
    %c0_i32 = arith.constant 0 : i32
    return %arg1, %arg0 : i32, i32
  }
  func.func @transform_2(%arg0: i32, %arg1: i32) -> (i32, i32) {
    %c0_i32 = arith.constant 0 : i32
    %c0_i32_0 = arith.constant 0 : i32
    return %c0_i32, %arg0 : i32, i32
  }
  func.func @transform_3(%arg0: i32, %arg1: i32) -> (i32, i32) {
    %c0_i32 = arith.constant 0 : i32
    %c0_i32_0 = arith.constant 0 : i32
    return %c0_i32, %arg0 : i32, i32
  }
}

</mosaic_0001>

<llo_original>
// kernel: tpu_custom_call.1
$region0: #{tpu_custom_call.1}
  #allocation0 [shape = 'u32[]', space=smem, size = 0x4, offset = 0x4, fixed_abs, tag = 'smem constant byte address 0x4 - core index']
  #allocation1 [shape = 'u32[144,128]{1,0:T(1,128)}', space=vmem, size = 0x12000, scoped, tag = 'internal scratch']
  #allocation2 [shape = 'f32[2,512]{1,0:T(2,128)}', space=vmem, size = 0x1000, scoped, tag = 'scratch operand']
  %s0 = inlined_call_operand.hbm [shape: f32[2,2048], index: 0, kind: input, shape index: {}]
  %s1 = inlined_call_operand.hbm [shape: bf16[2048,1024], index: 1, kind: input, shape index: {}]
  %s2 = inlined_call_operand.hbm [shape: f32[1,1024], index: 2, kind: input, shape index: {}]
  %s3 = inlined_call_operand.hbm [shape: f32[2,1000], index: 3, kind: output, shape index: {}]
  %s4 = sld [smem:[#allocation0]]
  $region65: #{tpu_custom_call.1} parent=0
    _
  %s6 = ssub.s32 1, %s4
  %s7 = scalar_select 0, %s6, %s4
  $region1: #{tpu_custom_call.1} parent=0
    #allocation3 [shape = 'u8[16384]{0}', space=vmem, size = 0x4000, scoped, tag = 'input window, operand 0, single buffered']
    #allocation4 [shape = 's32[2]{0}', space=sflag, size = 0x8, scoped, tag = 'scoped memory for tpu_custom_call.1']
    #allocation5 [shape = 's32[2]{0}', space=sflag, size = 0x8, scoped, tag = 'scoped memory for tpu_custom_call.1']
    #allocation6 [shape = 'u8[4194304]{0}', space=vmem, size = 0x400000, scoped, tag = 'input window, operand 1']
    #allocation7 [shape = 's32[2]{0}', space=sflag, size = 0x8, scoped, tag = 'scoped memory for tpu_custom_call.1']
    #allocation8 [shape = 'u8[4096]{0}', space=vmem, size = 0x1000, scoped, tag = 'input window, operand 2']
    #allocation9 [shape = 'u8[8192]{0}', space=vmem, size = 0x2000, scoped, tag = 'output window, operand 0']
    %8 = vsyncpa [#allocation4], 0
    %9 = vsyncpa [#allocation7], 0
    %s10 = scalar_lea.sflag [#allocation7], 1
    %11 = vsyncpa %s10, 0
    %12 = vsyncpa [#allocation5], 0
    %s13 = scalar_lea.sflag [#allocation5], 1
    %14 = vsyncpa %s13, 0
    loop: start=0, step=1, limit=4
    $region2: #{tpu_custom_call.1} parent=1 // loop_pre_header
      _
    $region3: #{tpu_custom_call.1} parent=1 // loop_header
      %s16 = sphi 0, %s20
      %p17 = scmp.ge.s32.totalorder %s16, 4
      %s23 = sphi 0, %s35
      %s24 = sphi 0, %s31
      %s25 = sphi 0, %s23
      %s26 = sphi 0, %s24
      %s27 = sphi 0, %s25
      %s28 = sphi 0, %s26
      %s38 = sphi 0, %s40
      %s41 = sphi 0, %s38
      %s42 = sphi 0, %s41
      %s58 = sphi 0, %s42
      %s66 = sphi 0, %s68
      %s69 = sphi 0, %s66
      %s70 = sphi 0, %s69
      %s86 = sphi 0, %s70
      %s92 = sphi 0, %s94
      %s95 = sphi 0, %s92
      %s96 = sphi 0, %s95
      %s112 = sphi 0, %s96
      %s118 = sphi 0, %s120
      %s121 = sphi 0, %s118
      %s122 = sphi 0, %s121
      %s138 = sphi 0, %s122
    $region4: #{tpu_custom_call.1} parent=1 // loop_header_branch
      %19 = sbr.rel (%p17) target = $region8
    $region5: #{tpu_custom_call.1} parent=1 // loop_body
      %s21 = ssub.s32 %s16, 1
      %s22 = ssub.s32 %s16, 2
      %s29 = sadd.s32 1, %s24
      %p30 = scmp.ge.s32.totalorder %s29, 1
      %s31 = scalar_select %p30, 0, %s29
      %s32 = sadd.s32 1, %s23
      %s33 = scalar_select %p30, %s32, %s23
      %p34 = scmp.ge.s32.totalorder %s33, 2
      %s35 = scalar_select %p34, 0, %s33
      %s36 = ssub.s32 %s24, %s31
      %p37 = scmp.eq.s32.totalorder %s36, 0
      %s39 = sadd.s32 %s38, 1
      %s40 = scalar_select %p37, %s38, %s39
      %p43 = pneg %p37
      %p44 = scmp.eq.s32.totalorder %s16, 1
      %p45 = por %p43, %p44
      %p46 = scmp.ne.s32.totalorder %s38, %s41
      %p47 = scmp.eq.s32.totalorder %s16, 0
      %p48 = por %p46, %p47
      %p49 = scmp.ne.s32.totalorder %s38, %s41
      %p50 = scmp.eq.s32.totalorder %s21, 1
      %p51 = por %p49, %p50
      %p52 = scmp.ne.s32.totalorder %s41, %s42
      %p53 = scmp.eq.s32.totalorder %s21, 0
      %p54 = por %p52, %p53
      %p55 = scmp.ne.s32.totalorder %s41, %s42
      %p56 = scmp.eq.s32.totalorder %s22, 1
      %p57 = por %p55, %p56
      %p59 = scmp.ne.s32.totalorder %s42, %s58
      %p60 = scmp.eq.s32.totalorder %s22, 0
      %p61 = por %p59, %p60
      %s62 = ssub.s32 %s24, %s31
      %s63 = ssub.s32 %s23, %s35
      %s64 = sor.u32 %s62, %s63
      %p65 = scmp.eq.s32.totalorder %s64, 0
      %s67 = sadd.s32 %s66, 1
      %s68 = scalar_select %p65, %s66, %s67
      %p71 = pneg %p65
      %p72 = scmp.eq.s32.totalorder %s16, 1
      %p73 = por %p71, %p72
      %p74 = scmp.ne.s32.totalorder %s66, %s69
      %p75 = scmp.eq.s32.totalorder %s16, 0
      %p76 = por %p74, %p75
      %p77 = scmp.ne.s32.totalorder %s66, %s69
      %p78 = scmp.eq.s32.totalorder %s21, 1
      %p79 = por %p77, %p78
      %p80 = scmp.ne.s32.totalorder %s69, %s70
      %p81 = scmp.eq.s32.totalorder %s21, 0
      %p82 = por %p80, %p81
      %p83 = scmp.ne.s32.totalorder %s69, %s70
      %p84 = scmp.eq.s32.totalorder %s22, 1
      %p85 = por %p83, %p84
      %p87 = scmp.ne.s32.totalorder %s70, %s86
      %p88 = scmp.eq.s32.totalorder %s22, 0
      %p89 = por %p87, %p88
      %s90 = ssub.s32 %s23, %s35
      %p91 = scmp.eq.s32.totalorder %s90, 0
      %s93 = sadd.s32 %s92, 1
      %s94 = scalar_select %p91, %s92, %s93
      %p97 = pneg %p91
      %p98 = scmp.eq.s32.totalorder %s16, 1
      %p99 = por %p97, %p98
      %p100 = scmp.ne.s32.totalorder %s92, %s95
      %p101 = scmp.eq.s32.totalorder %s16, 0
      %p102 = por %p100, %p101
      %p103 = scmp.ne.s32.totalorder %s92, %s95
      %p104 = scmp.eq.s32.totalorder %s21, 1
      %p105 = por %p103, %p104
      %p106 = scmp.ne.s32.totalorder %s95, %s96
      %p107 = scmp.eq.s32.totalorder %s21, 0
      %p108 = por %p106, %p107
      %p109 = scmp.ne.s32.totalorder %s95, %s96
      %p110 = scmp.eq.s32.totalorder %s22, 1
      %p111 = por %p109, %p110
      %p113 = scmp.ne.s32.totalorder %s96, %s112
      %p114 = scmp.eq.s32.totalorder %s22, 0
      %p115 = por %p113, %p114
      %s116 = ssub.s32 %s23, %s35
      %p117 = scmp.eq.s32.totalorder %s116, 0
      %s119 = sadd.s32 %s118, 1
      %s120 = scalar_select %p117, %s118, %s119
      %p123 = pneg %p117
      %p124 = scmp.eq.s32.totalorder %s16, 1
      %p125 = por %p123, %p124
      %p126 = scmp.ne.s32.totalorder %s118, %s121
      %p127 = scmp.eq.s32.totalorder %s16, 0
      %p128 = por %p126, %p127
      %p129 = scmp.ne.s32.totalorder %s118, %s121
      %p130 = scmp.eq.s32.totalorder %s21, 1
      %p131 = por %p129, %p130
      %p132 = scmp.ne.s32.totalorder %s121, %s122
      %p133 = scmp.eq.s32.totalorder %s21, 0
      %p134 = por %p132, %p133
      %p135 = scmp.ne.s32.totalorder %s121, %s122
      %p136 = scmp.eq.s32.totalorder %s22, 1
      %p137 = por %p135, %p136
      %p139 = scmp.ne.s32.totalorder %s122, %s138
      %p140 = scmp.eq.s32.totalorder %s22, 0
      %p141 = por %p139, %p140
      %p142 = scmp.le.s32.totalorder 1, %s16
      %p143 = scmp.lt.s32.totalorder %s16, 3
      %p144 = pnand %p142, %p143
      %p145 = pneg %p144
      // Predicated region
      $region9: #{tpu_custom_call.1} parent=5 // pred_check
        _
      $region10: #{tpu_custom_call.1} parent=5 // pred_check_branch
        %147 = sbr.rel (%p144) target = $region12
      $region11: #{tpu_custom_call.1} parent=5 // pred_region
        %s148 = ssub.s32 %s16, 1
        // Predicated region
        $region13: #{tpu_custom_call.1} parent=11 // pred_check
          %p149 = pneg %p54
        $region14: #{tpu_custom_call.1} parent=11 // pred_check_branch
          %151 = sbr.rel (%p149) target = $region16
        $region15: #{tpu_custom_call.1} parent=11 // pred_region
          %s152 = smul.u32 16, %s26
          %s154 = ssub.s32 512, 512
          %155 = vsyncadd [#allocation4], %s154
          %s156 = smul.addr %s152, 32
          %s157 = scalar_lea.hbm %s0, %s156
          %s159 = sshll.u32 [#allocation3], 4
          %s160 = int_to_ptr.vmem [resolvable:$true] %s159
          %162 = dma.hbm_to_vmem [thread:$0]  %s157, 512, %s160, [#allocation4]
        $region16: #{tpu_custom_call.1} parent=11 // pred_fallthru
          _
      $region12: #{tpu_custom_call.1} parent=5 // pred_fallthru
        _
      %p163 = scmp.lt.s32.totalorder %s16, 2
      // Predicated region
      $region17: #{tpu_custom_call.1} parent=5 // pred_check
        %p164 = pneg %p163
      $region18: #{tpu_custom_call.1} parent=5 // pred_check_branch
        %166 = sbr.rel (%p164) target = $region20
      $region19: #{tpu_custom_call.1} parent=5 // pred_region
        // Predicated region
        $region21: #{tpu_custom_call.1} parent=19 // pred_check
          %p167 = pneg %p76
        $region22: #{tpu_custom_call.1} parent=19 // pred_check_branch
          %169 = sbr.rel (%p167) target = $region24
        $region23: #{tpu_custom_call.1} parent=19 // pred_region
          %s170 = sand.u32 %s16, 1
          %s171 = scalar_lea.sflag [#allocation7], %s170
          %s172 = sand.u32 %s66, 1
          %s173 = smul.addr %s172, 4096
          %s174 = scalar_lea.vmem [#allocation6], %s173
          %s175 = smul.u32 256, %s24
          %s176 = smul.u32 4, %s23
          %s178 = ssub.s32 65536, 65536
          %179 = vsyncadd %s171, %s178
          %s180 = smul.addr %s175, 8
          %s181 = sadd.s32 %s176, %s180
          %s182 = smul.addr %s181, 64
          %s183 = scalar_lea.hbm %s1, %s182
          %s184 = sshll.u32 %s174, 4
          %s185 = int_to_ptr.vmem [resolvable:$true] %s184
          %190 = dma.hbm_to_vmem [thread:$0]  %s183, 65536, %s185, %s171, 512, 256, 16
        $region24: #{tpu_custom_call.1} parent=19 // pred_fallthru
          _
        // Predicated region
        $region25: #{tpu_custom_call.1} parent=19 // pred_check
          %p191 = pneg %p102
        $region26: #{tpu_custom_call.1} parent=19 // pred_check_branch
          %193 = sbr.rel (%p191) target = $region28
        $region27: #{tpu_custom_call.1} parent=19 // pred_region
          %s194 = sand.u32 %s16, 1
          %s195 = scalar_lea.sflag [#allocation7], %s194
          %s196 = sand.u32 %s92, 1
          %s197 = smul.addr %s196, 4
          %s198 = scalar_lea.vmem [#allocation8], %s197
          %s199 = smul.u32 4, %s23
          %s201 = ssub.s32 64, 64
          %202 = vsyncadd %s195, %s201
          %s203 = smul.addr %s199, 16
          %s204 = scalar_lea.hbm %s2, %s203
          %s206 = sshll.u32 %s198, 4
          %s207 = int_to_ptr.vmem [resolvable:$true] %s206
          %209 = dma.hbm_to_vmem [thread:$0]  %s204, 64, %s207, %s195
        $region28: #{tpu_custom_call.1} parent=19 // pred_fallthru
          _
      $region20: #{tpu_custom_call.1} parent=5 // pred_fallthru
        _
      %p210 = scmp.le.s32.totalorder 1, %s16
      %p211 = scmp.lt.s32.totalorder %s16, 3
      %p212 = pnand %p210, %p211
      %p213 = pneg %p212
      // Predicated region
      $region29: #{tpu_custom_call.1} parent=5 // pred_check
        _
      $region30: #{tpu_custom_call.1} parent=5 // pred_check_branch
        %215 = sbr.rel (%p212) target = $region32
      $region31: #{tpu_custom_call.1} parent=5 // pred_region
        %s216 = ssub.s32 %s16, 1
        // Predicated region
        $region33: #{tpu_custom_call.1} parent=31 // pred_check
          %p217 = pneg %p54
        $region34: #{tpu_custom_call.1} parent=31 // pred_check_branch
          %219 = sbr.rel (%p217) target = $region36
        $region35: #{tpu_custom_call.1} parent=31 // pred_region
          %220 = dma.done [#allocation4], 512
        $region36: #{tpu_custom_call.1} parent=31 // pred_fallthru
          _
        %s221 = sand.u32 %s21, 1
        %s222 = scalar_lea.sflag [#allocation7], %s221
        %s223 = sand.u32 %s69, 1
        %s224 = smul.addr %s223, 4096
        %s225 = scalar_lea.vmem [#allocation6], %s224
        // Predicated region
        $region37: #{tpu_custom_call.1} parent=31 // pred_check
          %p226 = pneg %p82
        $region38: #{tpu_custom_call.1} parent=31 // pred_check_branch
          %228 = sbr.rel (%p226) target = $region40
        $region39: #{tpu_custom_call.1} parent=31 // pred_region
          %229 = dma.done %s222, 65536
        $region40: #{tpu_custom_call.1} parent=31 // pred_fallthru
          _
        %s230 = sand.u32 %s21, 1
        %s231 = scalar_lea.sflag [#allocation7], %s230
        %s232 = sand.u32 %s95, 1
        %s233 = smul.addr %s232, 4
        %s234 = scalar_lea.vmem [#allocation8], %s233
        // Predicated region
        $region41: #{tpu_custom_call.1} parent=31 // pred_check
          %p235 = pneg %p108
        $region42: #{tpu_custom_call.1} parent=31 // pred_check_branch
          %237 = sbr.rel (%p235) target = $region44
        $region43: #{tpu_custom_call.1} parent=31 // pred_region
          %238 = dma.done %s231, 64
        $region44: #{tpu_custom_call.1} parent=31 // pred_fallthru
          _
        %p239 = pneg %p54
        %p240 = pneg %p51
        %s241 = sand.u32 %s21, 1
        %s242 = scalar_lea.sflag [#allocation7], %s241
        %s243 = sand.u32 %s69, 1
        %s244 = smul.addr %s243, 4096
        %s245 = scalar_lea.vmem [#allocation6], %s244
        %p246 = pneg %p82
        %p247 = pneg %p79
        %s248 = sand.u32 %s21, 1
        %s249 = scalar_lea.sflag [#allocation7], %s248
        %s250 = sand.u32 %s95, 1
        %s251 = smul.addr %s250, 4
        %s252 = scalar_lea.vmem [#allocation8], %s251
        %p253 = pneg %p108
        %p254 = pneg %p105
        %p255 = pneg %p134
        %p256 = pneg %p131
        %s257 = sand.u32 %s121, 1
        %s258 = scalar_lea.sflag [#allocation5], %s257
        %s259 = sand.u32 %s121, 1
        %s260 = smul.addr %s259, 8
        %s261 = scalar_lea.vmem [#allocation9], %s260
        %s262 = smul.u32 16, %s26
        %s263 = smul.u32 256, %s26
        %s264 = smul.u32 4, %s25
        %s265 = smul.u32 4, %s25
        %s266 = smul.u32 4, %s25
        %p267 = scmp.eq.s32.totalorder %s26, 0
        // Predicated region
        $region45: #{tpu_custom_call.1} parent=31 // pred_check
          %p268 = pneg %p267
        $region46: #{tpu_custom_call.1} parent=31 // pred_check_branch
          %270 = sbr.rel (%p268) target = $region48
        $region47: #{tpu_custom_call.1} parent=31 // pred_region
          %v271 = vld [vmem:[%s234] sm:$0xf]
          %v273 = vlaneseq
          %v274 = vshrl.u32 %v273, 7
          %v275 = vsub.s32 0, %v274
          %v276 = vrot.slane %v271, %v275
          %v277 = vlaneseq
          %v278 = vshrl.u32 %v277, 7
          %v279 = vsub.s32 1, %v278
          %v280 = vrot.slane %v271, %v279
          %v281 = vlaneseq
          %v282 = vshrl.u32 %v281, 7
          %v283 = vsub.s32 2, %v282
          %v284 = vrot.slane %v271, %v283
          %v285 = vlaneseq
          %v286 = vshrl.u32 %v285, 7
          %v287 = vsub.s32 3, %v286
          %v288 = vrot.slane %v271, %v287
          %v289 = vcombine.low %v276, %v280
          %v290 = vcombine.low %v284, %v288
          %v292 = vunpack.c.l.s4 1983009808
          %v293 = vunpack.c.0.s8 %v292
          %v294 = vlaneseq
          %v295 = vshrl.u32 %v294, 7
          %v296 = vsub.s32 %v293, %v295
          %v297 = vrot.slane %v289, %v296
          %v299 = vunpack.c.l.s4 1983009808
          %v300 = vunpack.c.0.s8 %v299
          %v301 = vlaneseq
          %v302 = vshrl.u32 %v301, 7
          %v303 = vsub.s32 %v300, %v302
          %v304 = vrot.slane %v290, %v303
          %v305 = vcombine.low %v297, %v304
          %307 = vst [vmem:[#allocation2] sm:$0xff] %v305
        $region48: #{tpu_custom_call.1} parent=31 // pred_fallthru
          _
        %v308 = vld [vmem:[#allocation2] sm:$0xff]
        %v309 = vld [vmem:[#allocation3] sm:$0xff]
        %v310 = vld [vmem:[#allocation3 + $0x8] sm:$0xff]
        %v311 = vld [vmem:[#allocation3 + $0x10] sm:$0xff]
        %v312 = vld [vmem:[#allocation3 + $0x18] sm:$0xff]
        %v317 = vcombine.high %v309, %v309
        %v319 = vunpack.c.l.s4 1983009808
        %v320 = vunpack.c.0.s8 %v319
        %v321 = vlaneseq
        %v322 = vshrl.u32 %v321, 7
        %v323 = vsub.s32 %v320, %v322
        %v324 = vrot.slane %v309, %v323
        %v326 = vunpack.c.l.s4 1983009808
        %v327 = vunpack.c.0.s8 %v326
        %v328 = vlaneseq
        %v329 = vshrl.u32 %v328, 7
        %v330 = vsub.s32 %v327, %v329
        %v331 = vrot.slane %v317, %v330
        %v332 = vcombine.high %v324, %v324
        %v333 = vcombine.high %v331, %v331
        %v334 = vcombine.high %v310, %v310
        %v336 = vunpack.c.l.s4 1983009808
        %v337 = vunpack.c.0.s8 %v336
        %v338 = vlaneseq
        %v339 = vshrl.u32 %v338, 7
        %v340 = vsub.s32 %v337, %v339
        %v341 = vrot.slane %v310, %v340
        %v343 = vunpack.c.l.s4 1983009808
        %v344 = vunpack.c.0.s8 %v343
        %v345 = vlaneseq
        %v346 = vshrl.u32 %v345, 7
        %v347 = vsub.s32 %v344, %v346
        %v348 = vrot.slane %v334, %v347
        %v349 = vcombine.high %v341, %v341
        %v350 = vcombine.high %v348, %v348
        %v351 = vcombine.high %v311, %v311
        %v353 = vunpack.c.l.s4 1983009808
        %v354 = vunpack.c.0.s8 %v353
        %v355 = vlaneseq
        %v356 = vshrl.u32 %v355, 7
        %v357 = vsub.s32 %v354, %v356
        %v358 = vrot.slane %v311, %v357
        %v360 = vunpack.c.l.s4 1983009808
        %v361 = vunpack.c.0.s8 %v360
        %v362 = vlaneseq
        %v363 = vshrl.u32 %v362, 7
        %v364 = vsub.s32 %v361, %v363
        %v365 = vrot.slane %v351, %v364
        %v366 = vcombine.high %v358, %v358
        %v367 = vcombine.high %v365, %v365
        %v368 = vcombine.high %v312, %v312
        %v370 = vunpack.c.l.s4 1983009808
        %v371 = vunpack.c.0.s8 %v370
        %v372 = vlaneseq
        %v373 = vshrl.u32 %v372, 7
        %v374 = vsub.s32 %v371, %v373
        %v375 = vrot.slane %v312, %v374
        %v377 = vunpack.c.l.s4 1983009808
        %v378 = vunpack.c.0.s8 %v377
        %v379 = vlaneseq
        %v380 = vshrl.u32 %v379, 7
        %v381 = vsub.s32 %v378, %v380
        %v382 = vrot.slane %v368, %v381
        %v383 = vcombine.high %v375, %v375
        %v384 = vcombine.high %v382, %v382
        %v401 = vpack.c.bf16 %v324, %v324
        %v402 = vpack.c.bf16 %v332, %v332
        %v403 = vpack.c.bf16 %v331, %v331
        %v404 = vpack.c.bf16 %v333, %v333
        %v405 = vpack.c.bf16 %v341, %v341
        %v406 = vpack.c.bf16 %v349, %v349
        %v407 = vpack.c.bf16 %v348, %v348
        %v408 = vpack.c.bf16 %v350, %v350
        %v409 = vpack.c.bf16 %v358, %v358
        %v410 = vpack.c.bf16 %v366, %v366
        %v411 = vpack.c.bf16 %v365, %v365
        %v412 = vpack.c.bf16 %v367, %v367
        %v413 = vpack.c.bf16 %v375, %v375
        %v414 = vpack.c.bf16 %v383, %v383
        %v415 = vpack.c.bf16 %v382, %v382
        %v416 = vpack.c.bf16 %v384, %v384
        %v417 = vld [vmem:[%s225] sm:$0xff]
        %v418 = vld [vmem:[%s225 + $0x8] sm:$0xff]
        %v419 = vld [vmem:[%s225 + $0x10] sm:$0xff]
        %v420 = vld [vmem:[%s225 + $0x18] sm:$0xff]
        %v421 = vld [vmem:[%s225 + $0x20] sm:$0xff]
        %v422 = vld [vmem:[%s225 + $0x28] sm:$0xff]
        %v423 = vld [vmem:[%s225 + $0x30] sm:$0xff]
        %v424 = vld [vmem:[%s225 + $0x38] sm:$0xff]
        %v425 = vld [vmem:[%s225 + $0x40] sm:$0xff]
        %v426 = vld [vmem:[%s225 + $0x48] sm:$0xff]
        %v427 = vld [vmem:[%s225 + $0x50] sm:$0xff]
        %v428 = vld [vmem:[%s225 + $0x58] sm:$0xff]
        %v429 = vld [vmem:[%s225 + $0x60] sm:$0xff]
        %v430 = vld [vmem:[%s225 + $0x68] sm:$0xff]
        %v431 = vld [vmem:[%s225 + $0x70] sm:$0xff]
        %v432 = vld [vmem:[%s225 + $0x78] sm:$0xff]
        %v433 = vld [vmem:[%s225 + $0x80] sm:$0xff]
        %v434 = vld [vmem:[%s225 + $0x88] sm:$0xff]
        %v435 = vld [vmem:[%s225 + $0x90] sm:$0xff]
        %v436 = vld [vmem:[%s225 + $0x98] sm:$0xff]
        %v437 = vld [vmem:[%s225 + $0xa0] sm:$0xff]
        %v438 = vld [vmem:[%s225 + $0xa8] sm:$0xff]
        %v439 = vld [vmem:[%s225 + $0xb0] sm:$0xff]
        %v440 = vld [vmem:[%s225 + $0xb8] sm:$0xff]
        %v441 = vld [vmem:[%s225 + $0xc0] sm:$0xff]
        %v442 = vld [vmem:[%s225 + $0xc8] sm:$0xff]
        %v443 = vld [vmem:[%s225 + $0xd0] sm:$0xff]
        %v444 = vld [vmem:[%s225 + $0xd8] sm:$0xff]
        %v445 = vld [vmem:[%s225 + $0xe0] sm:$0xff]
        %v446 = vld [vmem:[%s225 + $0xe8] sm:$0xff]
        %v447 = vld [vmem:[%s225 + $0xf0] sm:$0xff]
        %v448 = vld [vmem:[%s225 + $0xf8] sm:$0xff]
        %v449 = vld [vmem:[%s225 + $0x100] sm:$0xff]
        %v450 = vld [vmem:[%s225 + $0x108] sm:$0xff]
        %v451 = vld [vmem:[%s225 + $0x110] sm:$0xff]
        %v452 = vld [vmem:[%s225 + $0x118] sm:$0xff]
        %v453 = vld [vmem:[%s225 + $0x120] sm:$0xff]
        %v454 = vld [vmem:[%s225 + $0x128] sm:$0xff]
        %v455 = vld [vmem:[%s225 + $0x130] sm:$0xff]
        %v456 = vld [vmem:[%s225 + $0x138] sm:$0xff]
        %v457 = vld [vmem:[%s225 + $0x140] sm:$0xff]
        %v458 = vld [vmem:[%s225 + $0x148] sm:$0xff]
        %v459 = vld [vmem:[%s225 + $0x150] sm:$0xff]
        %v460 = vld [vmem:[%s225 + $0x158] sm:$0xff]
        %v461 = vld [vmem:[%s225 + $0x160] sm:$0xff]
        %v462 = vld [vmem:[%s225 + $0x168] sm:$0xff]
        %v463 = vld [vmem:[%s225 + $0x170] sm:$0xff]
        %v464 = vld [vmem:[%s225 + $0x178] sm:$0xff]
        %v465 = vld [vmem:[%s225 + $0x180] sm:$0xff]
        %v466 = vld [vmem:[%s225 + $0x188] sm:$0xff]
        %v467 = vld [vmem:[%s225 + $0x190] sm:$0xff]
        %v468 = vld [vmem:[%s225 + $0x198] sm:$0xff]
        %v469 = vld [vmem:[%s225 + $0x1a0] sm:$0xff]
        %v470 = vld [vmem:[%s225 + $0x1a8] sm:$0xff]
        %v471 = vld [vmem:[%s225 + $0x1b0] sm:$0xff]
        %v472 = vld [vmem:[%s225 + $0x1b8] sm:$0xff]
        %v473 = vld [vmem:[%s225 + $0x1c0] sm:$0xff]
        %v474 = vld [vmem:[%s225 + $0x1c8] sm:$0xff]
        %v475 = vld [vmem:[%s225 + $0x1d0] sm:$0xff]
        %v476 = vld [vmem:[%s225 + $0x1d8] sm:$0xff]
        %v477 = vld [vmem:[%s225 + $0x1e0] sm:$0xff]
        %v478 = vld [vmem:[%s225 + $0x1e8] sm:$0xff]
        %v479 = vld [vmem:[%s225 + $0x1f0] sm:$0xff]
        %v480 = vld [vmem:[%s225 + $0x1f8] sm:$0xff]
        %v481 = vld [vmem:[%s225 + $0x200] sm:$0xff]
        %v482 = vld [vmem:[%s225 + $0x208] sm:$0xff]
        %v483 = vld [vmem:[%s225 + $0x210] sm:$0xff]
        %v484 = vld [vmem:[%s225 + $0x218] sm:$0xff]
        %v485 = vld [vmem:[%s225 + $0x220] sm:$0xff]
        %v486 = vld [vmem:[%s225 + $0x228] sm:$0xff]
        %v487 = vld [vmem:[%s225 + $0x230] sm:$0xff]
        %v488 = vld [vmem:[%s225 + $0x238] sm:$0xff]
        %v489 = vld [vmem:[%s225 + $0x240] sm:$0xff]
        %v490 = vld [vmem:[%s225 + $0x248] sm:$0xff]
        %v491 = vld [vmem:[%s225 + $0x250] sm:$0xff]
        %v492 = vld [vmem:[%s225 + $0x258] sm:$0xff]
        %v493 = vld [vmem:[%s225 + $0x260] sm:$0xff]
        %v494 = vld [vmem:[%s225 + $0x268] sm:$0xff]
        %v495 = vld [vmem:[%s225 + $0x270] sm:$0xff]
        %v496 = vld [vmem:[%s225 + $0x278] sm:$0xff]
        %v497 = vld [vmem:[%s225 + $0x280] sm:$0xff]
        %v498 = vld [vmem:[%s225 + $0x288] sm:$0xff]
        %v499 = vld [vmem:[%s225 + $0x290] sm:$0xff]
        %v500 = vld [vmem:[%s225 + $0x298] sm:$0xff]
        %v501 = vld [vmem:[%s225 + $0x2a0] sm:$0xff]
        %v502 = vld [vmem:[%s225 + $0x2a8] sm:$0xff]
        %v503 = vld [vmem:[%s225 + $0x2b0] sm:$0xff]
        %v504 = vld [vmem:[%s225 + $0x2b8] sm:$0xff]
        %v505 = vld [vmem:[%s225 + $0x2c0] sm:$0xff]
        %v506 = vld [vmem:[%s225 + $0x2c8] sm:$0xff]
        %v507 = vld [vmem:[%s225 + $0x2d0] sm:$0xff]
        %v508 = vld [vmem:[%s225 + $0x2d8] sm:$0xff]
        %v509 = vld [vmem:[%s225 + $0x2e0] sm:$0xff]
        %v510 = vld [vmem:[%s225 + $0x2e8] sm:$0xff]
        %v511 = vld [vmem:[%s225 + $0x2f0] sm:$0xff]
        %v512 = vld [vmem:[%s225 + $0x2f8] sm:$0xff]
        %v513 = vld [vmem:[%s225 + $0x300] sm:$0xff]
        %v514 = vld [vmem:[%s225 + $0x308] sm:$0xff]
        %v515 = vld [vmem:[%s225 + $0x310] sm:$0xff]
        %v516 = vld [vmem:[%s225 + $0x318] sm:$0xff]
        %v517 = vld [vmem:[%s225 + $0x320] sm:$0xff]
        %v518 = vld [vmem:[%s225 + $0x328] sm:$0xff]
        %v519 = vld [vmem:[%s225 + $0x330] sm:$0xff]
        %v520 = vld [vmem:[%s225 + $0x338] sm:$0xff]
        %v521 = vld [vmem:[%s225 + $0x340] sm:$0xff]
        %v522 = vld [vmem:[%s225 + $0x348] sm:$0xff]
        %v523 = vld [vmem:[%s225 + $0x350] sm:$0xff]
        %v524 = vld [vmem:[%s225 + $0x358] sm:$0xff]
        %v525 = vld [vmem:[%s225 + $0x360] sm:$0xff]
        %v526 = vld [vmem:[%s225 + $0x368] sm:$0xff]
        %v527 = vld [vmem:[%s225 + $0x370] sm:$0xff]
        %v528 = vld [vmem:[%s225 + $0x378] sm:$0xff]
        %v529 = vld [vmem:[%s225 + $0x380] sm:$0xff]
        %v530 = vld [vmem:[%s225 + $0x388] sm:$0xff]
        %v531 = vld [vmem:[%s225 + $0x390] sm:$0xff]
        %v532 = vld [vmem:[%s225 + $0x398] sm:$0xff]
        %v533 = vld [vmem:[%s225 + $0x3a0] sm:$0xff]
        %v534 = vld [vmem:[%s225 + $0x3a8] sm:$0xff]
        %v535 = vld [vmem:[%s225 + $0x3b0] sm:$0xff]
        %v536 = vld [vmem:[%s225 + $0x3b8] sm:$0xff]
        %v537 = vld [vmem:[%s225 + $0x3c0] sm:$0xff]
        %v538 = vld [vmem:[%s225 + $0x3c8] sm:$0xff]
        %v539 = vld [vmem:[%s225 + $0x3d0] sm:$0xff]
        %v540 = vld [vmem:[%s225 + $0x3d8] sm:$0xff]
        %v541 = vld [vmem:[%s225 + $0x3e0] sm:$0xff]
        %v542 = vld [vmem:[%s225 + $0x3e8] sm:$0xff]
        %v543 = vld [vmem:[%s225 + $0x3f0] sm:$0xff]
        %v544 = vld [vmem:[%s225 + $0x3f8] sm:$0xff]
        %v545 = vld [vmem:[%s225 + $0x400] sm:$0xff]
        %v546 = vld [vmem:[%s225 + $0x408] sm:$0xff]
        %v547 = vld [vmem:[%s225 + $0x410] sm:$0xff]
        %v548 = vld [vmem:[%s225 + $0x418] sm:$0xff]
        %v549 = vld [vmem:[%s225 + $0x420] sm:$0xff]
        %v550 = vld [vmem:[%s225 + $0x428] sm:$0xff]
        %v551 = vld [vmem:[%s225 + $0x430] sm:$0xff]
        %v552 = vld [vmem:[%s225 + $0x438] sm:$0xff]
        %v553 = vld [vmem:[%s225 + $0x440] sm:$0xff]
        %v554 = vld [vmem:[%s225 + $0x448] sm:$0xff]
        %v555 = vld [vmem:[%s225 + $0x450] sm:$0xff]
        %v556 = vld [vmem:[%s225 + $0x458] sm:$0xff]
        %v557 = vld [vmem:[%s225 + $0x460] sm:$0xff]
        %v558 = vld [vmem:[%s225 + $0x468] sm:$0xff]
        %v559 = vld [vmem:[%s225 + $0x470] sm:$0xff]
        %v560 = vld [vmem:[%s225 + $0x478] sm:$0xff]
        %v561 = vld [vmem:[%s225 + $0x480] sm:$0xff]
        %v562 = vld [vmem:[%s225 + $0x488] sm:$0xff]
        %v563 = vld [vmem:[%s225 + $0x490] sm:$0xff]
        %v564 = vld [vmem:[%s225 + $0x498] sm:$0xff]
        %v565 = vld [vmem:[%s225 + $0x4a0] sm:$0xff]
        %v566 = vld [vmem:[%s225 + $0x4a8] sm:$0xff]
        %v567 = vld [vmem:[%s225 + $0x4b0] sm:$0xff]
        %v568 = vld [vmem:[%s225 + $0x4b8] sm:$0xff]
        %v569 = vld [vmem:[%s225 + $0x4c0] sm:$0xff]
        %v570 = vld [vmem:[%s225 + $0x4c8] sm:$0xff]
        %v571 = vld [vmem:[%s225 + $0x4d0] sm:$0xff]
        %v572 = vld [vmem:[%s225 + $0x4d8] sm:$0xff]
        %v573 = vld [vmem:[%s225 + $0x4e0] sm:$0xff]
        %v574 = vld [vmem:[%s225 + $0x4e8] sm:$0xff]
        %v575 = vld [vmem:[%s225 + $0x4f0] sm:$0xff]
        %v576 = vld [vmem:[%s225 + $0x4f8] sm:$0xff]
        %v577 = vld [vmem:[%s225 + $0x500] sm:$0xff]
        %v578 = vld [vmem:[%s225 + $0x508] sm:$0xff]
        %v579 = vld [vmem:[%s225 + $0x510] sm:$0xff]
        %v580 = vld [vmem:[%s225 + $0x518] sm:$0xff]
        %v581 = vld [vmem:[%s225 + $0x520] sm:$0xff]
        %v582 = vld [vmem:[%s225 + $0x528] sm:$0xff]
        %v583 = vld [vmem:[%s225 + $0x530] sm:$0xff]
        %v584 = vld [vmem:[%s225 + $0x538] sm:$0xff]
        %v585 = vld [vmem:[%s225 + $0x540] sm:$0xff]
        %v586 = vld [vmem:[%s225 + $0x548] sm:$0xff]
        %v587 = vld [vmem:[%s225 + $0x550] sm:$0xff]
        %v588 = vld [vmem:[%s225 + $0x558] sm:$0xff]
        %v589 = vld [vmem:[%s225 + $0x560] sm:$0xff]
        %v590 = vld [vmem:[%s225 + $0x568] sm:$0xff]
        %v591 = vld [vmem:[%s225 + $0x570] sm:$0xff]
        %v592 = vld [vmem:[%s225 + $0x578] sm:$0xff]
        %v593 = vld [vmem:[%s225 + $0x580] sm:$0xff]
        %v594 = vld [vmem:[%s225 + $0x588] sm:$0xff]
        %v595 = vld [vmem:[%s225 + $0x590] sm:$0xff]
        %v596 = vld [vmem:[%s225 + $0x598] sm:$0xff]
        %v597 = vld [vmem:[%s225 + $0x5a0] sm:$0xff]
        %v598 = vld [vmem:[%s225 + $0x5a8] sm:$0xff]
        %v599 = vld [vmem:[%s225 + $0x5b0] sm:$0xff]
        %v600 = vld [vmem:[%s225 + $0x5b8] sm:$0xff]
        %v601 = vld [vmem:[%s225 + $0x5c0] sm:$0xff]
        %v602 = vld [vmem:[%s225 + $0x5c8] sm:$0xff]
        %v603 = vld [vmem:[%s225 + $0x5d0] sm:$0xff]
        %v604 = vld [vmem:[%s225 + $0x5d8] sm:$0xff]
        %v605 = vld [vmem:[%s225 + $0x5e0] sm:$0xff]
        %v606 = vld [vmem:[%s225 + $0x5e8] sm:$0xff]
        %v607 = vld [vmem:[%s225 + $0x5f0] sm:$0xff]
        %v608 = vld [vmem:[%s225 + $0x5f8] sm:$0xff]
        %v609 = vld [vmem:[%s225 + $0x600] sm:$0xff]
        %v610 = vld [vmem:[%s225 + $0x608] sm:$0xff]
        %v611 = vld [vmem:[%s225 + $0x610] sm:$0xff]
        %v612 = vld [vmem:[%s225 + $0x618] sm:$0xff]
        %v613 = vld [vmem:[%s225 + $0x620] sm:$0xff]
        %v614 = vld [vmem:[%s225 + $0x628] sm:$0xff]
        %v615 = vld [vmem:[%s225 + $0x630] sm:$0xff]
        %v616 = vld [vmem:[%s225 + $0x638] sm:$0xff]
        %v617 = vld [vmem:[%s225 + $0x640] sm:$0xff]
        %v618 = vld [vmem:[%s225 + $0x648] sm:$0xff]
        %v619 = vld [vmem:[%s225 + $0x650] sm:$0xff]
        %v620 = vld [vmem:[%s225 + $0x658] sm:$0xff]
        %v621 = vld [vmem:[%s225 + $0x660] sm:$0xff]
        %v622 = vld [vmem:[%s225 + $0x668] sm:$0xff]
        %v623 = vld [vmem:[%s225 + $0x670] sm:$0xff]
        %v624 = vld [vmem:[%s225 + $0x678] sm:$0xff]
        %v625 = vld [vmem:[%s225 + $0x680] sm:$0xff]
        %v626 = vld [vmem:[%s225 + $0x688] sm:$0xff]
        %v627 = vld [vmem:[%s225 + $0x690] sm:$0xff]
        %v628 = vld [vmem:[%s225 + $0x698] sm:$0xff]
        %v629 = vld [vmem:[%s225 + $0x6a0] sm:$0xff]
        %v630 = vld [vmem:[%s225 + $0x6a8] sm:$0xff]
        %v631 = vld [vmem:[%s225 + $0x6b0] sm:$0xff]
        %v632 = vld [vmem:[%s225 + $0x6b8] sm:$0xff]
        %v633 = vld [vmem:[%s225 + $0x6c0] sm:$0xff]
        %v634 = vld [vmem:[%s225 + $0x6c8] sm:$0xff]
        %v635 = vld [vmem:[%s225 + $0x6d0] sm:$0xff]
        %v636 = vld [vmem:[%s225 + $0x6d8] sm:$0xff]
        %v637 = vld [vmem:[%s225 + $0x6e0] sm:$0xff]
        %v638 = vld [vmem:[%s225 + $0x6e8] sm:$0xff]
        %v639 = vld [vmem:[%s225 + $0x6f0] sm:$0xff]
        %v640 = vld [vmem:[%s225 + $0x6f8] sm:$0xff]
        %v641 = vld [vmem:[%s225 + $0x700] sm:$0xff]
        %v642 = vld [vmem:[%s225 + $0x708] sm:$0xff]
        %v643 = vld [vmem:[%s225 + $0x710] sm:$0xff]
        %v644 = vld [vmem:[%s225 + $0x718] sm:$0xff]
        %v645 = vld [vmem:[%s225 + $0x720] sm:$0xff]
        %v646 = vld [vmem:[%s225 + $0x728] sm:$0xff]
        %v647 = vld [vmem:[%s225 + $0x730] sm:$0xff]
        %v648 = vld [vmem:[%s225 + $0x738] sm:$0xff]
        %v649 = vld [vmem:[%s225 + $0x740] sm:$0xff]
        %v650 = vld [vmem:[%s225 + $0x748] sm:$0xff]
        %v651 = vld [vmem:[%s225 + $0x750] sm:$0xff]
        %v652 = vld [vmem:[%s225 + $0x758] sm:$0xff]
        %v653 = vld [vmem:[%s225 + $0x760] sm:$0xff]
        %v654 = vld [vmem:[%s225 + $0x768] sm:$0xff]
        %v655 = vld [vmem:[%s225 + $0x770] sm:$0xff]
        %v656 = vld [vmem:[%s225 + $0x778] sm:$0xff]
        %v657 = vld [vmem:[%s225 + $0x780] sm:$0xff]
        %v658 = vld [vmem:[%s225 + $0x788] sm:$0xff]
        %v659 = vld [vmem:[%s225 + $0x790] sm:$0xff]
        %v660 = vld [vmem:[%s225 + $0x798] sm:$0xff]
        %v661 = vld [vmem:[%s225 + $0x7a0] sm:$0xff]
        %v662 = vld [vmem:[%s225 + $0x7a8] sm:$0xff]
        %v663 = vld [vmem:[%s225 + $0x7b0] sm:$0xff]
        %v664 = vld [vmem:[%s225 + $0x7b8] sm:$0xff]
        %v665 = vld [vmem:[%s225 + $0x7c0] sm:$0xff]
        %v666 = vld [vmem:[%s225 + $0x7c8] sm:$0xff]
        %v667 = vld [vmem:[%s225 + $0x7d0] sm:$0xff]
        %v668 = vld [vmem:[%s225 + $0x7d8] sm:$0xff]
        %v669 = vld [vmem:[%s225 + $0x7e0] sm:$0xff]
        %v670 = vld [vmem:[%s225 + $0x7e8] sm:$0xff]
        %v671 = vld [vmem:[%s225 + $0x7f0] sm:$0xff]
        %v672 = vld [vmem:[%s225 + $0x7f8] sm:$0xff]
        %v673 = vld [vmem:[%s225 + $0x800] sm:$0xff]
        %v674 = vld [vmem:[%s225 + $0x808] sm:$0xff]
        %v675 = vld [vmem:[%s225 + $0x810] sm:$0xff]
        %v676 = vld [vmem:[%s225 + $0x818] sm:$0xff]
        %v677 = vld [vmem:[%s225 + $0x820] sm:$0xff]
        %v678 = vld [vmem:[%s225 + $0x828] sm:$0xff]
        %v679 = vld [vmem:[%s225 + $0x830] sm:$0xff]
        %v680 = vld [vmem:[%s225 + $0x838] sm:$0xff]
        %v681 = vld [vmem:[%s225 + $0x840] sm:$0xff]
        %v682 = vld [vmem:[%s225 + $0x848] sm:$0xff]
        %v683 = vld [vmem:[%s225 + $0x850] sm:$0xff]
        %v684 = vld [vmem:[%s225 + $0x858] sm:$0xff]
        %v685 = vld [vmem:[%s225 + $0x860] sm:$0xff]
        %v686 = vld [vmem:[%s225 + $0x868] sm:$0xff]
        %v687 = vld [vmem:[%s225 + $0x870] sm:$0xff]
        %v688 = vld [vmem:[%s225 + $0x878] sm:$0xff]
        %v689 = vld [vmem:[%s225 + $0x880] sm:$0xff]
        %v690 = vld [vmem:[%s225 + $0x888] sm:$0xff]
        %v691 = vld [vmem:[%s225 + $0x890] sm:$0xff]
        %v692 = vld [vmem:[%s225 + $0x898] sm:$0xff]
        %v693 = vld [vmem:[%s225 + $0x8a0] sm:$0xff]
        %v694 = vld [vmem:[%s225 + $0x8a8] sm:$0xff]
        %v695 = vld [vmem:[%s225 + $0x8b0] sm:$0xff]
        %v696 = vld [vmem:[%s225 + $0x8b8] sm:$0xff]
        %v697 = vld [vmem:[%s225 + $0x8c0] sm:$0xff]
        %v698 = vld [vmem:[%s225 + $0x8c8] sm:$0xff]
        %v699 = vld [vmem:[%s225 + $0x8d0] sm:$0xff]
        %v700 = vld [vmem:[%s225 + $0x8d8] sm:$0xff]
        %v701 = vld [vmem:[%s225 + $0x8e0] sm:$0xff]
        %v702 = vld [vmem:[%s225 + $0x8e8] sm:$0xff]
        %v703 = vld [vmem:[%s225 + $0x8f0] sm:$0xff]
        %v704 = vld [vmem:[%s225 + $0x8f8] sm:$0xff]
        %v705 = vld [vmem:[%s225 + $0x900] sm:$0xff]
        %v706 = vld [vmem:[%s225 + $0x908] sm:$0xff]
        %v707 = vld [vmem:[%s225 + $0x910] sm:$0xff]
        %v708 = vld [vmem:[%s225 + $0x918] sm:$0xff]
        %v709 = vld [vmem:[%s225 + $0x920] sm:$0xff]
        %v710 = vld [vmem:[%s225 + $0x928] sm:$0xff]
        %v711 = vld [vmem:[%s225 + $0x930] sm:$0xff]
        %v712 = vld [vmem:[%s225 + $0x938] sm:$0xff]
        %v713 = vld [vmem:[%s225 + $0x940] sm:$0xff]
        %v714 = vld [vmem:[%s225 + $0x948] sm:$0xff]
        %v715 = vld [vmem:[%s225 + $0x950] sm:$0xff]
        %v716 = vld [vmem:[%s225 + $0x958] sm:$0xff]
        %v717 = vld [vmem:[%s225 + $0x960] sm:$0xff]
        %v718 = vld [vmem:[%s225 + $0x968] sm:$0xff]
        %v719 = vld [vmem:[%s225 + $0x970] sm:$0xff]
        %v720 = vld [vmem:[%s225 + $0x978] sm:$0xff]
        %v721 = vld [vmem:[%s225 + $0x980] sm:$0xff]
        %v722 = vld [vmem:[%s225 + $0x988] sm:$0xff]
        %v723 = vld [vmem:[%s225 + $0x990] sm:$0xff]
        %v724 = vld [vmem:[%s225 + $0x998] sm:$0xff]
        %v725 = vld [vmem:[%s225 + $0x9a0] sm:$0xff]
        %v726 = vld [vmem:[%s225 + $0x9a8] sm:$0xff]
        %v727 = vld [vmem:[%s225 + $0x9b0] sm:$0xff]
        %v728 = vld [vmem:[%s225 + $0x9b8] sm:$0xff]
        %v729 = vld [vmem:[%s225 + $0x9c0] sm:$0xff]
        %v730 = vld [vmem:[%s225 + $0x9c8] sm:$0xff]
        %v731 = vld [vmem:[%s225 + $0x9d0] sm:$0xff]
        %v732 = vld [vmem:[%s225 + $0x9d8] sm:$0xff]
        %v733 = vld [vmem:[%s225 + $0x9e0] sm:$0xff]
        %v734 = vld [vmem:[%s225 + $0x9e8] sm:$0xff]
        %v735 = vld [vmem:[%s225 + $0x9f0] sm:$0xff]
        %v736 = vld [vmem:[%s225 + $0x9f8] sm:$0xff]
        %v737 = vld [vmem:[%s225 + $0xa00] sm:$0xff]
        %v738 = vld [vmem:[%s225 + $0xa08] sm:$0xff]
        %v739 = vld [vmem:[%s225 + $0xa10] sm:$0xff]
        %v740 = vld [vmem:[%s225 + $0xa18] sm:$0xff]
        %v741 = vld [vmem:[%s225 + $0xa20] sm:$0xff]
        %v742 = vld [vmem:[%s225 + $0xa28] sm:$0xff]
        %v743 = vld [vmem:[%s225 + $0xa30] sm:$0xff]
        %v744 = vld [vmem:[%s225 + $0xa38] sm:$0xff]
        %v745 = vld [vmem:[%s225 + $0xa40] sm:$0xff]
        %v746 = vld [vmem:[%s225 + $0xa48] sm:$0xff]
        %v747 = vld [vmem:[%s225 + $0xa50] sm:$0xff]
        %v748 = vld [vmem:[%s225 + $0xa58] sm:$0xff]
        %v749 = vld [vmem:[%s225 + $0xa60] sm:$0xff]
        %v750 = vld [vmem:[%s225 + $0xa68] sm:$0xff]
        %v751 = vld [vmem:[%s225 + $0xa70] sm:$0xff]
        %v752 = vld [vmem:[%s225 + $0xa78] sm:$0xff]
        %v753 = vld [vmem:[%s225 + $0xa80] sm:$0xff]
        %v754 = vld [vmem:[%s225 + $0xa88] sm:$0xff]
        %v755 = vld [vmem:[%s225 + $0xa90] sm:$0xff]
        %v756 = vld [vmem:[%s225 + $0xa98] sm:$0xff]
        %v757 = vld [vmem:[%s225 + $0xaa0] sm:$0xff]
        %v758 = vld [vmem:[%s225 + $0xaa8] sm:$0xff]
        %v759 = vld [vmem:[%s225 + $0xab0] sm:$0xff]
        %v760 = vld [vmem:[%s225 + $0xab8] sm:$0xff]
        %v761 = vld [vmem:[%s225 + $0xac0] sm:$0xff]
        %v762 = vld [vmem:[%s225 + $0xac8] sm:$0xff]
        %v763 = vld [vmem:[%s225 + $0xad0] sm:$0xff]
        %v764 = vld [vmem:[%s225 + $0xad8] sm:$0xff]
        %v765 = vld [vmem:[%s225 + $0xae0] sm:$0xff]
        %v766 = vld [vmem:[%s225 + $0xae8] sm:$0xff]
        %v767 = vld [vmem:[%s225 + $0xaf0] sm:$0xff]
        %v768 = vld [vmem:[%s225 + $0xaf8] sm:$0xff]
        %v769 = vld [vmem:[%s225 + $0xb00] sm:$0xff]
        %v770 = vld [vmem:[%s225 + $0xb08] sm:$0xff]
        %v771 = vld [vmem:[%s225 + $0xb10] sm:$0xff]
        %v772 = vld [vmem:[%s225 + $0xb18] sm:$0xff]
        %v773 = vld [vmem:[%s225 + $0xb20] sm:$0xff]
        %v774 = vld [vmem:[%s225 + $0xb28] sm:$0xff]
        %v775 = vld [vmem:[%s225 + $0xb30] sm:$0xff]
        %v776 = vld [vmem:[%s225 + $0xb38] sm:$0xff]
        %v777 = vld [vmem:[%s225 + $0xb40] sm:$0xff]
        %v778 = vld [vmem:[%s225 + $0xb48] sm:$0xff]
        %v779 = vld [vmem:[%s225 + $0xb50] sm:$0xff]
        %v780 = vld [vmem:[%s225 + $0xb58] sm:$0xff]
        %v781 = vld [vmem:[%s225 + $0xb60] sm:$0xff]
        %v782 = vld [vmem:[%s225 + $0xb68] sm:$0xff]
        %v783 = vld [vmem:[%s225 + $0xb70] sm:$0xff]
        %v784 = vld [vmem:[%s225 + $0xb78] sm:$0xff]
        %v785 = vld [vmem:[%s225 + $0xb80] sm:$0xff]
        %v786 = vld [vmem:[%s225 + $0xb88] sm:$0xff]
        %v787 = vld [vmem:[%s225 + $0xb90] sm:$0xff]
        %v788 = vld [vmem:[%s225 + $0xb98] sm:$0xff]
        %v789 = vld [vmem:[%s225 + $0xba0] sm:$0xff]
        %v790 = vld [vmem:[%s225 + $0xba8] sm:$0xff]
        %v791 = vld [vmem:[%s225 + $0xbb0] sm:$0xff]
        %v792 = vld [vmem:[%s225 + $0xbb8] sm:$0xff]
        %v793 = vld [vmem:[%s225 + $0xbc0] sm:$0xff]
        %v794 = vld [vmem:[%s225 + $0xbc8] sm:$0xff]
        %v795 = vld [vmem:[%s225 + $0xbd0] sm:$0xff]
        %v796 = vld [vmem:[%s225 + $0xbd8] sm:$0xff]
        %v797 = vld [vmem:[%s225 + $0xbe0] sm:$0xff]
        %v798 = vld [vmem:[%s225 + $0xbe8] sm:$0xff]
        %v799 = vld [vmem:[%s225 + $0xbf0] sm:$0xff]
        %v800 = vld [vmem:[%s225 + $0xbf8] sm:$0xff]
        %v801 = vld [vmem:[%s225 + $0xc00] sm:$0xff]
        %v802 = vld [vmem:[%s225 + $0xc08] sm:$0xff]
        %v803 = vld [vmem:[%s225 + $0xc10] sm:$0xff]
        %v804 = vld [vmem:[%s225 + $0xc18] sm:$0xff]
        %v805 = vld [vmem:[%s225 + $0xc20] sm:$0xff]
        %v806 = vld [vmem:[%s225 + $0xc28] sm:$0xff]
        %v807 = vld [vmem:[%s225 + $0xc30] sm:$0xff]
        %v808 = vld [vmem:[%s225 + $0xc38] sm:$0xff]
        %v809 = vld [vmem:[%s225 + $0xc40] sm:$0xff]
        %v810 = vld [vmem:[%s225 + $0xc48] sm:$0xff]
        %v811 = vld [vmem:[%s225 + $0xc50] sm:$0xff]
        %v812 = vld [vmem:[%s225 + $0xc58] sm:$0xff]
        %v813 = vld [vmem:[%s225 + $0xc60] sm:$0xff]
        %v814 = vld [vmem:[%s225 + $0xc68] sm:$0xff]
        %v815 = vld [vmem:[%s225 + $0xc70] sm:$0xff]
        %v816 = vld [vmem:[%s225 + $0xc78] sm:$0xff]
        %v817 = vld [vmem:[%s225 + $0xc80] sm:$0xff]
        %v818 = vld [vmem:[%s225 + $0xc88] sm:$0xff]
        %v819 = vld [vmem:[%s225 + $0xc90] sm:$0xff]
        %v820 = vld [vmem:[%s225 + $0xc98] sm:$0xff]
        %v821 = vld [vmem:[%s225 + $0xca0] sm:$0xff]
        %v822 = vld [vmem:[%s225 + $0xca8] sm:$0xff]
        %v823 = vld [vmem:[%s225 + $0xcb0] sm:$0xff]
        %v824 = vld [vmem:[%s225 + $0xcb8] sm:$0xff]
        %v825 = vld [vmem:[%s225 + $0xcc0] sm:$0xff]
        %v826 = vld [vmem:[%s225 + $0xcc8] sm:$0xff]
        %v827 = vld [vmem:[%s225 + $0xcd0] sm:$0xff]
        %v828 = vld [vmem:[%s225 + $0xcd8] sm:$0xff]
        %v829 = vld [vmem:[%s225 + $0xce0] sm:$0xff]
        %v830 = vld [vmem:[%s225 + $0xce8] sm:$0xff]
        %v831 = vld [vmem:[%s225 + $0xcf0] sm:$0xff]
        %v832 = vld [vmem:[%s225 + $0xcf8] sm:$0xff]
        %v833 = vld [vmem:[%s225 + $0xd00] sm:$0xff]
        %v834 = vld [vmem:[%s225 + $0xd08] sm:$0xff]
        %v835 = vld [vmem:[%s225 + $0xd10] sm:$0xff]
        %v836 = vld [vmem:[%s225 + $0xd18] sm:$0xff]
        %v837 = vld [vmem:[%s225 + $0xd20] sm:$0xff]
        %v838 = vld [vmem:[%s225 + $0xd28] sm:$0xff]
        %v839 = vld [vmem:[%s225 + $0xd30] sm:$0xff]
        %v840 = vld [vmem:[%s225 + $0xd38] sm:$0xff]
        %v841 = vld [vmem:[%s225 + $0xd40] sm:$0xff]
        %v842 = vld [vmem:[%s225 + $0xd48] sm:$0xff]
        %v843 = vld [vmem:[%s225 + $0xd50] sm:$0xff]
        %v844 = vld [vmem:[%s225 + $0xd58] sm:$0xff]
        %v845 = vld [vmem:[%s225 + $0xd60] sm:$0xff]
        %v846 = vld [vmem:[%s225 + $0xd68] sm:$0xff]
        %v847 = vld [vmem:[%s225 + $0xd70] sm:$0xff]
        %v848 = vld [vmem:[%s225 + $0xd78] sm:$0xff]
        %v849 = vld [vmem:[%s225 + $0xd80] sm:$0xff]
        %v850 = vld [vmem:[%s225 + $0xd88] sm:$0xff]
        %v851 = vld [vmem:[%s225 + $0xd90] sm:$0xff]
        %v852 = vld [vmem:[%s225 + $0xd98] sm:$0xff]
        %v853 = vld [vmem:[%s225 + $0xda0] sm:$0xff]
        %v854 = vld [vmem:[%s225 + $0xda8] sm:$0xff]
        %v855 = vld [vmem:[%s225 + $0xdb0] sm:$0xff]
        %v856 = vld [vmem:[%s225 + $0xdb8] sm:$0xff]
        %v857 = vld [vmem:[%s225 + $0xdc0] sm:$0xff]
        %v858 = vld [vmem:[%s225 + $0xdc8] sm:$0xff]
        %v859 = vld [vmem:[%s225 + $0xdd0] sm:$0xff]
        %v860 = vld [vmem:[%s225 + $0xdd8] sm:$0xff]
        %v861 = vld [vmem:[%s225 + $0xde0] sm:$0xff]
        %v862 = vld [vmem:[%s225 + $0xde8] sm:$0xff]
        %v863 = vld [vmem:[%s225 + $0xdf0] sm:$0xff]
        %v864 = vld [vmem:[%s225 + $0xdf8] sm:$0xff]
        %v865 = vld [vmem:[%s225 + $0xe00] sm:$0xff]
        %v866 = vld [vmem:[%s225 + $0xe08] sm:$0xff]
        %v867 = vld [vmem:[%s225 + $0xe10] sm:$0xff]
        %v868 = vld [vmem:[%s225 + $0xe18] sm:$0xff]
        %v869 = vld [vmem:[%s225 + $0xe20] sm:$0xff]
        %v870 = vld [vmem:[%s225 + $0xe28] sm:$0xff]
        %v871 = vld [vmem:[%s225 + $0xe30] sm:$0xff]
        %v872 = vld [vmem:[%s225 + $0xe38] sm:$0xff]
        %v873 = vld [vmem:[%s225 + $0xe40] sm:$0xff]
        %v874 = vld [vmem:[%s225 + $0xe48] sm:$0xff]
        %v875 = vld [vmem:[%s225 + $0xe50] sm:$0xff]
        %v876 = vld [vmem:[%s225 + $0xe58] sm:$0xff]
        %v877 = vld [vmem:[%s225 + $0xe60] sm:$0xff]
        %v878 = vld [vmem:[%s225 + $0xe68] sm:$0xff]
        %v879 = vld [vmem:[%s225 + $0xe70] sm:$0xff]
        %v880 = vld [vmem:[%s225 + $0xe78] sm:$0xff]
        %v881 = vld [vmem:[%s225 + $0xe80] sm:$0xff]
        %v882 = vld [vmem:[%s225 + $0xe88] sm:$0xff]
        %v883 = vld [vmem:[%s225 + $0xe90] sm:$0xff]
        %v884 = vld [vmem:[%s225 + $0xe98] sm:$0xff]
        %v885 = vld [vmem:[%s225 + $0xea0] sm:$0xff]
        %v886 = vld [vmem:[%s225 + $0xea8] sm:$0xff]
        %v887 = vld [vmem:[%s225 + $0xeb0] sm:$0xff]
        %v888 = vld [vmem:[%s225 + $0xeb8] sm:$0xff]
        %v889 = vld [vmem:[%s225 + $0xec0] sm:$0xff]
        %v890 = vld [vmem:[%s225 + $0xec8] sm:$0xff]
        %v891 = vld [vmem:[%s225 + $0xed0] sm:$0xff]
        %v892 = vld [vmem:[%s225 + $0xed8] sm:$0xff]
        %v893 = vld [vmem:[%s225 + $0xee0] sm:$0xff]
        %v894 = vld [vmem:[%s225 + $0xee8] sm:$0xff]
        %v895 = vld [vmem:[%s225 + $0xef0] sm:$0xff]
        %v896 = vld [vmem:[%s225 + $0xef8] sm:$0xff]
        %v897 = vld [vmem:[%s225 + $0xf00] sm:$0xff]
        %v898 = vld [vmem:[%s225 + $0xf08] sm:$0xff]
        %v899 = vld [vmem:[%s225 + $0xf10] sm:$0xff]
        %v900 = vld [vmem:[%s225 + $0xf18] sm:$0xff]
        %v901 = vld [vmem:[%s225 + $0xf20] sm:$0xff]
        %v902 = vld [vmem:[%s225 + $0xf28] sm:$0xff]
        %v903 = vld [vmem:[%s225 + $0xf30] sm:$0xff]
        %v904 = vld [vmem:[%s225 + $0xf38] sm:$0xff]
        %v905 = vld [vmem:[%s225 + $0xf40] sm:$0xff]
        %v906 = vld [vmem:[%s225 + $0xf48] sm:$0xff]
        %v907 = vld [vmem:[%s225 + $0xf50] sm:$0xff]
        %v908 = vld [vmem:[%s225 + $0xf58] sm:$0xff]
        %v909 = vld [vmem:[%s225 + $0xf60] sm:$0xff]
        %v910 = vld [vmem:[%s225 + $0xf68] sm:$0xff]
        %v911 = vld [vmem:[%s225 + $0xf70] sm:$0xff]
        %v912 = vld [vmem:[%s225 + $0xf78] sm:$0xff]
        %v913 = vld [vmem:[%s225 + $0xf80] sm:$0xff]
        %v914 = vld [vmem:[%s225 + $0xf88] sm:$0xff]
        %v915 = vld [vmem:[%s225 + $0xf90] sm:$0xff]
        %v916 = vld [vmem:[%s225 + $0xf98] sm:$0xff]
        %v917 = vld [vmem:[%s225 + $0xfa0] sm:$0xff]
        %v918 = vld [vmem:[%s225 + $0xfa8] sm:$0xff]
        %v919 = vld [vmem:[%s225 + $0xfb0] sm:$0xff]
        %v920 = vld [vmem:[%s225 + $0xfb8] sm:$0xff]
        %v921 = vld [vmem:[%s225 + $0xfc0] sm:$0xff]
        %v922 = vld [vmem:[%s225 + $0xfc8] sm:$0xff]
        %v923 = vld [vmem:[%s225 + $0xfd0] sm:$0xff]
        %v924 = vld [vmem:[%s225 + $0xfd8] sm:$0xff]
        %v925 = vld [vmem:[%s225 + $0xfe0] sm:$0xff]
        %v926 = vld [vmem:[%s225 + $0xfe8] sm:$0xff]
        %v927 = vld [vmem:[%s225 + $0xff0] sm:$0xff]
        %v928 = vld [vmem:[%s225 + $0xff8] sm:$0xff]
        %v1441 = vunpack.c.l.b16 %v417
        %v1442 = vunpack.c.h.b16 %v417
        %v1443 = vunpack.c.l.b16 %v418
        %v1444 = vunpack.c.h.b16 %v418
        %v1445 = vunpack.c.l.b16 %v419
        %v1446 = vunpack.c.h.b16 %v419
        %v1447 = vunpack.c.l.b16 %v420
        %v1448 = vunpack.c.h.b16 %v420
        %v1449 = vunpack.c.l.b16 %v421
        %v1450 = vunpack.c.h.b16 %v421
        %v1451 = vunpack.c.l.b16 %v422
        %v1452 = vunpack.c.h.b16 %v422
        %v1453 = vunpack.c.l.b16 %v423
        %v1454 = vunpack.c.h.b16 %v423
        %v1455 = vunpack.c.l.b16 %v424
        %v1456 = vunpack.c.h.b16 %v424
        %v1457 = vunpack.c.l.b16 %v425
        %v1458 = vunpack.c.h.b16 %v425
        %v1459 = vunpack.c.l.b16 %v426
        %v1460 = vunpack.c.h.b16 %v426
        %v1461 = vunpack.c.l.b16 %v427
        %v1462 = vunpack.c.h.b16 %v427
        %v1463 = vunpack.c.l.b16 %v428
        %v1464 = vunpack.c.h.b16 %v428
        %v1465 = vunpack.c.l.b16 %v429
        %v1466 = vunpack.c.h.b16 %v429
        %v1467 = vunpack.c.l.b16 %v430
        %v1468 = vunpack.c.h.b16 %v430
        %v1469 = vunpack.c.l.b16 %v431
        %v1470 = vunpack.c.h.b16 %v431
        %v1471 = vunpack.c.l.b16 %v432
        %v1472 = vunpack.c.h.b16 %v432
        %v1473 = vunpack.c.l.b16 %v433
        %v1474 = vunpack.c.h.b16 %v433
        %v1475 = vunpack.c.l.b16 %v434
        %v1476 = vunpack.c.h.b16 %v434
        %v1477 = vunpack.c.l.b16 %v435
        %v1478 = vunpack.c.h.b16 %v435
        %v1479 = vunpack.c.l.b16 %v436
        %v1480 = vunpack.c.h.b16 %v436
        %v1481 = vunpack.c.l.b16 %v437
        %v1482 = vunpack.c.h.b16 %v437
        %v1483 = vunpack.c.l.b16 %v438
        %v1484 = vunpack.c.h.b16 %v438
        %v1485 = vunpack.c.l.b16 %v439
        %v1486 = vunpack.c.h.b16 %v439
        %v1487 = vunpack.c.l.b16 %v440
        %v1488 = vunpack.c.h.b16 %v440
        %v1489 = vunpack.c.l.b16 %v441
        %v1490 = vunpack.c.h.b16 %v441
        %v1491 = vunpack.c.l.b16 %v442
        %v1492 = vunpack.c.h.b16 %v442
        %v1493 = vunpack.c.l.b16 %v443
        %v1494 = vunpack.c.h.b16 %v443
        %v1495 = vunpack.c.l.b16 %v444
        %v1496 = vunpack.c.h.b16 %v444
        %v1497 = vunpack.c.l.b16 %v445
        %v1498 = vunpack.c.h.b16 %v445
        %v1499 = vunpack.c.l.b16 %v446
        %v1500 = vunpack.c.h.b16 %v446
        %v1501 = vunpack.c.l.b16 %v447
        %v1502 = vunpack.c.h.b16 %v447
        %v1503 = vunpack.c.l.b16 %v448
        %v1504 = vunpack.c.h.b16 %v448
        %v1505 = vunpack.c.l.b16 %v449
        %v1506 = vunpack.c.h.b16 %v449
        %v1507 = vunpack.c.l.b16 %v450
        %v1508 = vunpack.c.h.b16 %v450
        %v1509 = vunpack.c.l.b16 %v451
        %v1510 = vunpack.c.h.b16 %v451
        %v1511 = vunpack.c.l.b16 %v452
        %v1512 = vunpack.c.h.b16 %v452
        %v1513 = vunpack.c.l.b16 %v453
        %v1514 = vunpack.c.h.b16 %v453
        %v1515 = vunpack.c.l.b16 %v454
        %v1516 = vunpack.c.h.b16 %v454
        %v1517 = vunpack.c.l.b16 %v455
        %v1518 = vunpack.c.h.b16 %v455
        %v1519 = vunpack.c.l.b16 %v456
        %v1520 = vunpack.c.h.b16 %v456
        %v1521 = vunpack.c.l.b16 %v457
        %v1522 = vunpack.c.h.b16 %v457
        %v1523 = vunpack.c.l.b16 %v458
        %v1524 = vunpack.c.h.b16 %v458
        %v1525 = vunpack.c.l.b16 %v459
        %v1526 = vunpack.c.h.b16 %v459
        %v1527 = vunpack.c.l.b16 %v460
        %v1528 = vunpack.c.h.b16 %v460
        %v1529 = vunpack.c.l.b16 %v461
        %v1530 = vunpack.c.h.b16 %v461
        %v1531 = vunpack.c.l.b16 %v462
        %v1532 = vunpack.c.h.b16 %v462
        %v1533 = vunpack.c.l.b16 %v463
        %v1534 = vunpack.c.h.b16 %v463
        %v1535 = vunpack.c.l.b16 %v464
        %v1536 = vunpack.c.h.b16 %v464
        %v1537 = vunpack.c.l.b16 %v465
        %v1538 = vunpack.c.h.b16 %v465
        %v1539 = vunpack.c.l.b16 %v466
        %v1540 = vunpack.c.h.b16 %v466
        %v1541 = vunpack.c.l.b16 %v467
        %v1542 = vunpack.c.h.b16 %v467
        %v1543 = vunpack.c.l.b16 %v468
        %v1544 = vunpack.c.h.b16 %v468
        %v1545 = vunpack.c.l.b16 %v469
        %v1546 = vunpack.c.h.b16 %v469
        %v1547 = vunpack.c.l.b16 %v470
        %v1548 = vunpack.c.h.b16 %v470
        %v1549 = vunpack.c.l.b16 %v471
        %v1550 = vunpack.c.h.b16 %v471
        %v1551 = vunpack.c.l.b16 %v472
        %v1552 = vunpack.c.h.b16 %v472
        %v1553 = vunpack.c.l.b16 %v473
        %v1554 = vunpack.c.h.b16 %v473
        %v1555 = vunpack.c.l.b16 %v474
        %v1556 = vunpack.c.h.b16 %v474
        %v1557 = vunpack.c.l.b16 %v475
        %v1558 = vunpack.c.h.b16 %v475
        %v1559 = vunpack.c.l.b16 %v476
        %v1560 = vunpack.c.h.b16 %v476
        %v1561 = vunpack.c.l.b16 %v477
        %v1562 = vunpack.c.h.b16 %v477
        %v1563 = vunpack.c.l.b16 %v478
        %v1564 = vunpack.c.h.b16 %v478
        %v1565 = vunpack.c.l.b16 %v479
        %v1566 = vunpack.c.h.b16 %v479
        %v1567 = vunpack.c.l.b16 %v480
        %v1568 = vunpack.c.h.b16 %v480
        %v1569 = vunpack.c.l.b16 %v481
        %v1570 = vunpack.c.h.b16 %v481
        %v1571 = vunpack.c.l.b16 %v482
        %v1572 = vunpack.c.h.b16 %v482
        %v1573 = vunpack.c.l.b16 %v483
        %v1574 = vunpack.c.h.b16 %v483
        %v1575 = vunpack.c.l.b16 %v484
        %v1576 = vunpack.c.h.b16 %v484
        %v1577 = vunpack.c.l.b16 %v485
        %v1578 = vunpack.c.h.b16 %v485
        %v1579 = vunpack.c.l.b16 %v486
        %v1580 = vunpack.c.h.b16 %v486
        %v1581 = vunpack.c.l.b16 %v487
        %v1582 = vunpack.c.h.b16 %v487
        %v1583 = vunpack.c.l.b16 %v488
        %v1584 = vunpack.c.h.b16 %v488
        %v1585 = vunpack.c.l.b16 %v489
        %v1586 = vunpack.c.h.b16 %v489
        %v1587 = vunpack.c.l.b16 %v490
        %v1588 = vunpack.c.h.b16 %v490
        %v1589 = vunpack.c.l.b16 %v491
        %v1590 = vunpack.c.h.b16 %v491
        %v1591 = vunpack.c.l.b16 %v492
        %v1592 = vunpack.c.h.b16 %v492
        %v1593 = vunpack.c.l.b16 %v493
        %v1594 = vunpack.c.h.b16 %v493
        %v1595 = vunpack.c.l.b16 %v494
        %v1596 = vunpack.c.h.b16 %v494
        %v1597 = vunpack.c.l.b16 %v495
        %v1598 = vunpack.c.h.b16 %v495
        %v1599 = vunpack.c.l.b16 %v496
        %v1600 = vunpack.c.h.b16 %v496
        %v1601 = vunpack.c.l.b16 %v497
        %v1602 = vunpack.c.h.b16 %v497
        %v1603 = vunpack.c.l.b16 %v498
        %v1604 = vunpack.c.h.b16 %v498
        %v1605 = vunpack.c.l.b16 %v499
        %v1606 = vunpack.c.h.b16 %v499
        %v1607 = vunpack.c.l.b16 %v500
        %v1608 = vunpack.c.h.b16 %v500
        %v1609 = vunpack.c.l.b16 %v501
        %v1610 = vunpack.c.h.b16 %v501
        %v1611 = vunpack.c.l.b16 %v502
        %v1612 = vunpack.c.h.b16 %v502
        %v1613 = vunpack.c.l.b16 %v503
        %v1614 = vunpack.c.h.b16 %v503
        %v1615 = vunpack.c.l.b16 %v504
        %v1616 = vunpack.c.h.b16 %v504
        %v1617 = vunpack.c.l.b16 %v505
        %v1618 = vunpack.c.h.b16 %v505
        %v1619 = vunpack.c.l.b16 %v506
        %v1620 = vunpack.c.h.b16 %v506
        %v1621 = vunpack.c.l.b16 %v507
        %v1622 = vunpack.c.h.b16 %v507
        %v1623 = vunpack.c.l.b16 %v508
        %v1624 = vunpack.c.h.b16 %v508
        %v1625 = vunpack.c.l.b16 %v509
        %v1626 = vunpack.c.h.b16 %v509
        %v1627 = vunpack.c.l.b16 %v510
        %v1628 = vunpack.c.h.b16 %v510
        %v1629 = vunpack.c.l.b16 %v511
        %v1630 = vunpack.c.h.b16 %v511
        %v1631 = vunpack.c.l.b16 %v512
        %v1632 = vunpack.c.h.b16 %v512
        %v1633 = vunpack.c.l.b16 %v513
        %v1634 = vunpack.c.h.b16 %v513
        %v1635 = vunpack.c.l.b16 %v514
        %v1636 = vunpack.c.h.b16 %v514
        %v1637 = vunpack.c.l.b16 %v515
        %v1638 = vunpack.c.h.b16 %v515
        %v1639 = vunpack.c.l.b16 %v516
        %v1640 = vunpack.c.h.b16 %v516
        %v1641 = vunpack.c.l.b16 %v517
        %v1642 = vunpack.c.h.b16 %v517
        %v1643 = vunpack.c.l.b16 %v518
        %v1644 = vunpack.c.h.b16 %v518
        %v1645 = vunpack.c.l.b16 %v519
        %v1646 = vunpack.c.h.b16 %v519
        %v1647 = vunpack.c.l.b16 %v520
        %v1648 = vunpack.c.h.b16 %v520
        %v1649 = vunpack.c.l.b16 %v521
        %v1650 = vunpack.c.h.b16 %v521
        %v1651 = vunpack.c.l.b16 %v522
        %v1652 = vunpack.c.h.b16 %v522
        %v1653 = vunpack.c.l.b16 %v523
        %v1654 = vunpack.c.h.b16 %v523
        %v1655 = vunpack.c.l.b16 %v524
        %v1656 = vunpack.c.h.b16 %v524
        %v1657 = vunpack.c.l.b16 %v525
        %v1658 = vunpack.c.h.b16 %v525
        %v1659 = vunpack.c.l.b16 %v526
        %v1660 = vunpack.c.h.b16 %v526
        %v1661 = vunpack.c.l.b16 %v527
        %v1662 = vunpack.c.h.b16 %v527
        %v1663 = vunpack.c.l.b16 %v528
        %v1664 = vunpack.c.h.b16 %v528
        %v1665 = vunpack.c.l.b16 %v529
        %v1666 = vunpack.c.h.b16 %v529
        %v1667 = vunpack.c.l.b16 %v530
        %v1668 = vunpack.c.h.b16 %v530
        %v1669 = vunpack.c.l.b16 %v531
        %v1670 = vunpack.c.h.b16 %v531
        %v1671 = vunpack.c.l.b16 %v532
        %v1672 = vunpack.c.h.b16 %v532
        %v1673 = vunpack.c.l.b16 %v533
        %v1674 = vunpack.c.h.b16 %v533
        %v1675 = vunpack.c.l.b16 %v534
        %v1676 = vunpack.c.h.b16 %v534
        %v1677 = vunpack.c.l.b16 %v535
        %v1678 = vunpack.c.h.b16 %v535
        %v1679 = vunpack.c.l.b16 %v536
        %v1680 = vunpack.c.h.b16 %v536
        %v1681 = vunpack.c.l.b16 %v537
        %v1682 = vunpack.c.h.b16 %v537
        %v1683 = vunpack.c.l.b16 %v538
        %v1684 = vunpack.c.h.b16 %v538
        %v1685 = vunpack.c.l.b16 %v539
        %v1686 = vunpack.c.h.b16 %v539
        %v1687 = vunpack.c.l.b16 %v540
        %v1688 = vunpack.c.h.b16 %v540
        %v1689 = vunpack.c.l.b16 %v541
        %v1690 = vunpack.c.h.b16 %v541
        %v1691 = vunpack.c.l.b16 %v542
        %v1692 = vunpack.c.h.b16 %v542
        %v1693 = vunpack.c.l.b16 %v543
        %v1694 = vunpack.c.h.b16 %v543
        %v1695 = vunpack.c.l.b16 %v544
        %v1696 = vunpack.c.h.b16 %v544
        %v1697 = vunpack.c.l.b16 %v545
        %v1698 = vunpack.c.h.b16 %v545
        %v1699 = vunpack.c.l.b16 %v546
        %v1700 = vunpack.c.h.b16 %v546
        %v1701 = vunpack.c.l.b16 %v547
        %v1702 = vunpack.c.h.b16 %v547
        %v1703 = vunpack.c.l.b16 %v548
        %v1704 = vunpack.c.h.b16 %v548
        %v1705 = vunpack.c.l.b16 %v549
        %v1706 = vunpack.c.h.b16 %v549
        %v1707 = vunpack.c.l.b16 %v550
        %v1708 = vunpack.c.h.b16 %v550
        %v1709 = vunpack.c.l.b16 %v551
        %v1710 = vunpack.c.h.b16 %v551
        %v1711 = vunpack.c.l.b16 %v552
        %v1712 = vunpack.c.h.b16 %v552
        %v1713 = vunpack.c.l.b16 %v553
        %v1714 = vunpack.c.h.b16 %v553
        %v1715 = vunpack.c.l.b16 %v554
        %v1716 = vunpack.c.h.b16 %v554
        %v1717 = vunpack.c.l.b16 %v555
        %v1718 = vunpack.c.h.b16 %v555
        %v1719 = vunpack.c.l.b16 %v556
        %v1720 = vunpack.c.h.b16 %v556
        %v1721 = vunpack.c.l.b16 %v557
        %v1722 = vunpack.c.h.b16 %v557
        %v1723 = vunpack.c.l.b16 %v558
        %v1724 = vunpack.c.h.b16 %v558
        %v1725 = vunpack.c.l.b16 %v559
        %v1726 = vunpack.c.h.b16 %v559
        %v1727 = vunpack.c.l.b16 %v560
        %v1728 = vunpack.c.h.b16 %v560
        %v1729 = vunpack.c.l.b16 %v561
        %v1730 = vunpack.c.h.b16 %v561
        %v1731 = vunpack.c.l.b16 %v562
        %v1732 = vunpack.c.h.b16 %v562
        %v1733 = vunpack.c.l.b16 %v563
        %v1734 = vunpack.c.h.b16 %v563
        %v1735 = vunpack.c.l.b16 %v564
        %v1736 = vunpack.c.h.b16 %v564
        %v1737 = vunpack.c.l.b16 %v565
        %v1738 = vunpack.c.h.b16 %v565
        %v1739 = vunpack.c.l.b16 %v566
        %v1740 = vunpack.c.h.b16 %v566
        %v1741 = vunpack.c.l.b16 %v567
        %v1742 = vunpack.c.h.b16 %v567
        %v1743 = vunpack.c.l.b16 %v568
        %v1744 = vunpack.c.h.b16 %v568
        %v1745 = vunpack.c.l.b16 %v569
        %v1746 = vunpack.c.h.b16 %v569
        %v1747 = vunpack.c.l.b16 %v570
        %v1748 = vunpack.c.h.b16 %v570
        %v1749 = vunpack.c.l.b16 %v571
        %v1750 = vunpack.c.h.b16 %v571
        %v1751 = vunpack.c.l.b16 %v572
        %v1752 = vunpack.c.h.b16 %v572
        %v1753 = vunpack.c.l.b16 %v573
        %v1754 = vunpack.c.h.b16 %v573
        %v1755 = vunpack.c.l.b16 %v574
        %v1756 = vunpack.c.h.b16 %v574
        %v1757 = vunpack.c.l.b16 %v575
        %v1758 = vunpack.c.h.b16 %v575
        %v1759 = vunpack.c.l.b16 %v576
        %v1760 = vunpack.c.h.b16 %v576
        %v1761 = vunpack.c.l.b16 %v577
        %v1762 = vunpack.c.h.b16 %v577
        %v1763 = vunpack.c.l.b16 %v578
        %v1764 = vunpack.c.h.b16 %v578
        %v1765 = vunpack.c.l.b16 %v579
        %v1766 = vunpack.c.h.b16 %v579
        %v1767 = vunpack.c.l.b16 %v580
        %v1768 = vunpack.c.h.b16 %v580
        %v1769 = vunpack.c.l.b16 %v581
        %v1770 = vunpack.c.h.b16 %v581
        %v1771 = vunpack.c.l.b16 %v582
        %v1772 = vunpack.c.h.b16 %v582
        %v1773 = vunpack.c.l.b16 %v583
        %v1774 = vunpack.c.h.b16 %v583
        %v1775 = vunpack.c.l.b16 %v584
        %v1776 = vunpack.c.h.b16 %v584
        %v1777 = vunpack.c.l.b16 %v585
        %v1778 = vunpack.c.h.b16 %v585
        %v1779 = vunpack.c.l.b16 %v586
        %v1780 = vunpack.c.h.b16 %v586
        %v1781 = vunpack.c.l.b16 %v587
        %v1782 = vunpack.c.h.b16 %v587
        %v1783 = vunpack.c.l.b16 %v588
        %v1784 = vunpack.c.h.b16 %v588
        %v1785 = vunpack.c.l.b16 %v589
        %v1786 = vunpack.c.h.b16 %v589
        %v1787 = vunpack.c.l.b16 %v590
        %v1788 = vunpack.c.h.b16 %v590
        %v1789 = vunpack.c.l.b16 %v591
        %v1790 = vunpack.c.h.b16 %v591
        %v1791 = vunpack.c.l.b16 %v592
        %v1792 = vunpack.c.h.b16 %v592
        %v1793 = vunpack.c.l.b16 %v593
        %v1794 = vunpack.c.h.b16 %v593
        %v1795 = vunpack.c.l.b16 %v594
        %v1796 = vunpack.c.h.b16 %v594
        %v1797 = vunpack.c.l.b16 %v595
        %v1798 = vunpack.c.h.b16 %v595
        %v1799 = vunpack.c.l.b16 %v596
        %v1800 = vunpack.c.h.b16 %v596
        %v1801 = vunpack.c.l.b16 %v597
        %v1802 = vunpack.c.h.b16 %v597
        %v1803 = vunpack.c.l.b16 %v598
        %v1804 = vunpack.c.h.b16 %v598
        %v1805 = vunpack.c.l.b16 %v599
        %v1806 = vunpack.c.h.b16 %v599
        %v1807 = vunpack.c.l.b16 %v600
        %v1808 = vunpack.c.h.b16 %v600
        %v1809 = vunpack.c.l.b16 %v601
        %v1810 = vunpack.c.h.b16 %v601
        %v1811 = vunpack.c.l.b16 %v602
        %v1812 = vunpack.c.h.b16 %v602
        %v1813 = vunpack.c.l.b16 %v603
        %v1814 = vunpack.c.h.b16 %v603
        %v1815 = vunpack.c.l.b16 %v604
        %v1816 = vunpack.c.h.b16 %v604
        %v1817 = vunpack.c.l.b16 %v605
        %v1818 = vunpack.c.h.b16 %v605
        %v1819 = vunpack.c.l.b16 %v606
        %v1820 = vunpack.c.h.b16 %v606
        %v1821 = vunpack.c.l.b16 %v607
        %v1822 = vunpack.c.h.b16 %v607
        %v1823 = vunpack.c.l.b16 %v608
        %v1824 = vunpack.c.h.b16 %v608
        %v1825 = vunpack.c.l.b16 %v609
        %v1826 = vunpack.c.h.b16 %v609
        %v1827 = vunpack.c.l.b16 %v610
        %v1828 = vunpack.c.h.b16 %v610
        %v1829 = vunpack.c.l.b16 %v611
        %v1830 = vunpack.c.h.b16 %v611
        %v1831 = vunpack.c.l.b16 %v612
        %v1832 = vunpack.c.h.b16 %v612
        %v1833 = vunpack.c.l.b16 %v613
        %v1834 = vunpack.c.h.b16 %v613
        %v1835 = vunpack.c.l.b16 %v614
        %v1836 = vunpack.c.h.b16 %v614
        %v1837 = vunpack.c.l.b16 %v615
        %v1838 = vunpack.c.h.b16 %v615
        %v1839 = vunpack.c.l.b16 %v616
        %v1840 = vunpack.c.h.b16 %v616
        %v1841 = vunpack.c.l.b16 %v617
        %v1842 = vunpack.c.h.b16 %v617
        %v1843 = vunpack.c.l.b16 %v618
        %v1844 = vunpack.c.h.b16 %v618
        %v1845 = vunpack.c.l.b16 %v619
        %v1846 = vunpack.c.h.b16 %v619
        %v1847 = vunpack.c.l.b16 %v620
        %v1848 = vunpack.c.h.b16 %v620
        %v1849 = vunpack.c.l.b16 %v621
        %v1850 = vunpack.c.h.b16 %v621
        %v1851 = vunpack.c.l.b16 %v622
        %v1852 = vunpack.c.h.b16 %v622
        %v1853 = vunpack.c.l.b16 %v623
        %v1854 = vunpack.c.h.b16 %v623
        %v1855 = vunpack.c.l.b16 %v624
        %v1856 = vunpack.c.h.b16 %v624
        %v1857 = vunpack.c.l.b16 %v625
        %v1858 = vunpack.c.h.b16 %v625
        %v1859 = vunpack.c.l.b16 %v626
        %v1860 = vunpack.c.h.b16 %v626
        %v1861 = vunpack.c.l.b16 %v627
        %v1862 = vunpack.c.h.b16 %v627
        %v1863 = vunpack.c.l.b16 %v628
        %v1864 = vunpack.c.h.b16 %v628
        %v1865 = vunpack.c.l.b16 %v629
        %v1866 = vunpack.c.h.b16 %v629
        %v1867 = vunpack.c.l.b16 %v630
        %v1868 = vunpack.c.h.b16 %v630
        %v1869 = vunpack.c.l.b16 %v631
        %v1870 = vunpack.c.h.b16 %v631
        %v1871 = vunpack.c.l.b16 %v632
        %v1872 = vunpack.c.h.b16 %v632
        %v1873 = vunpack.c.l.b16 %v633
        %v1874 = vunpack.c.h.b16 %v633
        %v1875 = vunpack.c.l.b16 %v634
        %v1876 = vunpack.c.h.b16 %v634
        %v1877 = vunpack.c.l.b16 %v635
        %v1878 = vunpack.c.h.b16 %v635
        %v1879 = vunpack.c.l.b16 %v636
        %v1880 = vunpack.c.h.b16 %v636
        %v1881 = vunpack.c.l.b16 %v637
        %v1882 = vunpack.c.h.b16 %v637
        %v1883 = vunpack.c.l.b16 %v638
        %v1884 = vunpack.c.h.b16 %v638
        %v1885 = vunpack.c.l.b16 %v639
        %v1886 = vunpack.c.h.b16 %v639
        %v1887 = vunpack.c.l.b16 %v640
        %v1888 = vunpack.c.h.b16 %v640
        %v1889 = vunpack.c.l.b16 %v641
        %v1890 = vunpack.c.h.b16 %v641
        %v1891 = vunpack.c.l.b16 %v642
        %v1892 = vunpack.c.h.b16 %v642
        %v1893 = vunpack.c.l.b16 %v643
        %v1894 = vunpack.c.h.b16 %v643
        %v1895 = vunpack.c.l.b16 %v644
        %v1896 = vunpack.c.h.b16 %v644
        %v1897 = vunpack.c.l.b16 %v645
        %v1898 = vunpack.c.h.b16 %v645
        %v1899 = vunpack.c.l.b16 %v646
        %v1900 = vunpack.c.h.b16 %v646
        %v1901 = vunpack.c.l.b16 %v647
        %v1902 = vunpack.c.h.b16 %v647
        %v1903 = vunpack.c.l.b16 %v648
        %v1904 = vunpack.c.h.b16 %v648
        %v1905 = vunpack.c.l.b16 %v649
        %v1906 = vunpack.c.h.b16 %v649
        %v1907 = vunpack.c.l.b16 %v650
        %v1908 = vunpack.c.h.b16 %v650
        %v1909 = vunpack.c.l.b16 %v651
        %v1910 = vunpack.c.h.b16 %v651
        %v1911 = vunpack.c.l.b16 %v652
        %v1912 = vunpack.c.h.b16 %v652
        %v1913 = vunpack.c.l.b16 %v653
        %v1914 = vunpack.c.h.b16 %v653
        %v1915 = vunpack.c.l.b16 %v654
        %v1916 = vunpack.c.h.b16 %v654
        %v1917 = vunpack.c.l.b16 %v655
        %v1918 = vunpack.c.h.b16 %v655
        %v1919 = vunpack.c.l.b16 %v656
        %v1920 = vunpack.c.h.b16 %v656
        %v1921 = vunpack.c.l.b16 %v657
        %v1922 = vunpack.c.h.b16 %v657
        %v1923 = vunpack.c.l.b16 %v658
        %v1924 = vunpack.c.h.b16 %v658
        %v1925 = vunpack.c.l.b16 %v659
        %v1926 = vunpack.c.h.b16 %v659
        %v1927 = vunpack.c.l.b16 %v660
        %v1928 = vunpack.c.h.b16 %v660
        %v1929 = vunpack.c.l.b16 %v661
        %v1930 = vunpack.c.h.b16 %v661
        %v1931 = vunpack.c.l.b16 %v662
        %v1932 = vunpack.c.h.b16 %v662
        %v1933 = vunpack.c.l.b16 %v663
        %v1934 = vunpack.c.h.b16 %v663
        %v1935 = vunpack.c.l.b16 %v664
        %v1936 = vunpack.c.h.b16 %v664
        %v1937 = vunpack.c.l.b16 %v665
        %v1938 = vunpack.c.h.b16 %v665
        %v1939 = vunpack.c.l.b16 %v666
        %v1940 = vunpack.c.h.b16 %v666
        %v1941 = vunpack.c.l.b16 %v667
        %v1942 = vunpack.c.h.b16 %v667
        %v1943 = vunpack.c.l.b16 %v668
        %v1944 = vunpack.c.h.b16 %v668
        %v1945 = vunpack.c.l.b16 %v669
        %v1946 = vunpack.c.h.b16 %v669
        %v1947 = vunpack.c.l.b16 %v670
        %v1948 = vunpack.c.h.b16 %v670
        %v1949 = vunpack.c.l.b16 %v671
        %v1950 = vunpack.c.h.b16 %v671
        %v1951 = vunpack.c.l.b16 %v672
        %v1952 = vunpack.c.h.b16 %v672
        %v1953 = vunpack.c.l.b16 %v673
        %v1954 = vunpack.c.h.b16 %v673
        %v1955 = vunpack.c.l.b16 %v674
        %v1956 = vunpack.c.h.b16 %v674
        %v1957 = vunpack.c.l.b16 %v675
        %v1958 = vunpack.c.h.b16 %v675
        %v1959 = vunpack.c.l.b16 %v676
        %v1960 = vunpack.c.h.b16 %v676
        %v1961 = vunpack.c.l.b16 %v677
        %v1962 = vunpack.c.h.b16 %v677
        %v1963 = vunpack.c.l.b16 %v678
        %v1964 = vunpack.c.h.b16 %v678
        %v1965 = vunpack.c.l.b16 %v679
        %v1966 = vunpack.c.h.b16 %v679
        %v1967 = vunpack.c.l.b16 %v680
        %v1968 = vunpack.c.h.b16 %v680
        %v1969 = vunpack.c.l.b16 %v681
        %v1970 = vunpack.c.h.b16 %v681
        %v1971 = vunpack.c.l.b16 %v682
        %v1972 = vunpack.c.h.b16 %v682
        %v1973 = vunpack.c.l.b16 %v683
        %v1974 = vunpack.c.h.b16 %v683
        %v1975 = vunpack.c.l.b16 %v684
        %v1976 = vunpack.c.h.b16 %v684
        %v1977 = vunpack.c.l.b16 %v685
        %v1978 = vunpack.c.h.b16 %v685
        %v1979 = vunpack.c.l.b16 %v686
        %v1980 = vunpack.c.h.b16 %v686
        %v1981 = vunpack.c.l.b16 %v687
        %v1982 = vunpack.c.h.b16 %v687
        %v1983 = vunpack.c.l.b16 %v688
        %v1984 = vunpack.c.h.b16 %v688
        %v1985 = vunpack.c.l.b16 %v689
        %v1986 = vunpack.c.h.b16 %v689
        %v1987 = vunpack.c.l.b16 %v690
        %v1988 = vunpack.c.h.b16 %v690
        %v1989 = vunpack.c.l.b16 %v691
        %v1990 = vunpack.c.h.b16 %v691
        %v1991 = vunpack.c.l.b16 %v692
        %v1992 = vunpack.c.h.b16 %v692
        %v1993 = vunpack.c.l.b16 %v693
        %v1994 = vunpack.c.h.b16 %v693
        %v1995 = vunpack.c.l.b16 %v694
        %v1996 = vunpack.c.h.b16 %v694
        %v1997 = vunpack.c.l.b16 %v695
        %v1998 = vunpack.c.h.b16 %v695
        %v1999 = vunpack.c.l.b16 %v696
        %v2000 = vunpack.c.h.b16 %v696
        %v2001 = vunpack.c.l.b16 %v697
        %v2002 = vunpack.c.h.b16 %v697
        %v2003 = vunpack.c.l.b16 %v698
        %v2004 = vunpack.c.h.b16 %v698
        %v2005 = vunpack.c.l.b16 %v699
        %v2006 = vunpack.c.h.b16 %v699
        %v2007 = vunpack.c.l.b16 %v700
        %v2008 = vunpack.c.h.b16 %v700
        %v2009 = vunpack.c.l.b16 %v701
        %v2010 = vunpack.c.h.b16 %v701
        %v2011 = vunpack.c.l.b16 %v702
        %v2012 = vunpack.c.h.b16 %v702
        %v2013 = vunpack.c.l.b16 %v703
        %v2014 = vunpack.c.h.b16 %v703
        %v2015 = vunpack.c.l.b16 %v704
        %v2016 = vunpack.c.h.b16 %v704
        %v2017 = vunpack.c.l.b16 %v705
        %v2018 = vunpack.c.h.b16 %v705
        %v2019 = vunpack.c.l.b16 %v706
        %v2020 = vunpack.c.h.b16 %v706
        %v2021 = vunpack.c.l.b16 %v707
        %v2022 = vunpack.c.h.b16 %v707
        %v2023 = vunpack.c.l.b16 %v708
        %v2024 = vunpack.c.h.b16 %v708
        %v2025 = vunpack.c.l.b16 %v709
        %v2026 = vunpack.c.h.b16 %v709
        %v2027 = vunpack.c.l.b16 %v710
        %v2028 = vunpack.c.h.b16 %v710
        %v2029 = vunpack.c.l.b16 %v711
        %v2030 = vunpack.c.h.b16 %v711
        %v2031 = vunpack.c.l.b16 %v712
        %v2032 = vunpack.c.h.b16 %v712
        %v2033 = vunpack.c.l.b16 %v713
        %v2034 = vunpack.c.h.b16 %v713
        %v2035 = vunpack.c.l.b16 %v714
        %v2036 = vunpack.c.h.b16 %v714
        %v2037 = vunpack.c.l.b16 %v715
        %v2038 = vunpack.c.h.b16 %v715
        %v2039 = vunpack.c.l.b16 %v716
        %v2040 = vunpack.c.h.b16 %v716
        %v2041 = vunpack.c.l.b16 %v717
        %v2042 = vunpack.c.h.b16 %v717
        %v2043 = vunpack.c.l.b16 %v718
        %v2044 = vunpack.c.h.b16 %v718
        %v2045 = vunpack.c.l.b16 %v719
        %v2046 = vunpack.c.h.b16 %v719
        %v2047 = vunpack.c.l.b16 %v720
        %v2048 = vunpack.c.h.b16 %v720
        %v2049 = vunpack.c.l.b16 %v721
        %v2050 = vunpack.c.h.b16 %v721
        %v2051 = vunpack.c.l.b16 %v722
        %v2052 = vunpack.c.h.b16 %v722
        %v2053 = vunpack.c.l.b16 %v723
        %v2054 = vunpack.c.h.b16 %v723
        %v2055 = vunpack.c.l.b16 %v724
        %v2056 = vunpack.c.h.b16 %v724
        %v2057 = vunpack.c.l.b16 %v725
        %v2058 = vunpack.c.h.b16 %v725
        %v2059 = vunpack.c.l.b16 %v726
        %v2060 = vunpack.c.h.b16 %v726
        %v2061 = vunpack.c.l.b16 %v727
        %v2062 = vunpack.c.h.b16 %v727
        %v2063 = vunpack.c.l.b16 %v728
        %v2064 = vunpack.c.h.b16 %v728
        %v2065 = vunpack.c.l.b16 %v729
        %v2066 = vunpack.c.h.b16 %v729
        %v2067 = vunpack.c.l.b16 %v730
        %v2068 = vunpack.c.h.b16 %v730
        %v2069 = vunpack.c.l.b16 %v731
        %v2070 = vunpack.c.h.b16 %v731
        %v2071 = vunpack.c.l.b16 %v732
        %v2072 = vunpack.c.h.b16 %v732
        %v2073 = vunpack.c.l.b16 %v733
        %v2074 = vunpack.c.h.b16 %v733
        %v2075 = vunpack.c.l.b16 %v734
        %v2076 = vunpack.c.h.b16 %v734
        %v2077 = vunpack.c.l.b16 %v735
        %v2078 = vunpack.c.h.b16 %v735
        %v2079 = vunpack.c.l.b16 %v736
        %v2080 = vunpack.c.h.b16 %v736
        %v2081 = vunpack.c.l.b16 %v737
        %v2082 = vunpack.c.h.b16 %v737
        %v2083 = vunpack.c.l.b16 %v738
        %v2084 = vunpack.c.h.b16 %v738
        %v2085 = vunpack.c.l.b16 %v739
        %v2086 = vunpack.c.h.b16 %v739
        %v2087 = vunpack.c.l.b16 %v740
        %v2088 = vunpack.c.h.b16 %v740
        %v2089 = vunpack.c.l.b16 %v741
        %v2090 = vunpack.c.h.b16 %v741
        %v2091 = vunpack.c.l.b16 %v742
        %v2092 = vunpack.c.h.b16 %v742
        %v2093 = vunpack.c.l.b16 %v743
        %v2094 = vunpack.c.h.b16 %v743
        %v2095 = vunpack.c.l.b16 %v744
        %v2096 = vunpack.c.h.b16 %v744
        %v2097 = vunpack.c.l.b16 %v745
        %v2098 = vunpack.c.h.b16 %v745
        %v2099 = vunpack.c.l.b16 %v746
        %v2100 = vunpack.c.h.b16 %v746
        %v2101 = vunpack.c.l.b16 %v747
        %v2102 = vunpack.c.h.b16 %v747
        %v2103 = vunpack.c.l.b16 %v748
        %v2104 = vunpack.c.h.b16 %v748
        %v2105 = vunpack.c.l.b16 %v749
        %v2106 = vunpack.c.h.b16 %v749
        %v2107 = vunpack.c.l.b16 %v750
        %v2108 = vunpack.c.h.b16 %v750
        %v2109 = vunpack.c.l.b16 %v751
        %v2110 = vunpack.c.h.b16 %v751
        %v2111 = vunpack.c.l.b16 %v752
        %v2112 = vunpack.c.h.b16 %v752
        %v2113 = vunpack.c.l.b16 %v753
        %v2114 = vunpack.c.h.b16 %v753
        %v2115 = vunpack.c.l.b16 %v754
        %v2116 = vunpack.c.h.b16 %v754
        %v2117 = vunpack.c.l.b16 %v755
        %v2118 = vunpack.c.h.b16 %v755
        %v2119 = vunpack.c.l.b16 %v756
        %v2120 = vunpack.c.h.b16 %v756
        %v2121 = vunpack.c.l.b16 %v757
        %v2122 = vunpack.c.h.b16 %v757
        %v2123 = vunpack.c.l.b16 %v758
        %v2124 = vunpack.c.h.b16 %v758
        %v2125 = vunpack.c.l.b16 %v759
        %v2126 = vunpack.c.h.b16 %v759
        %v2127 = vunpack.c.l.b16 %v760
        %v2128 = vunpack.c.h.b16 %v760
        %v2129 = vunpack.c.l.b16 %v761
        %v2130 = vunpack.c.h.b16 %v761
        %v2131 = vunpack.c.l.b16 %v762
        %v2132 = vunpack.c.h.b16 %v762
        %v2133 = vunpack.c.l.b16 %v763
        %v2134 = vunpack.c.h.b16 %v763
        %v2135 = vunpack.c.l.b16 %v764
        %v2136 = vunpack.c.h.b16 %v764
        %v2137 = vunpack.c.l.b16 %v765
        %v2138 = vunpack.c.h.b16 %v765
        %v2139 = vunpack.c.l.b16 %v766
        %v2140 = vunpack.c.h.b16 %v766
        %v2141 = vunpack.c.l.b16 %v767
        %v2142 = vunpack.c.h.b16 %v767
        %v2143 = vunpack.c.l.b16 %v768
        %v2144 = vunpack.c.h.b16 %v768
        %v2145 = vunpack.c.l.b16 %v769
        %v2146 = vunpack.c.h.b16 %v769
        %v2147 = vunpack.c.l.b16 %v770
        %v2148 = vunpack.c.h.b16 %v770
        %v2149 = vunpack.c.l.b16 %v771
        %v2150 = vunpack.c.h.b16 %v771
        %v2151 = vunpack.c.l.b16 %v772
        %v2152 = vunpack.c.h.b16 %v772
        %v2153 = vunpack.c.l.b16 %v773
        %v2154 = vunpack.c.h.b16 %v773
        %v2155 = vunpack.c.l.b16 %v774
        %v2156 = vunpack.c.h.b16 %v774
        %v2157 = vunpack.c.l.b16 %v775
        %v2158 = vunpack.c.h.b16 %v775
        %v2159 = vunpack.c.l.b16 %v776
        %v2160 = vunpack.c.h.b16 %v776
        %v2161 = vunpack.c.l.b16 %v777
        %v2162 = vunpack.c.h.b16 %v777
        %v2163 = vunpack.c.l.b16 %v778
        %v2164 = vunpack.c.h.b16 %v778
        %v2165 = vunpack.c.l.b16 %v779
        %v2166 = vunpack.c.h.b16 %v779
        %v2167 = vunpack.c.l.b16 %v780
        %v2168 = vunpack.c.h.b16 %v780
        %v2169 = vunpack.c.l.b16 %v781
        %v2170 = vunpack.c.h.b16 %v781
        %v2171 = vunpack.c.l.b16 %v782
        %v2172 = vunpack.c.h.b16 %v782
        %v2173 = vunpack.c.l.b16 %v783
        %v2174 = vunpack.c.h.b16 %v783
        %v2175 = vunpack.c.l.b16 %v784
        %v2176 = vunpack.c.h.b16 %v784
        %v2177 = vunpack.c.l.b16 %v785
        %v2178 = vunpack.c.h.b16 %v785
        %v2179 = vunpack.c.l.b16 %v786
        %v2180 = vunpack.c.h.b16 %v786
        %v2181 = vunpack.c.l.b16 %v787
        %v2182 = vunpack.c.h.b16 %v787
        %v2183 = vunpack.c.l.b16 %v788
        %v2184 = vunpack.c.h.b16 %v788
        %v2185 = vunpack.c.l.b16 %v789
        %v2186 = vunpack.c.h.b16 %v789
        %v2187 = vunpack.c.l.b16 %v790
        %v2188 = vunpack.c.h.b16 %v790
        %v2189 = vunpack.c.l.b16 %v791
        %v2190 = vunpack.c.h.b16 %v791
        %v2191 = vunpack.c.l.b16 %v792
        %v2192 = vunpack.c.h.b16 %v792
        %v2193 = vunpack.c.l.b16 %v793
        %v2194 = vunpack.c.h.b16 %v793
        %v2195 = vunpack.c.l.b16 %v794
        %v2196 = vunpack.c.h.b16 %v794
        %v2197 = vunpack.c.l.b16 %v795
        %v2198 = vunpack.c.h.b16 %v795
        %v2199 = vunpack.c.l.b16 %v796
        %v2200 = vunpack.c.h.b16 %v796
        %v2201 = vunpack.c.l.b16 %v797
        %v2202 = vunpack.c.h.b16 %v797
        %v2203 = vunpack.c.l.b16 %v798
        %v2204 = vunpack.c.h.b16 %v798
        %v2205 = vunpack.c.l.b16 %v799
        %v2206 = vunpack.c.h.b16 %v799
        %v2207 = vunpack.c.l.b16 %v800
        %v2208 = vunpack.c.h.b16 %v800
        %v2209 = vunpack.c.l.b16 %v801
        %v2210 = vunpack.c.h.b16 %v801
        %v2211 = vunpack.c.l.b16 %v802
        %v2212 = vunpack.c.h.b16 %v802
        %v2213 = vunpack.c.l.b16 %v803
        %v2214 = vunpack.c.h.b16 %v803
        %v2215 = vunpack.c.l.b16 %v804
        %v2216 = vunpack.c.h.b16 %v804
        %v2217 = vunpack.c.l.b16 %v805
        %v2218 = vunpack.c.h.b16 %v805
        %v2219 = vunpack.c.l.b16 %v806
        %v2220 = vunpack.c.h.b16 %v806
        %v2221 = vunpack.c.l.b16 %v807
        %v2222 = vunpack.c.h.b16 %v807
        %v2223 = vunpack.c.l.b16 %v808
        %v2224 = vunpack.c.h.b16 %v808
        %v2225 = vunpack.c.l.b16 %v809
        %v2226 = vunpack.c.h.b16 %v809
        %v2227 = vunpack.c.l.b16 %v810
        %v2228 = vunpack.c.h.b16 %v810
        %v2229 = vunpack.c.l.b16 %v811
        %v2230 = vunpack.c.h.b16 %v811
        %v2231 = vunpack.c.l.b16 %v812
        %v2232 = vunpack.c.h.b16 %v812
        %v2233 = vunpack.c.l.b16 %v813
        %v2234 = vunpack.c.h.b16 %v813
        %v2235 = vunpack.c.l.b16 %v814
        %v2236 = vunpack.c.h.b16 %v814
        %v2237 = vunpack.c.l.b16 %v815
        %v2238 = vunpack.c.h.b16 %v815
        %v2239 = vunpack.c.l.b16 %v816
        %v2240 = vunpack.c.h.b16 %v816
        %v2241 = vunpack.c.l.b16 %v817
        %v2242 = vunpack.c.h.b16 %v817
        %v2243 = vunpack.c.l.b16 %v818
        %v2244 = vunpack.c.h.b16 %v818
        %v2245 = vunpack.c.l.b16 %v819
        %v2246 = vunpack.c.h.b16 %v819
        %v2247 = vunpack.c.l.b16 %v820
        %v2248 = vunpack.c.h.b16 %v820
        %v2249 = vunpack.c.l.b16 %v821
        %v2250 = vunpack.c.h.b16 %v821
        %v2251 = vunpack.c.l.b16 %v822
        %v2252 = vunpack.c.h.b16 %v822
        %v2253 = vunpack.c.l.b16 %v823
        %v2254 = vunpack.c.h.b16 %v823
        %v2255 = vunpack.c.l.b16 %v824
        %v2256 = vunpack.c.h.b16 %v824
        %v2257 = vunpack.c.l.b16 %v825
        %v2258 = vunpack.c.h.b16 %v825
        %v2259 = vunpack.c.l.b16 %v826
        %v2260 = vunpack.c.h.b16 %v826
        %v2261 = vunpack.c.l.b16 %v827
        %v2262 = vunpack.c.h.b16 %v827
        %v2263 = vunpack.c.l.b16 %v828
        %v2264 = vunpack.c.h.b16 %v828
        %v2265 = vunpack.c.l.b16 %v829
        %v2266 = vunpack.c.h.b16 %v829
        %v2267 = vunpack.c.l.b16 %v830
        %v2268 = vunpack.c.h.b16 %v830
        %v2269 = vunpack.c.l.b16 %v831
        %v2270 = vunpack.c.h.b16 %v831
        %v2271 = vunpack.c.l.b16 %v832
        %v2272 = vunpack.c.h.b16 %v832
        %v2273 = vunpack.c.l.b16 %v833
        %v2274 = vunpack.c.h.b16 %v833
        %v2275 = vunpack.c.l.b16 %v834
        %v2276 = vunpack.c.h.b16 %v834
        %v2277 = vunpack.c.l.b16 %v835
        %v2278 = vunpack.c.h.b16 %v835
        %v2279 = vunpack.c.l.b16 %v836
        %v2280 = vunpack.c.h.b16 %v836
        %v2281 = vunpack.c.l.b16 %v837
        %v2282 = vunpack.c.h.b16 %v837
        %v2283 = vunpack.c.l.b16 %v838
        %v2284 = vunpack.c.h.b16 %v838
        %v2285 = vunpack.c.l.b16 %v839
        %v2286 = vunpack.c.h.b16 %v839
        %v2287 = vunpack.c.l.b16 %v840
        %v2288 = vunpack.c.h.b16 %v840
        %v2289 = vunpack.c.l.b16 %v841
        %v2290 = vunpack.c.h.b16 %v841
        %v2291 = vunpack.c.l.b16 %v842
        %v2292 = vunpack.c.h.b16 %v842
        %v2293 = vunpack.c.l.b16 %v843
        %v2294 = vunpack.c.h.b16 %v843
        %v2295 = vunpack.c.l.b16 %v844
        %v2296 = vunpack.c.h.b16 %v844
        %v2297 = vunpack.c.l.b16 %v845
        %v2298 = vunpack.c.h.b16 %v845
        %v2299 = vunpack.c.l.b16 %v846
        %v2300 = vunpack.c.h.b16 %v846
        %v2301 = vunpack.c.l.b16 %v847
        %v2302 = vunpack.c.h.b16 %v847
        %v2303 = vunpack.c.l.b16 %v848
        %v2304 = vunpack.c.h.b16 %v848
        %v2305 = vunpack.c.l.b16 %v849
        %v2306 = vunpack.c.h.b16 %v849
        %v2307 = vunpack.c.l.b16 %v850
        %v2308 = vunpack.c.h.b16 %v850
        %v2309 = vunpack.c.l.b16 %v851
        %v2310 = vunpack.c.h.b16 %v851
        %v2311 = vunpack.c.l.b16 %v852
        %v2312 = vunpack.c.h.b16 %v852
        %v2313 = vunpack.c.l.b16 %v853
        %v2314 = vunpack.c.h.b16 %v853
        %v2315 = vunpack.c.l.b16 %v854
        %v2316 = vunpack.c.h.b16 %v854
        %v2317 = vunpack.c.l.b16 %v855
        %v2318 = vunpack.c.h.b16 %v855
        %v2319 = vunpack.c.l.b16 %v856
        %v2320 = vunpack.c.h.b16 %v856
        %v2321 = vunpack.c.l.b16 %v857
        %v2322 = vunpack.c.h.b16 %v857
        %v2323 = vunpack.c.l.b16 %v858
        %v2324 = vunpack.c.h.b16 %v858
        %v2325 = vunpack.c.l.b16 %v859
        %v2326 = vunpack.c.h.b16 %v859
        %v2327 = vunpack.c.l.b16 %v860
        %v2328 = vunpack.c.h.b16 %v860
        %v2329 = vunpack.c.l.b16 %v861
        %v2330 = vunpack.c.h.b16 %v861
        %v2331 = vunpack.c.l.b16 %v862
        %v2332 = vunpack.c.h.b16 %v862
        %v2333 = vunpack.c.l.b16 %v863
        %v2334 = vunpack.c.h.b16 %v863
        %v2335 = vunpack.c.l.b16 %v864
        %v2336 = vunpack.c.h.b16 %v864
        %v2337 = vunpack.c.l.b16 %v865
        %v2338 = vunpack.c.h.b16 %v865
        %v2339 = vunpack.c.l.b16 %v866
        %v2340 = vunpack.c.h.b16 %v866
        %v2341 = vunpack.c.l.b16 %v867
        %v2342 = vunpack.c.h.b16 %v867
        %v2343 = vunpack.c.l.b16 %v868
        %v2344 = vunpack.c.h.b16 %v868
        %v2345 = vunpack.c.l.b16 %v869
        %v2346 = vunpack.c.h.b16 %v869
        %v2347 = vunpack.c.l.b16 %v870
        %v2348 = vunpack.c.h.b16 %v870
        %v2349 = vunpack.c.l.b16 %v871
        %v2350 = vunpack.c.h.b16 %v871
        %v2351 = vunpack.c.l.b16 %v872
        %v2352 = vunpack.c.h.b16 %v872
        %v2353 = vunpack.c.l.b16 %v873
        %v2354 = vunpack.c.h.b16 %v873
        %v2355 = vunpack.c.l.b16 %v874
        %v2356 = vunpack.c.h.b16 %v874
        %v2357 = vunpack.c.l.b16 %v875
        %v2358 = vunpack.c.h.b16 %v875
        %v2359 = vunpack.c.l.b16 %v876
        %v2360 = vunpack.c.h.b16 %v876
        %v2361 = vunpack.c.l.b16 %v877
        %v2362 = vunpack.c.h.b16 %v877
        %v2363 = vunpack.c.l.b16 %v878
        %v2364 = vunpack.c.h.b16 %v878
        %v2365 = vunpack.c.l.b16 %v879
        %v2366 = vunpack.c.h.b16 %v879
        %v2367 = vunpack.c.l.b16 %v880
        %v2368 = vunpack.c.h.b16 %v880
        %v2369 = vunpack.c.l.b16 %v881
        %v2370 = vunpack.c.h.b16 %v881
        %v2371 = vunpack.c.l.b16 %v882
        %v2372 = vunpack.c.h.b16 %v882
        %v2373 = vunpack.c.l.b16 %v883
        %v2374 = vunpack.c.h.b16 %v883
        %v2375 = vunpack.c.l.b16 %v884
        %v2376 = vunpack.c.h.b16 %v884
        %v2377 = vunpack.c.l.b16 %v885
        %v2378 = vunpack.c.h.b16 %v885
        %v2379 = vunpack.c.l.b16 %v886
        %v2380 = vunpack.c.h.b16 %v886
        %v2381 = vunpack.c.l.b16 %v887
        %v2382 = vunpack.c.h.b16 %v887
        %v2383 = vunpack.c.l.b16 %v888
        %v2384 = vunpack.c.h.b16 %v888
        %v2385 = vunpack.c.l.b16 %v889
        %v2386 = vunpack.c.h.b16 %v889
        %v2387 = vunpack.c.l.b16 %v890
        %v2388 = vunpack.c.h.b16 %v890
        %v2389 = vunpack.c.l.b16 %v891
        %v2390 = vunpack.c.h.b16 %v891
        %v2391 = vunpack.c.l.b16 %v892
        %v2392 = vunpack.c.h.b16 %v892
        %v2393 = vunpack.c.l.b16 %v893
        %v2394 = vunpack.c.h.b16 %v893
        %v2395 = vunpack.c.l.b16 %v894
        %v2396 = vunpack.c.h.b16 %v894
        %v2397 = vunpack.c.l.b16 %v895
        %v2398 = vunpack.c.h.b16 %v895
        %v2399 = vunpack.c.l.b16 %v896
        %v2400 = vunpack.c.h.b16 %v896
        %v2401 = vunpack.c.l.b16 %v897
        %v2402 = vunpack.c.h.b16 %v897
        %v2403 = vunpack.c.l.b16 %v898
        %v2404 = vunpack.c.h.b16 %v898
        %v2405 = vunpack.c.l.b16 %v899
        %v2406 = vunpack.c.h.b16 %v899
        %v2407 = vunpack.c.l.b16 %v900
        %v2408 = vunpack.c.h.b16 %v900
        %v2409 = vunpack.c.l.b16 %v901
        %v2410 = vunpack.c.h.b16 %v901
        %v2411 = vunpack.c.l.b16 %v902
        %v2412 = vunpack.c.h.b16 %v902
        %v2413 = vunpack.c.l.b16 %v903
        %v2414 = vunpack.c.h.b16 %v903
        %v2415 = vunpack.c.l.b16 %v904
        %v2416 = vunpack.c.h.b16 %v904
        %v2417 = vunpack.c.l.b16 %v905
        %v2418 = vunpack.c.h.b16 %v905
        %v2419 = vunpack.c.l.b16 %v906
        %v2420 = vunpack.c.h.b16 %v906
        %v2421 = vunpack.c.l.b16 %v907
        %v2422 = vunpack.c.h.b16 %v907
        %v2423 = vunpack.c.l.b16 %v908
        %v2424 = vunpack.c.h.b16 %v908
        %v2425 = vunpack.c.l.b16 %v909
        %v2426 = vunpack.c.h.b16 %v909
        %v2427 = vunpack.c.l.b16 %v910
        %v2428 = vunpack.c.h.b16 %v910
        %v2429 = vunpack.c.l.b16 %v911
        %v2430 = vunpack.c.h.b16 %v911
        %v2431 = vunpack.c.l.b16 %v912
        %v2432 = vunpack.c.h.b16 %v912
        %v2433 = vunpack.c.l.b16 %v913
        %v2434 = vunpack.c.h.b16 %v913
        %v2435 = vunpack.c.l.b16 %v914
        %v2436 = vunpack.c.h.b16 %v914
        %v2437 = vunpack.c.l.b16 %v915
        %v2438 = vunpack.c.h.b16 %v915
        %v2439 = vunpack.c.l.b16 %v916
        %v2440 = vunpack.c.h.b16 %v916
        %v2441 = vunpack.c.l.b16 %v917
        %v2442 = vunpack.c.h.b16 %v917
        %v2443 = vunpack.c.l.b16 %v918
        %v2444 = vunpack.c.h.b16 %v918
        %v2445 = vunpack.c.l.b16 %v919
        %v2446 = vunpack.c.h.b16 %v919
        %v2447 = vunpack.c.l.b16 %v920
        %v2448 = vunpack.c.h.b16 %v920
        %v2449 = vunpack.c.l.b16 %v921
        %v2450 = vunpack.c.h.b16 %v921
        %v2451 = vunpack.c.l.b16 %v922
        %v2452 = vunpack.c.h.b16 %v922
        %v2453 = vunpack.c.l.b16 %v923
        %v2454 = vunpack.c.h.b16 %v923
        %v2455 = vunpack.c.l.b16 %v924
        %v2456 = vunpack.c.h.b16 %v924
        %v2457 = vunpack.c.l.b16 %v925
        %v2458 = vunpack.c.h.b16 %v925
        %v2459 = vunpack.c.l.b16 %v926
        %v2460 = vunpack.c.h.b16 %v926
        %v2461 = vunpack.c.l.b16 %v927
        %v2462 = vunpack.c.h.b16 %v927
        %v2463 = vunpack.c.l.b16 %v928
        %v2464 = vunpack.c.h.b16 %v928
        %v2465 = vpack.c.b16 %v1445, %v1441
        %v2466 = vpack.c.b16 %v1446, %v1442
        %v2467 = vpack.c.b16 %v1447, %v1443
        %v2468 = vpack.c.b16 %v1448, %v1444
        %v2469 = vpack.c.b16 %v1453, %v1449
        %v2470 = vpack.c.b16 %v1454, %v1450
        %v2471 = vpack.c.b16 %v1455, %v1451
        %v2472 = vpack.c.b16 %v1456, %v1452
        %v2473 = vpack.c.b16 %v1461, %v1457
        %v2474 = vpack.c.b16 %v1462, %v1458
        %v2475 = vpack.c.b16 %v1463, %v1459
        %v2476 = vpack.c.b16 %v1464, %v1460
        %v2477 = vpack.c.b16 %v1469, %v1465
        %v2478 = vpack.c.b16 %v1470, %v1466
        %v2479 = vpack.c.b16 %v1471, %v1467
        %v2480 = vpack.c.b16 %v1472, %v1468
        %v2481 = vpack.c.b16 %v1477, %v1473
        %v2482 = vpack.c.b16 %v1478, %v1474
        %v2483 = vpack.c.b16 %v1479, %v1475
        %v2484 = vpack.c.b16 %v1480, %v1476
        %v2485 = vpack.c.b16 %v1485, %v1481
        %v2486 = vpack.c.b16 %v1486, %v1482
        %v2487 = vpack.c.b16 %v1487, %v1483
        %v2488 = vpack.c.b16 %v1488, %v1484
        %v2489 = vpack.c.b16 %v1493, %v1489
        %v2490 = vpack.c.b16 %v1494, %v1490
        %v2491 = vpack.c.b16 %v1495, %v1491
        %v2492 = vpack.c.b16 %v1496, %v1492
        %v2493 = vpack.c.b16 %v1501, %v1497
        %v2494 = vpack.c.b16 %v1502, %v1498
        %v2495 = vpack.c.b16 %v1503, %v1499
        %v2496 = vpack.c.b16 %v1504, %v1500
        %v2497 = vpack.c.b16 %v1509, %v1505
        %v2498 = vpack.c.b16 %v1510, %v1506
        %v2499 = vpack.c.b16 %v1511, %v1507
        %v2500 = vpack.c.b16 %v1512, %v1508
        %v2501 = vpack.c.b16 %v1517, %v1513
        %v2502 = vpack.c.b16 %v1518, %v1514
        %v2503 = vpack.c.b16 %v1519, %v1515
        %v2504 = vpack.c.b16 %v1520, %v1516
        %v2505 = vpack.c.b16 %v1525, %v1521
        %v2506 = vpack.c.b16 %v1526, %v1522
        %v2507 = vpack.c.b16 %v1527, %v1523
        %v2508 = vpack.c.b16 %v1528, %v1524
        %v2509 = vpack.c.b16 %v1533, %v1529
        %v2510 = vpack.c.b16 %v1534, %v1530
        %v2511 = vpack.c.b16 %v1535, %v1531
        %v2512 = vpack.c.b16 %v1536, %v1532
        %v2513 = vpack.c.b16 %v1541, %v1537
        %v2514 = vpack.c.b16 %v1542, %v1538
        %v2515 = vpack.c.b16 %v1543, %v1539
        %v2516 = vpack.c.b16 %v1544, %v1540
        %v2517 = vpack.c.b16 %v1549, %v1545
        %v2518 = vpack.c.b16 %v1550, %v1546
        %v2519 = vpack.c.b16 %v1551, %v1547
        %v2520 = vpack.c.b16 %v1552, %v1548
        %v2521 = vpack.c.b16 %v1557, %v1553
        %v2522 = vpack.c.b16 %v1558, %v1554
        %v2523 = vpack.c.b16 %v1559, %v1555
        %v2524 = vpack.c.b16 %v1560, %v1556
        %v2525 = vpack.c.b16 %v1565, %v1561
        %v2526 = vpack.c.b16 %v1566, %v1562
        %v2527 = vpack.c.b16 %v1567, %v1563
        %v2528 = vpack.c.b16 %v1568, %v1564
        %v2529 = vpack.c.b16 %v1573, %v1569
        %v2530 = vpack.c.b16 %v1574, %v1570
        %v2531 = vpack.c.b16 %v1575, %v1571
        %v2532 = vpack.c.b16 %v1576, %v1572
        %v2533 = vpack.c.b16 %v1581, %v1577
        %v2534 = vpack.c.b16 %v1582, %v1578
        %v2535 = vpack.c.b16 %v1583, %v1579
        %v2536 = vpack.c.b16 %v1584, %v1580
        %v2537 = vpack.c.b16 %v1589, %v1585
        %v2538 = vpack.c.b16 %v1590, %v1586
        %v2539 = vpack.c.b16 %v1591, %v1587
        %v2540 = vpack.c.b16 %v1592, %v1588
        %v2541 = vpack.c.b16 %v1597, %v1593
        %v2542 = vpack.c.b16 %v1598, %v1594
        %v2543 = vpack.c.b16 %v1599, %v1595
        %v2544 = vpack.c.b16 %v1600, %v1596
        %v2545 = vpack.c.b16 %v1605, %v1601
        %v2546 = vpack.c.b16 %v1606, %v1602
        %v2547 = vpack.c.b16 %v1607, %v1603
        %v2548 = vpack.c.b16 %v1608, %v1604
        %v2549 = vpack.c.b16 %v1613, %v1609
        %v2550 = vpack.c.b16 %v1614, %v1610
        %v2551 = vpack.c.b16 %v1615, %v1611
        %v2552 = vpack.c.b16 %v1616, %v1612
        %v2553 = vpack.c.b16 %v1621, %v1617
        %v2554 = vpack.c.b16 %v1622, %v1618
        %v2555 = vpack.c.b16 %v1623, %v1619
        %v2556 = vpack.c.b16 %v1624, %v1620
        %v2557 = vpack.c.b16 %v1629, %v1625
        %v2558 = vpack.c.b16 %v1630, %v1626
        %v2559 = vpack.c.b16 %v1631, %v1627
        %v2560 = vpack.c.b16 %v1632, %v1628
        %v2561 = vpack.c.b16 %v1637, %v1633
        %v2562 = vpack.c.b16 %v1638, %v1634
        %v2563 = vpack.c.b16 %v1639, %v1635
        %v2564 = vpack.c.b16 %v1640, %v1636
        %v2565 = vpack.c.b16 %v1645, %v1641
        %v2566 = vpack.c.b16 %v1646, %v1642
        %v2567 = vpack.c.b16 %v1647, %v1643
        %v2568 = vpack.c.b16 %v1648, %v1644
        %v2569 = vpack.c.b16 %v1653, %v1649
        %v2570 = vpack.c.b16 %v1654, %v1650
        %v2571 = vpack.c.b16 %v1655, %v1651
        %v2572 = vpack.c.b16 %v1656, %v1652
        %v2573 = vpack.c.b16 %v1661, %v1657
        %v2574 = vpack.c.b16 %v1662, %v1658
        %v2575 = vpack.c.b16 %v1663, %v1659
        %v2576 = vpack.c.b16 %v1664, %v1660
        %v2577 = vpack.c.b16 %v1669, %v1665
        %v2578 = vpack.c.b16 %v1670, %v1666
        %v2579 = vpack.c.b16 %v1671, %v1667
        %v2580 = vpack.c.b16 %v1672, %v1668
        %v2581 = vpack.c.b16 %v1677, %v1673
        %v2582 = vpack.c.b16 %v1678, %v1674
        %v2583 = vpack.c.b16 %v1679, %v1675
        %v2584 = vpack.c.b16 %v1680, %v1676
        %v2585 = vpack.c.b16 %v1685, %v1681
        %v2586 = vpack.c.b16 %v1686, %v1682
        %v2587 = vpack.c.b16 %v1687, %v1683
        %v2588 = vpack.c.b16 %v1688, %v1684
        %v2589 = vpack.c.b16 %v1693, %v1689
        %v2590 = vpack.c.b16 %v1694, %v1690
        %v2591 = vpack.c.b16 %v1695, %v1691
        %v2592 = vpack.c.b16 %v1696, %v1692
        %v2593 = vpack.c.b16 %v1701, %v1697
        %v2594 = vpack.c.b16 %v1702, %v1698
        %v2595 = vpack.c.b16 %v1703, %v1699
        %v2596 = vpack.c.b16 %v1704, %v1700
        %v2597 = vpack.c.b16 %v1709, %v1705
        %v2598 = vpack.c.b16 %v1710, %v1706
        %v2599 = vpack.c.b16 %v1711, %v1707
        %v2600 = vpack.c.b16 %v1712, %v1708
        %v2601 = vpack.c.b16 %v1717, %v1713
        %v2602 = vpack.c.b16 %v1718, %v1714
        %v2603 = vpack.c.b16 %v1719, %v1715
        %v2604 = vpack.c.b16 %v1720, %v1716
        %v2605 = vpack.c.b16 %v1725, %v1721
        %v2606 = vpack.c.b16 %v1726, %v1722
        %v2607 = vpack.c.b16 %v1727, %v1723
        %v2608 = vpack.c.b16 %v1728, %v1724
        %v2609 = vpack.c.b16 %v1733, %v1729
        %v2610 = vpack.c.b16 %v1734, %v1730
        %v2611 = vpack.c.b16 %v1735, %v1731
        %v2612 = vpack.c.b16 %v1736, %v1732
        %v2613 = vpack.c.b16 %v1741, %v1737
        %v2614 = vpack.c.b16 %v1742, %v1738
        %v2615 = vpack.c.b16 %v1743, %v1739
        %v2616 = vpack.c.b16 %v1744, %v1740
        %v2617 = vpack.c.b16 %v1749, %v1745
        %v2618 = vpack.c.b16 %v1750, %v1746
        %v2619 = vpack.c.b16 %v1751, %v1747
        %v2620 = vpack.c.b16 %v1752, %v1748
        %v2621 = vpack.c.b16 %v1757, %v1753
        %v2622 = vpack.c.b16 %v1758, %v1754
        %v2623 = vpack.c.b16 %v1759, %v1755
        %v2624 = vpack.c.b16 %v1760, %v1756
        %v2625 = vpack.c.b16 %v1765, %v1761
        %v2626 = vpack.c.b16 %v1766, %v1762
        %v2627 = vpack.c.b16 %v1767, %v1763
        %v2628 = vpack.c.b16 %v1768, %v1764
        %v2629 = vpack.c.b16 %v1773, %v1769
        %v2630 = vpack.c.b16 %v1774, %v1770
        %v2631 = vpack.c.b16 %v1775, %v1771
        %v2632 = vpack.c.b16 %v1776, %v1772
        %v2633 = vpack.c.b16 %v1781, %v1777
        %v2634 = vpack.c.b16 %v1782, %v1778
        %v2635 = vpack.c.b16 %v1783, %v1779
        %v2636 = vpack.c.b16 %v1784, %v1780
        %v2637 = vpack.c.b16 %v1789, %v1785
        %v2638 = vpack.c.b16 %v1790, %v1786
        %v2639 = vpack.c.b16 %v1791, %v1787
        %v2640 = vpack.c.b16 %v1792, %v1788
        %v2641 = vpack.c.b16 %v1797, %v1793
        %v2642 = vpack.c.b16 %v1798, %v1794
        %v2643 = vpack.c.b16 %v1799, %v1795
        %v2644 = vpack.c.b16 %v1800, %v1796
        %v2645 = vpack.c.b16 %v1805, %v1801
        %v2646 = vpack.c.b16 %v1806, %v1802
        %v2647 = vpack.c.b16 %v1807, %v1803
        %v2648 = vpack.c.b16 %v1808, %v1804
        %v2649 = vpack.c.b16 %v1813, %v1809
        %v2650 = vpack.c.b16 %v1814, %v1810
        %v2651 = vpack.c.b16 %v1815, %v1811
        %v2652 = vpack.c.b16 %v1816, %v1812
        %v2653 = vpack.c.b16 %v1821, %v1817
        %v2654 = vpack.c.b16 %v1822, %v1818
        %v2655 = vpack.c.b16 %v1823, %v1819
        %v2656 = vpack.c.b16 %v1824, %v1820
        %v2657 = vpack.c.b16 %v1829, %v1825
        %v2658 = vpack.c.b16 %v1830, %v1826
        %v2659 = vpack.c.b16 %v1831, %v1827
        %v2660 = vpack.c.b16 %v1832, %v1828
        %v2661 = vpack.c.b16 %v1837, %v1833
        %v2662 = vpack.c.b16 %v1838, %v1834
        %v2663 = vpack.c.b16 %v1839, %v1835
        %v2664 = vpack.c.b16 %v1840, %v1836
        %v2665 = vpack.c.b16 %v1845, %v1841
        %v2666 = vpack.c.b16 %v1846, %v1842
        %v2667 = vpack.c.b16 %v1847, %v1843
        %v2668 = vpack.c.b16 %v1848, %v1844
        %v2669 = vpack.c.b16 %v1853, %v1849
        %v2670 = vpack.c.b16 %v1854, %v1850
        %v2671 = vpack.c.b16 %v1855, %v1851
        %v2672 = vpack.c.b16 %v1856, %v1852
        %v2673 = vpack.c.b16 %v1861, %v1857
        %v2674 = vpack.c.b16 %v1862, %v1858
        %v2675 = vpack.c.b16 %v1863, %v1859
        %v2676 = vpack.c.b16 %v1864, %v1860
        %v2677 = vpack.c.b16 %v1869, %v1865
        %v2678 = vpack.c.b16 %v1870, %v1866
        %v2679 = vpack.c.b16 %v1871, %v1867
        %v2680 = vpack.c.b16 %v1872, %v1868
        %v2681 = vpack.c.b16 %v1877, %v1873
        %v2682 = vpack.c.b16 %v1878, %v1874
        %v2683 = vpack.c.b16 %v1879, %v1875
        %v2684 = vpack.c.b16 %v1880, %v1876
        %v2685 = vpack.c.b16 %v1885, %v1881
        %v2686 = vpack.c.b16 %v1886, %v1882
        %v2687 = vpack.c.b16 %v1887, %v1883
        %v2688 = vpack.c.b16 %v1888, %v1884
        %v2689 = vpack.c.b16 %v1893, %v1889
        %v2690 = vpack.c.b16 %v1894, %v1890
        %v2691 = vpack.c.b16 %v1895, %v1891
        %v2692 = vpack.c.b16 %v1896, %v1892
        %v2693 = vpack.c.b16 %v1901, %v1897
        %v2694 = vpack.c.b16 %v1902, %v1898
        %v2695 = vpack.c.b16 %v1903, %v1899
        %v2696 = vpack.c.b16 %v1904, %v1900
        %v2697 = vpack.c.b16 %v1909, %v1905
        %v2698 = vpack.c.b16 %v1910, %v1906
        %v2699 = vpack.c.b16 %v1911, %v1907
        %v2700 = vpack.c.b16 %v1912, %v1908
        %v2701 = vpack.c.b16 %v1917, %v1913
        %v2702 = vpack.c.b16 %v1918, %v1914
        %v2703 = vpack.c.b16 %v1919, %v1915
        %v2704 = vpack.c.b16 %v1920, %v1916
        %v2705 = vpack.c.b16 %v1925, %v1921
        %v2706 = vpack.c.b16 %v1926, %v1922
        %v2707 = vpack.c.b16 %v1927, %v1923
        %v2708 = vpack.c.b16 %v1928, %v1924
        %v2709 = vpack.c.b16 %v1933, %v1929
        %v2710 = vpack.c.b16 %v1934, %v1930
        %v2711 = vpack.c.b16 %v1935, %v1931
        %v2712 = vpack.c.b16 %v1936, %v1932
        %v2713 = vpack.c.b16 %v1941, %v1937
        %v2714 = vpack.c.b16 %v1942, %v1938
        %v2715 = vpack.c.b16 %v1943, %v1939
        %v2716 = vpack.c.b16 %v1944, %v1940
        %v2717 = vpack.c.b16 %v1949, %v1945
        %v2718 = vpack.c.b16 %v1950, %v1946
        %v2719 = vpack.c.b16 %v1951, %v1947
        %v2720 = vpack.c.b16 %v1952, %v1948
        %v2721 = vpack.c.b16 %v1957, %v1953
        %v2722 = vpack.c.b16 %v1958, %v1954
        %v2723 = vpack.c.b16 %v1959, %v1955
        %v2724 = vpack.c.b16 %v1960, %v1956
        %v2725 = vpack.c.b16 %v1965, %v1961
        %v2726 = vpack.c.b16 %v1966, %v1962
        %v2727 = vpack.c.b16 %v1967, %v1963
        %v2728 = vpack.c.b16 %v1968, %v1964
        %v2729 = vpack.c.b16 %v1973, %v1969
        %v2730 = vpack.c.b16 %v1974, %v1970
        %v2731 = vpack.c.b16 %v1975, %v1971
        %v2732 = vpack.c.b16 %v1976, %v1972
        %v2733 = vpack.c.b16 %v1981, %v1977
        %v2734 = vpack.c.b16 %v1982, %v1978
        %v2735 = vpack.c.b16 %v1983, %v1979
        %v2736 = vpack.c.b16 %v1984, %v1980
        %v2737 = vpack.c.b16 %v1989, %v1985
        %v2738 = vpack.c.b16 %v1990, %v1986
        %v2739 = vpack.c.b16 %v1991, %v1987
        %v2740 = vpack.c.b16 %v1992, %v1988
        %v2741 = vpack.c.b16 %v1997, %v1993
        %v2742 = vpack.c.b16 %v1998, %v1994
        %v2743 = vpack.c.b16 %v1999, %v1995
        %v2744 = vpack.c.b16 %v2000, %v1996
        %v2745 = vpack.c.b16 %v2005, %v2001
        %v2746 = vpack.c.b16 %v2006, %v2002
        %v2747 = vpack.c.b16 %v2007, %v2003
        %v2748 = vpack.c.b16 %v2008, %v2004
        %v2749 = vpack.c.b16 %v2013, %v2009
        %v2750 = vpack.c.b16 %v2014, %v2010
        %v2751 = vpack.c.b16 %v2015, %v2011
        %v2752 = vpack.c.b16 %v2016, %v2012
        %v2753 = vpack.c.b16 %v2021, %v2017
        %v2754 = vpack.c.b16 %v2022, %v2018
        %v2755 = vpack.c.b16 %v2023, %v2019
        %v2756 = vpack.c.b16 %v2024, %v2020
        %v2757 = vpack.c.b16 %v2029, %v2025
        %v2758 = vpack.c.b16 %v2030, %v2026
        %v2759 = vpack.c.b16 %v2031, %v2027
        %v2760 = vpack.c.b16 %v2032, %v2028
        %v2761 = vpack.c.b16 %v2037, %v2033
        %v2762 = vpack.c.b16 %v2038, %v2034
        %v2763 = vpack.c.b16 %v2039, %v2035
        %v2764 = vpack.c.b16 %v2040, %v2036
        %v2765 = vpack.c.b16 %v2045, %v2041
        %v2766 = vpack.c.b16 %v2046, %v2042
        %v2767 = vpack.c.b16 %v2047, %v2043
        %v2768 = vpack.c.b16 %v2048, %v2044
        %v2769 = vpack.c.b16 %v2053, %v2049
        %v2770 = vpack.c.b16 %v2054, %v2050
        %v2771 = vpack.c.b16 %v2055, %v2051
        %v2772 = vpack.c.b16 %v2056, %v2052
        %v2773 = vpack.c.b16 %v2061, %v2057
        %v2774 = vpack.c.b16 %v2062, %v2058
        %v2775 = vpack.c.b16 %v2063, %v2059
        %v2776 = vpack.c.b16 %v2064, %v2060
        %v2777 = vpack.c.b16 %v2069, %v2065
        %v2778 = vpack.c.b16 %v2070, %v2066
        %v2779 = vpack.c.b16 %v2071, %v2067
        %v2780 = vpack.c.b16 %v2072, %v2068
        %v2781 = vpack.c.b16 %v2077, %v2073
        %v2782 = vpack.c.b16 %v2078, %v2074
        %v2783 = vpack.c.b16 %v2079, %v2075
        %v2784 = vpack.c.b16 %v2080, %v2076
        %v2785 = vpack.c.b16 %v2085, %v2081
        %v2786 = vpack.c.b16 %v2086, %v2082
        %v2787 = vpack.c.b16 %v2087, %v2083
        %v2788 = vpack.c.b16 %v2088, %v2084
        %v2789 = vpack.c.b16 %v2093, %v2089
        %v2790 = vpack.c.b16 %v2094, %v2090
        %v2791 = vpack.c.b16 %v2095, %v2091
        %v2792 = vpack.c.b16 %v2096, %v2092
        %v2793 = vpack.c.b16 %v2101, %v2097
        %v2794 = vpack.c.b16 %v2102, %v2098
        %v2795 = vpack.c.b16 %v2103, %v2099
        %v2796 = vpack.c.b16 %v2104, %v2100
        %v2797 = vpack.c.b16 %v2109, %v2105
        %v2798 = vpack.c.b16 %v2110, %v2106
        %v2799 = vpack.c.b16 %v2111, %v2107
        %v2800 = vpack.c.b16 %v2112, %v2108
        %v2801 = vpack.c.b16 %v2117, %v2113
        %v2802 = vpack.c.b16 %v2118, %v2114
        %v2803 = vpack.c.b16 %v2119, %v2115
        %v2804 = vpack.c.b16 %v2120, %v2116
        %v2805 = vpack.c.b16 %v2125, %v2121
        %v2806 = vpack.c.b16 %v2126, %v2122
        %v2807 = vpack.c.b16 %v2127, %v2123
        %v2808 = vpack.c.b16 %v2128, %v2124
        %v2809 = vpack.c.b16 %v2133, %v2129
        %v2810 = vpack.c.b16 %v2134, %v2130
        %v2811 = vpack.c.b16 %v2135, %v2131
        %v2812 = vpack.c.b16 %v2136, %v2132
        %v2813 = vpack.c.b16 %v2141, %v2137
        %v2814 = vpack.c.b16 %v2142, %v2138
        %v2815 = vpack.c.b16 %v2143, %v2139
        %v2816 = vpack.c.b16 %v2144, %v2140
        %v2817 = vpack.c.b16 %v2149, %v2145
        %v2818 = vpack.c.b16 %v2150, %v2146
        %v2819 = vpack.c.b16 %v2151, %v2147
        %v2820 = vpack.c.b16 %v2152, %v2148
        %v2821 = vpack.c.b16 %v2157, %v2153
        %v2822 = vpack.c.b16 %v2158, %v2154
        %v2823 = vpack.c.b16 %v2159, %v2155
        %v2824 = vpack.c.b16 %v2160, %v2156
        %v2825 = vpack.c.b16 %v2165, %v2161
        %v2826 = vpack.c.b16 %v2166, %v2162
        %v2827 = vpack.c.b16 %v2167, %v2163
        %v2828 = vpack.c.b16 %v2168, %v2164
        %v2829 = vpack.c.b16 %v2173, %v2169
        %v2830 = vpack.c.b16 %v2174, %v2170
        %v2831 = vpack.c.b16 %v2175, %v2171
        %v2832 = vpack.c.b16 %v2176, %v2172
        %v2833 = vpack.c.b16 %v2181, %v2177
        %v2834 = vpack.c.b16 %v2182, %v2178
        %v2835 = vpack.c.b16 %v2183, %v2179
        %v2836 = vpack.c.b16 %v2184, %v2180
        %v2837 = vpack.c.b16 %v2189, %v2185
        %v2838 = vpack.c.b16 %v2190, %v2186
        %v2839 = vpack.c.b16 %v2191, %v2187
        %v2840 = vpack.c.b16 %v2192, %v2188
        %v2841 = vpack.c.b16 %v2197, %v2193
        %v2842 = vpack.c.b16 %v2198, %v2194
        %v2843 = vpack.c.b16 %v2199, %v2195
        %v2844 = vpack.c.b16 %v2200, %v2196
        %v2845 = vpack.c.b16 %v2205, %v2201
        %v2846 = vpack.c.b16 %v2206, %v2202
        %v2847 = vpack.c.b16 %v2207, %v2203
        %v2848 = vpack.c.b16 %v2208, %v2204
        %v2849 = vpack.c.b16 %v2213, %v2209
        %v2850 = vpack.c.b16 %v2214, %v2210
        %v2851 = vpack.c.b16 %v2215, %v2211
        %v2852 = vpack.c.b16 %v2216, %v2212
        %v2853 = vpack.c.b16 %v2221, %v2217
        %v2854 = vpack.c.b16 %v2222, %v2218
        %v2855 = vpack.c.b16 %v2223, %v2219
        %v2856 = vpack.c.b16 %v2224, %v2220
        %v2857 = vpack.c.b16 %v2229, %v2225
        %v2858 = vpack.c.b16 %v2230, %v2226
        %v2859 = vpack.c.b16 %v2231, %v2227
        %v2860 = vpack.c.b16 %v2232, %v2228
        %v2861 = vpack.c.b16 %v2237, %v2233
        %v2862 = vpack.c.b16 %v2238, %v2234
        %v2863 = vpack.c.b16 %v2239, %v2235
        %v2864 = vpack.c.b16 %v2240, %v2236
        %v2865 = vpack.c.b16 %v2245, %v2241
        %v2866 = vpack.c.b16 %v2246, %v2242
        %v2867 = vpack.c.b16 %v2247, %v2243
        %v2868 = vpack.c.b16 %v2248, %v2244
        %v2869 = vpack.c.b16 %v2253, %v2249
        %v2870 = vpack.c.b16 %v2254, %v2250
        %v2871 = vpack.c.b16 %v2255, %v2251
        %v2872 = vpack.c.b16 %v2256, %v2252
        %v2873 = vpack.c.b16 %v2261, %v2257
        %v2874 = vpack.c.b16 %v2262, %v2258
        %v2875 = vpack.c.b16 %v2263, %v2259
        %v2876 = vpack.c.b16 %v2264, %v2260
        %v2877 = vpack.c.b16 %v2269, %v2265
        %v2878 = vpack.c.b16 %v2270, %v2266
        %v2879 = vpack.c.b16 %v2271, %v2267
        %v2880 = vpack.c.b16 %v2272, %v2268
        %v2881 = vpack.c.b16 %v2277, %v2273
        %v2882 = vpack.c.b16 %v2278, %v2274
        %v2883 = vpack.c.b16 %v2279, %v2275
        %v2884 = vpack.c.b16 %v2280, %v2276
        %v2885 = vpack.c.b16 %v2285, %v2281
        %v2886 = vpack.c.b16 %v2286, %v2282
        %v2887 = vpack.c.b16 %v2287, %v2283
        %v2888 = vpack.c.b16 %v2288, %v2284
        %v2889 = vpack.c.b16 %v2293, %v2289
        %v2890 = vpack.c.b16 %v2294, %v2290
        %v2891 = vpack.c.b16 %v2295, %v2291
        %v2892 = vpack.c.b16 %v2296, %v2292
        %v2893 = vpack.c.b16 %v2301, %v2297
        %v2894 = vpack.c.b16 %v2302, %v2298
        %v2895 = vpack.c.b16 %v2303, %v2299
        %v2896 = vpack.c.b16 %v2304, %v2300
        %v2897 = vpack.c.b16 %v2309, %v2305
        %v2898 = vpack.c.b16 %v2310, %v2306
        %v2899 = vpack.c.b16 %v2311, %v2307
        %v2900 = vpack.c.b16 %v2312, %v2308
        %v2901 = vpack.c.b16 %v2317, %v2313
        %v2902 = vpack.c.b16 %v2318, %v2314
        %v2903 = vpack.c.b16 %v2319, %v2315
        %v2904 = vpack.c.b16 %v2320, %v2316
        %v2905 = vpack.c.b16 %v2325, %v2321
        %v2906 = vpack.c.b16 %v2326, %v2322
        %v2907 = vpack.c.b16 %v2327, %v2323
        %v2908 = vpack.c.b16 %v2328, %v2324
        %v2909 = vpack.c.b16 %v2333, %v2329
        %v2910 = vpack.c.b16 %v2334, %v2330
        %v2911 = vpack.c.b16 %v2335, %v2331
        %v2912 = vpack.c.b16 %v2336, %v2332
        %v2913 = vpack.c.b16 %v2341, %v2337
        %v2914 = vpack.c.b16 %v2342, %v2338
        %v2915 = vpack.c.b16 %v2343, %v2339
        %v2916 = vpack.c.b16 %v2344, %v2340
        %v2917 = vpack.c.b16 %v2349, %v2345
        %v2918 = vpack.c.b16 %v2350, %v2346
        %v2919 = vpack.c.b16 %v2351, %v2347
        %v2920 = vpack.c.b16 %v2352, %v2348
        %v2921 = vpack.c.b16 %v2357, %v2353
        %v2922 = vpack.c.b16 %v2358, %v2354
        %v2923 = vpack.c.b16 %v2359, %v2355
        %v2924 = vpack.c.b16 %v2360, %v2356
        %v2925 = vpack.c.b16 %v2365, %v2361
        %v2926 = vpack.c.b16 %v2366, %v2362
        %v2927 = vpack.c.b16 %v2367, %v2363
        %v2928 = vpack.c.b16 %v2368, %v2364
        %v2929 = vpack.c.b16 %v2373, %v2369
        %v2930 = vpack.c.b16 %v2374, %v2370
        %v2931 = vpack.c.b16 %v2375, %v2371
        %v2932 = vpack.c.b16 %v2376, %v2372
        %v2933 = vpack.c.b16 %v2381, %v2377
        %v2934 = vpack.c.b16 %v2382, %v2378
        %v2935 = vpack.c.b16 %v2383, %v2379
        %v2936 = vpack.c.b16 %v2384, %v2380
        %v2937 = vpack.c.b16 %v2389, %v2385
        %v2938 = vpack.c.b16 %v2390, %v2386
        %v2939 = vpack.c.b16 %v2391, %v2387
        %v2940 = vpack.c.b16 %v2392, %v2388
        %v2941 = vpack.c.b16 %v2397, %v2393
        %v2942 = vpack.c.b16 %v2398, %v2394
        %v2943 = vpack.c.b16 %v2399, %v2395
        %v2944 = vpack.c.b16 %v2400, %v2396
        %v2945 = vpack.c.b16 %v2405, %v2401
        %v2946 = vpack.c.b16 %v2406, %v2402
        %v2947 = vpack.c.b16 %v2407, %v2403
        %v2948 = vpack.c.b16 %v2408, %v2404
        %v2949 = vpack.c.b16 %v2413, %v2409
        %v2950 = vpack.c.b16 %v2414, %v2410
        %v2951 = vpack.c.b16 %v2415, %v2411
        %v2952 = vpack.c.b16 %v2416, %v2412
        %v2953 = vpack.c.b16 %v2421, %v2417
        %v2954 = vpack.c.b16 %v2422, %v2418
        %v2955 = vpack.c.b16 %v2423, %v2419
        %v2956 = vpack.c.b16 %v2424, %v2420
        %v2957 = vpack.c.b16 %v2429, %v2425
        %v2958 = vpack.c.b16 %v2430, %v2426
        %v2959 = vpack.c.b16 %v2431, %v2427
        %v2960 = vpack.c.b16 %v2432, %v2428
        %v2961 = vpack.c.b16 %v2437, %v2433
        %v2962 = vpack.c.b16 %v2438, %v2434
        %v2963 = vpack.c.b16 %v2439, %v2435
        %v2964 = vpack.c.b16 %v2440, %v2436
        %v2965 = vpack.c.b16 %v2445, %v2441
        %v2966 = vpack.c.b16 %v2446, %v2442
        %v2967 = vpack.c.b16 %v2447, %v2443
        %v2968 = vpack.c.b16 %v2448, %v2444
        %v2969 = vpack.c.b16 %v2453, %v2449
        %v2970 = vpack.c.b16 %v2454, %v2450
        %v2971 = vpack.c.b16 %v2455, %v2451
        %v2972 = vpack.c.b16 %v2456, %v2452
        %v2973 = vpack.c.b16 %v2461, %v2457
        %v2974 = vpack.c.b16 %v2462, %v2458
        %v2975 = vpack.c.b16 %v2463, %v2459
        %v2976 = vpack.c.b16 %v2464, %v2460
        %3489 = vmatprep.subr.bf16.mxu0 %v2494
        %3490 = vmatpush1.bf16.msra.mxu0 %v2493
        %3491 = vmatprep.subr.bf16.mxu0 %v2490
        %3492 = vmatpush1.bf16.msra.mxu0 %v2489
        %3493 = vmatprep.subr.bf16.mxu0 %v2486
        %3494 = vmatpush1.bf16.msra.mxu0 %v2485
        %3495 = vmatprep.subr.bf16.mxu0 %v2482
        %3496 = vmatpush1.bf16.msra.mxu0 %v2481
        %3497 = vmatprep.subr.bf16.mxu0 %v2478
        %3498 = vmatpush1.bf16.msra.mxu0 %v2477
        %3499 = vmatprep.subr.bf16.mxu0 %v2474
        %3500 = vmatpush1.bf16.msra.mxu0 %v2473
        %3501 = vmatprep.subr.bf16.mxu0 %v2470
        %3502 = vmatpush1.bf16.msra.mxu0 %v2469
        %3503 = vmatprep.subr.bf16.mxu0 %v2466
        %3504 = vmatpush1.bf16.msra.mxu0 %v2465
        %3505 = vmatprep.subr.bf16.mxu0 %v2526
        %3506 = vmatpush2.bf16.msra.mxu0 %v2525
        %3507 = vmatprep.subr.bf16.mxu0 %v2522
        %3508 = vmatpush2.bf16.msra.mxu0 %v2521
        %3509 = vmatprep.subr.bf16.mxu0 %v2518
        %3510 = vmatpush2.bf16.msra.mxu0 %v2517
        %3511 = vmatprep.subr.bf16.mxu0 %v2514
        %3512 = vmatpush2.bf16.msra.mxu0 %v2513
        %3513 = vmatprep.subr.bf16.mxu0 %v2510
        %3514 = vmatpush2.bf16.msra.mxu0 %v2509
        %3515 = vmatprep.subr.bf16.mxu0 %v2506
        %3516 = vmatpush2.bf16.msra.mxu0 %v2505
        %3517 = vmatprep.subr.bf16.mxu0 %v2502
        %3518 = vmatpush2.bf16.msra.mxu0 %v2501
        %3519 = vmatprep.subr.bf16.mxu0 %v2498
        %3520 = vmatpush2.bf16.msra.mxu0 %v2497
        %3521 = vmatprep.mubr.bf16.mxu0 %v402
        %3522 = vmatmul.mubr.bf16.gmra.mxu0 %v401
        %v3523 = vpop.f32.mrf.mxu0
        %v3524 = vadd.f32 0.0, %v3523
        %v3525 = vpop.f32.mrf.mxu0
        %v3526 = vadd.f32 0.0, %v3525
        %v3527 = vpop.f32.mrf.mxu0
        %v3528 = vpop.f32.mrf.mxu0
        %3529 = vdwg.mxu0
        %3530 = vmatprep.subr.bf16.mxu0 %v2558
        %3531 = vmatpush1.bf16.msra.mxu0 %v2557
        %3532 = vmatprep.subr.bf16.mxu0 %v2554
        %3533 = vmatpush1.bf16.msra.mxu0 %v2553
        %3534 = vmatprep.subr.bf16.mxu0 %v2550
        %3535 = vmatpush1.bf16.msra.mxu0 %v2549
        %3536 = vmatprep.subr.bf16.mxu0 %v2546
        %3537 = vmatpush1.bf16.msra.mxu0 %v2545
        %3538 = vmatprep.subr.bf16.mxu0 %v2542
        %3539 = vmatpush1.bf16.msra.mxu0 %v2541
        %3540 = vmatprep.subr.bf16.mxu0 %v2538
        %3541 = vmatpush1.bf16.msra.mxu0 %v2537
        %3542 = vmatprep.subr.bf16.mxu0 %v2534
        %3543 = vmatpush1.bf16.msra.mxu0 %v2533
        %3544 = vmatprep.subr.bf16.mxu0 %v2530
        %3545 = vmatpush1.bf16.msra.mxu0 %v2529
        %3546 = vmatprep.subr.bf16.mxu0 %v2590
        %3547 = vmatpush2.bf16.msra.mxu0 %v2589
        %3548 = vmatprep.subr.bf16.mxu0 %v2586
        %3549 = vmatpush2.bf16.msra.mxu0 %v2585
        %3550 = vmatprep.subr.bf16.mxu0 %v2582
        %3551 = vmatpush2.bf16.msra.mxu0 %v2581
        %3552 = vmatprep.subr.bf16.mxu0 %v2578
        %3553 = vmatpush2.bf16.msra.mxu0 %v2577
        %3554 = vmatprep.subr.bf16.mxu0 %v2574
        %3555 = vmatpush2.bf16.msra.mxu0 %v2573
        %3556 = vmatprep.subr.bf16.mxu0 %v2570
        %3557 = vmatpush2.bf16.msra.mxu0 %v2569
        %3558 = vmatprep.subr.bf16.mxu0 %v2566
        %3559 = vmatpush2.bf16.msra.mxu0 %v2565
        %3560 = vmatprep.subr.bf16.mxu0 %v2562
        %3561 = vmatpush2.bf16.msra.mxu0 %v2561
        %3562 = vmatprep.mubr.bf16.mxu0 %v404
        %3563 = vmatmul.mubr.bf16.gmra.mxu0 %v403
        %v3564 = vpop.f32.mrf.mxu0
        %v3565 = vadd.f32 %v3524, %v3564
        %v3566 = vpop.f32.mrf.mxu0
        %v3567 = vadd.f32 %v3526, %v3566
        %v3568 = vpop.f32.mrf.mxu0
        %v3569 = vpop.f32.mrf.mxu0
        %3570 = vdwg.mxu0
        %3571 = vmatprep.subr.bf16.mxu0 %v2622
        %3572 = vmatpush1.bf16.msra.mxu0 %v2621
        %3573 = vmatprep.subr.bf16.mxu0 %v2618
        %3574 = vmatpush1.bf16.msra.mxu0 %v2617
        %3575 = vmatprep.subr.bf16.mxu0 %v2614
        %3576 = vmatpush1.bf16.msra.mxu0 %v2613
        %3577 = vmatprep.subr.bf16.mxu0 %v2610
        %3578 = vmatpush1.bf16.msra.mxu0 %v2609
        %3579 = vmatprep.subr.bf16.mxu0 %v2606
        %3580 = vmatpush1.bf16.msra.mxu0 %v2605
        %3581 = vmatprep.subr.bf16.mxu0 %v2602
        %3582 = vmatpush1.bf16.msra.mxu0 %v2601
        %3583 = vmatprep.subr.bf16.mxu0 %v2598
        %3584 = vmatpush1.bf16.msra.mxu0 %v2597
        %3585 = vmatprep.subr.bf16.mxu0 %v2594
        %3586 = vmatpush1.bf16.msra.mxu0 %v2593
        %3587 = vmatprep.subr.bf16.mxu0 %v2654
        %3588 = vmatpush2.bf16.msra.mxu0 %v2653
        %3589 = vmatprep.subr.bf16.mxu0 %v2650
        %3590 = vmatpush2.bf16.msra.mxu0 %v2649
        %3591 = vmatprep.subr.bf16.mxu0 %v2646
        %3592 = vmatpush2.bf16.msra.mxu0 %v2645
        %3593 = vmatprep.subr.bf16.mxu0 %v2642
        %3594 = vmatpush2.bf16.msra.mxu0 %v2641
        %3595 = vmatprep.subr.bf16.mxu0 %v2638
        %3596 = vmatpush2.bf16.msra.mxu0 %v2637
        %3597 = vmatprep.subr.bf16.mxu0 %v2634
        %3598 = vmatpush2.bf16.msra.mxu0 %v2633
        %3599 = vmatprep.subr.bf16.mxu0 %v2630
        %3600 = vmatpush2.bf16.msra.mxu0 %v2629
        %3601 = vmatprep.subr.bf16.mxu0 %v2626
        %3602 = vmatpush2.bf16.msra.mxu0 %v2625
        %3603 = vmatprep.mubr.bf16.mxu0 %v406
        %3604 = vmatmul.mubr.bf16.gmra.mxu0 %v405
        %v3605 = vpop.f32.mrf.mxu0
        %v3606 = vadd.f32 %v3565, %v3605
        %v3607 = vpop.f32.mrf.mxu0
        %v3608 = vadd.f32 %v3567, %v3607
        %v3609 = vpop.f32.mrf.mxu0
        %v3610 = vpop.f32.mrf.mxu0
        %3611 = vdwg.mxu0
        %3612 = vmatprep.subr.bf16.mxu0 %v2686
        %3613 = vmatpush1.bf16.msra.mxu0 %v2685
        %3614 = vmatprep.subr.bf16.mxu0 %v2682
        %3615 = vmatpush1.bf16.msra.mxu0 %v2681
        %3616 = vmatprep.subr.bf16.mxu0 %v2678
        %3617 = vmatpush1.bf16.msra.mxu0 %v2677
        %3618 = vmatprep.subr.bf16.mxu0 %v2674
        %3619 = vmatpush1.bf16.msra.mxu0 %v2673
        %3620 = vmatprep.subr.bf16.mxu0 %v2670
        %3621 = vmatpush1.bf16.msra.mxu0 %v2669
        %3622 = vmatprep.subr.bf16.mxu0 %v2666
        %3623 = vmatpush1.bf16.msra.mxu0 %v2665
        %3624 = vmatprep.subr.bf16.mxu0 %v2662
        %3625 = vmatpush1.bf16.msra.mxu0 %v2661
        %3626 = vmatprep.subr.bf16.mxu0 %v2658
        %3627 = vmatpush1.bf16.msra.mxu0 %v2657
        %3628 = vmatprep.subr.bf16.mxu0 %v2718
        %3629 = vmatpush2.bf16.msra.mxu0 %v2717
        %3630 = vmatprep.subr.bf16.mxu0 %v2714
        %3631 = vmatpush2.bf16.msra.mxu0 %v2713
        %3632 = vmatprep.subr.bf16.mxu0 %v2710
        %3633 = vmatpush2.bf16.msra.mxu0 %v2709
        %3634 = vmatprep.subr.bf16.mxu0 %v2706
        %3635 = vmatpush2.bf16.msra.mxu0 %v2705
        %3636 = vmatprep.subr.bf16.mxu0 %v2702
        %3637 = vmatpush2.bf16.msra.mxu0 %v2701
        %3638 = vmatprep.subr.bf16.mxu0 %v2698
        %3639 = vmatpush2.bf16.msra.mxu0 %v2697
        %3640 = vmatprep.subr.bf16.mxu0 %v2694
        %3641 = vmatpush2.bf16.msra.mxu0 %v2693
        %3642 = vmatprep.subr.bf16.mxu0 %v2690
        %3643 = vmatpush2.bf16.msra.mxu0 %v2689
        %3644 = vmatprep.mubr.bf16.mxu0 %v408
        %3645 = vmatmul.mubr.bf16.gmra.mxu0 %v407
        %v3646 = vpop.f32.mrf.mxu0
        %v3647 = vadd.f32 %v3606, %v3646
        %v3648 = vpop.f32.mrf.mxu0
        %v3649 = vadd.f32 %v3608, %v3648
        %v3650 = vpop.f32.mrf.mxu0
        %v3651 = vpop.f32.mrf.mxu0
        %3652 = vdwg.mxu0
        %3653 = vmatprep.subr.bf16.mxu0 %v2750
        %3654 = vmatpush1.bf16.msra.mxu0 %v2749
        %3655 = vmatprep.subr.bf16.mxu0 %v2746
        %3656 = vmatpush1.bf16.msra.mxu0 %v2745
        %3657 = vmatprep.subr.bf16.mxu0 %v2742
        %3658 = vmatpush1.bf16.msra.mxu0 %v2741
        %3659 = vmatprep.subr.bf16.mxu0 %v2738
        %3660 = vmatpush1.bf16.msra.mxu0 %v2737
        %3661 = vmatprep.subr.bf16.mxu0 %v2734
        %3662 = vmatpush1.bf16.msra.mxu0 %v2733
        %3663 = vmatprep.subr.bf16.mxu0 %v2730
        %3664 = vmatpush1.bf16.msra.mxu0 %v2729
        %3665 = vmatprep.subr.bf16.mxu0 %v2726
        %3666 = vmatpush1.bf16.msra.mxu0 %v2725
        %3667 = vmatprep.subr.bf16.mxu0 %v2722
        %3668 = vmatpush1.bf16.msra.mxu0 %v2721
        %3669 = vmatprep.subr.bf16.mxu0 %v2782
        %3670 = vmatpush2.bf16.msra.mxu0 %v2781
        %3671 = vmatprep.subr.bf16.mxu0 %v2778
        %3672 = vmatpush2.bf16.msra.mxu0 %v2777
        %3673 = vmatprep.subr.bf16.mxu0 %v2774
        %3674 = vmatpush2.bf16.msra.mxu0 %v2773
        %3675 = vmatprep.subr.bf16.mxu0 %v2770
        %3676 = vmatpush2.bf16.msra.mxu0 %v2769
        %3677 = vmatprep.subr.bf16.mxu0 %v2766
        %3678 = vmatpush2.bf16.msra.mxu0 %v2765
        %3679 = vmatprep.subr.bf16.mxu0 %v2762
        %3680 = vmatpush2.bf16.msra.mxu0 %v2761
        %3681 = vmatprep.subr.bf16.mxu0 %v2758
        %3682 = vmatpush2.bf16.msra.mxu0 %v2757
        %3683 = vmatprep.subr.bf16.mxu0 %v2754
        %3684 = vmatpush2.bf16.msra.mxu0 %v2753
        %3685 = vmatprep.mubr.bf16.mxu0 %v410
        %3686 = vmatmul.mubr.bf16.gmra.mxu0 %v409
        %v3687 = vpop.f32.mrf.mxu0
        %v3688 = vadd.f32 %v3647, %v3687
        %v3689 = vpop.f32.mrf.mxu0
        %v3690 = vadd.f32 %v3649, %v3689
        %v3691 = vpop.f32.mrf.mxu0
        %v3692 = vpop.f32.mrf.mxu0
        %3693 = vdwg.mxu0
        %3694 = vmatprep.subr.bf16.mxu0 %v2814
        %3695 = vmatpush1.bf16.msra.mxu0 %v2813
        %3696 = vmatprep.subr.bf16.mxu0 %v2810
        %3697 = vmatpush1.bf16.msra.mxu0 %v2809
        %3698 = vmatprep.subr.bf16.mxu0 %v2806
        %3699 = vmatpush1.bf16.msra.mxu0 %v2805
        %3700 = vmatprep.subr.bf16.mxu0 %v2802
        %3701 = vmatpush1.bf16.msra.mxu0 %v2801
        %3702 = vmatprep.subr.bf16.mxu0 %v2798
        %3703 = vmatpush1.bf16.msra.mxu0 %v2797
        %3704 = vmatprep.subr.bf16.mxu0 %v2794
        %3705 = vmatpush1.bf16.msra.mxu0 %v2793
        %3706 = vmatprep.subr.bf16.mxu0 %v2790
        %3707 = vmatpush1.bf16.msra.mxu0 %v2789
        %3708 = vmatprep.subr.bf16.mxu0 %v2786
        %3709 = vmatpush1.bf16.msra.mxu0 %v2785
        %3710 = vmatprep.subr.bf16.mxu0 %v2846
        %3711 = vmatpush2.bf16.msra.mxu0 %v2845
        %3712 = vmatprep.subr.bf16.mxu0 %v2842
        %3713 = vmatpush2.bf16.msra.mxu0 %v2841
        %3714 = vmatprep.subr.bf16.mxu0 %v2838
        %3715 = vmatpush2.bf16.msra.mxu0 %v2837
        %3716 = vmatprep.subr.bf16.mxu0 %v2834
        %3717 = vmatpush2.bf16.msra.mxu0 %v2833
        %3718 = vmatprep.subr.bf16.mxu0 %v2830
        %3719 = vmatpush2.bf16.msra.mxu0 %v2829
        %3720 = vmatprep.subr.bf16.mxu0 %v2826
        %3721 = vmatpush2.bf16.msra.mxu0 %v2825
        %3722 = vmatprep.subr.bf16.mxu0 %v2822
        %3723 = vmatpush2.bf16.msra.mxu0 %v2821
        %3724 = vmatprep.subr.bf16.mxu0 %v2818
        %3725 = vmatpush2.bf16.msra.mxu0 %v2817
        %3726 = vmatprep.mubr.bf16.mxu0 %v412
        %3727 = vmatmul.mubr.bf16.gmra.mxu0 %v411
        %v3728 = vpop.f32.mrf.mxu0
        %v3729 = vadd.f32 %v3688, %v3728
        %v3730 = vpop.f32.mrf.mxu0
        %v3731 = vadd.f32 %v3690, %v3730
        %v3732 = vpop.f32.mrf.mxu0
        %v3733 = vpop.f32.mrf.mxu0
        %3734 = vdwg.mxu0
        %3735 = vmatprep.subr.bf16.mxu0 %v2878
        %3736 = vmatpush1.bf16.msra.mxu0 %v2877
        %3737 = vmatprep.subr.bf16.mxu0 %v2874
        %3738 = vmatpush1.bf16.msra.mxu0 %v2873
        %3739 = vmatprep.subr.bf16.mxu0 %v2870
        %3740 = vmatpush1.bf16.msra.mxu0 %v2869
        %3741 = vmatprep.subr.bf16.mxu0 %v2866
        %3742 = vmatpush1.bf16.msra.mxu0 %v2865
        %3743 = vmatprep.subr.bf16.mxu0 %v2862
        %3744 = vmatpush1.bf16.msra.mxu0 %v2861
        %3745 = vmatprep.subr.bf16.mxu0 %v2858
        %3746 = vmatpush1.bf16.msra.mxu0 %v2857
        %3747 = vmatprep.subr.bf16.mxu0 %v2854
        %3748 = vmatpush1.bf16.msra.mxu0 %v2853
        %3749 = vmatprep.subr.bf16.mxu0 %v2850
        %3750 = vmatpush1.bf16.msra.mxu0 %v2849
        %3751 = vmatprep.subr.bf16.mxu0 %v2910
        %3752 = vmatpush2.bf16.msra.mxu0 %v2909
        %3753 = vmatprep.subr.bf16.mxu0 %v2906
        %3754 = vmatpush2.bf16.msra.mxu0 %v2905
        %3755 = vmatprep.subr.bf16.mxu0 %v2902
        %3756 = vmatpush2.bf16.msra.mxu0 %v2901
        %3757 = vmatprep.subr.bf16.mxu0 %v2898
        %3758 = vmatpush2.bf16.msra.mxu0 %v2897
        %3759 = vmatprep.subr.bf16.mxu0 %v2894
        %3760 = vmatpush2.bf16.msra.mxu0 %v2893
        %3761 = vmatprep.subr.bf16.mxu0 %v2890
        %3762 = vmatpush2.bf16.msra.mxu0 %v2889
        %3763 = vmatprep.subr.bf16.mxu0 %v2886
        %3764 = vmatpush2.bf16.msra.mxu0 %v2885
        %3765 = vmatprep.subr.bf16.mxu0 %v2882
        %3766 = vmatpush2.bf16.msra.mxu0 %v2881
        %3767 = vmatprep.mubr.bf16.mxu0 %v414
        %3768 = vmatmul.mubr.bf16.gmra.mxu0 %v413
        %v3769 = vpop.f32.mrf.mxu0
        %v3770 = vadd.f32 %v3729, %v3769
        %v3771 = vpop.f32.mrf.mxu0
        %v3772 = vadd.f32 %v3731, %v3771
        %v3773 = vpop.f32.mrf.mxu0
        %v3774 = vpop.f32.mrf.mxu0
        %3775 = vdwg.mxu0
        %3776 = vmatprep.subr.bf16.mxu0 %v2942
        %3777 = vmatpush1.bf16.msra.mxu0 %v2941
        %3778 = vmatprep.subr.bf16.mxu0 %v2938
        %3779 = vmatpush1.bf16.msra.mxu0 %v2937
        %3780 = vmatprep.subr.bf16.mxu0 %v2934
        %3781 = vmatpush1.bf16.msra.mxu0 %v2933
        %3782 = vmatprep.subr.bf16.mxu0 %v2930
        %3783 = vmatpush1.bf16.msra.mxu0 %v2929
        %3784 = vmatprep.subr.bf16.mxu0 %v2926
        %3785 = vmatpush1.bf16.msra.mxu0 %v2925
        %3786 = vmatprep.subr.bf16.mxu0 %v2922
        %3787 = vmatpush1.bf16.msra.mxu0 %v2921
        %3788 = vmatprep.subr.bf16.mxu0 %v2918
        %3789 = vmatpush1.bf16.msra.mxu0 %v2917
        %3790 = vmatprep.subr.bf16.mxu0 %v2914
        %3791 = vmatpush1.bf16.msra.mxu0 %v2913
        %3792 = vmatprep.subr.bf16.mxu0 %v2974
        %3793 = vmatpush2.bf16.msra.mxu0 %v2973
        %3794 = vmatprep.subr.bf16.mxu0 %v2970
        %3795 = vmatpush2.bf16.msra.mxu0 %v2969
        %3796 = vmatprep.subr.bf16.mxu0 %v2966
        %3797 = vmatpush2.bf16.msra.mxu0 %v2965
        %3798 = vmatprep.subr.bf16.mxu0 %v2962
        %3799 = vmatpush2.bf16.msra.mxu0 %v2961
        %3800 = vmatprep.subr.bf16.mxu0 %v2958
        %3801 = vmatpush2.bf16.msra.mxu0 %v2957
        %3802 = vmatprep.subr.bf16.mxu0 %v2954
        %3803 = vmatpush2.bf16.msra.mxu0 %v2953
        %3804 = vmatprep.subr.bf16.mxu0 %v2950
        %3805 = vmatpush2.bf16.msra.mxu0 %v2949
        %3806 = vmatprep.subr.bf16.mxu0 %v2946
        %3807 = vmatpush2.bf16.msra.mxu0 %v2945
        %3808 = vmatprep.mubr.bf16.mxu0 %v416
        %3809 = vmatmul.mubr.bf16.gmra.mxu0 %v415
        %v3810 = vpop.f32.mrf.mxu0
        %v3811 = vadd.f32 %v3770, %v3810
        %v3812 = vpop.f32.mrf.mxu0
        %v3813 = vadd.f32 %v3772, %v3812
        %v3814 = vpop.f32.mrf.mxu0
        %v3815 = vpop.f32.mrf.mxu0
        %3816 = vdwg.mxu0
        %3817 = vmatprep.subr.bf16.mxu0 %v2496
        %3818 = vmatpush1.bf16.msra.mxu0 %v2495
        %3819 = vmatprep.subr.bf16.mxu0 %v2492
        %3820 = vmatpush1.bf16.msra.mxu0 %v2491
        %3821 = vmatprep.subr.bf16.mxu0 %v2488
        %3822 = vmatpush1.bf16.msra.mxu0 %v2487
        %3823 = vmatprep.subr.bf16.mxu0 %v2484
        %3824 = vmatpush1.bf16.msra.mxu0 %v2483
        %3825 = vmatprep.subr.bf16.mxu0 %v2480
        %3826 = vmatpush1.bf16.msra.mxu0 %v2479
        %3827 = vmatprep.subr.bf16.mxu0 %v2476
        %3828 = vmatpush1.bf16.msra.mxu0 %v2475
        %3829 = vmatprep.subr.bf16.mxu0 %v2472
        %3830 = vmatpush1.bf16.msra.mxu0 %v2471
        %3831 = vmatprep.subr.bf16.mxu0 %v2468
        %3832 = vmatpush1.bf16.msra.mxu0 %v2467
        %3833 = vmatprep.subr.bf16.mxu0 %v2528
        %3834 = vmatpush2.bf16.msra.mxu0 %v2527
        %3835 = vmatprep.subr.bf16.mxu0 %v2524
        %3836 = vmatpush2.bf16.msra.mxu0 %v2523
        %3837 = vmatprep.subr.bf16.mxu0 %v2520
        %3838 = vmatpush2.bf16.msra.mxu0 %v2519
        %3839 = vmatprep.subr.bf16.mxu0 %v2516
        %3840 = vmatpush2.bf16.msra.mxu0 %v2515
        %3841 = vmatprep.subr.bf16.mxu0 %v2512
        %3842 = vmatpush2.bf16.msra.mxu0 %v2511
        %3843 = vmatprep.subr.bf16.mxu0 %v2508
        %3844 = vmatpush2.bf16.msra.mxu0 %v2507
        %3845 = vmatprep.subr.bf16.mxu0 %v2504
        %3846 = vmatpush2.bf16.msra.mxu0 %v2503
        %3847 = vmatprep.subr.bf16.mxu0 %v2500
        %3848 = vmatpush2.bf16.msra.mxu0 %v2499
        %3849 = vmatprep.mubr.bf16.mxu0 %v402
        %3850 = vmatmul.mubr.bf16.gmra.mxu0 %v401
        %v3851 = vpop.f32.mrf.mxu0
        %v3852 = vadd.f32 0.0, %v3851
        %v3853 = vpop.f32.mrf.mxu0
        %v3854 = vadd.f32 0.0, %v3853
        %v3855 = vpop.f32.mrf.mxu0
        %v3856 = vpop.f32.mrf.mxu0
        %3857 = vdwg.mxu0
        %3858 = vmatprep.subr.bf16.mxu0 %v2560
        %3859 = vmatpush1.bf16.msra.mxu0 %v2559
        %3860 = vmatprep.subr.bf16.mxu0 %v2556
        %3861 = vmatpush1.bf16.msra.mxu0 %v2555
        %3862 = vmatprep.subr.bf16.mxu0 %v2552
        %3863 = vmatpush1.bf16.msra.mxu0 %v2551
        %3864 = vmatprep.subr.bf16.mxu0 %v2548
        %3865 = vmatpush1.bf16.msra.mxu0 %v2547
        %3866 = vmatprep.subr.bf16.mxu0 %v2544
        %3867 = vmatpush1.bf16.msra.mxu0 %v2543
        %3868 = vmatprep.subr.bf16.mxu0 %v2540
        %3869 = vmatpush1.bf16.msra.mxu0 %v2539
        %3870 = vmatprep.subr.bf16.mxu0 %v2536
        %3871 = vmatpush1.bf16.msra.mxu0 %v2535
        %3872 = vmatprep.subr.bf16.mxu0 %v2532
        %3873 = vmatpush1.bf16.msra.mxu0 %v2531
        %3874 = vmatprep.subr.bf16.mxu0 %v2592
        %3875 = vmatpush2.bf16.msra.mxu0 %v2591
        %3876 = vmatprep.subr.bf16.mxu0 %v2588
        %3877 = vmatpush2.bf16.msra.mxu0 %v2587
        %3878 = vmatprep.subr.bf16.mxu0 %v2584
        %3879 = vmatpush2.bf16.msra.mxu0 %v2583
        %3880 = vmatprep.subr.bf16.mxu0 %v2580
        %3881 = vmatpush2.bf16.msra.mxu0 %v2579
        %3882 = vmatprep.subr.bf16.mxu0 %v2576
        %3883 = vmatpush2.bf16.msra.mxu0 %v2575
        %3884 = vmatprep.subr.bf16.mxu0 %v2572
        %3885 = vmatpush2.bf16.msra.mxu0 %v2571
        %3886 = vmatprep.subr.bf16.mxu0 %v2568
        %3887 = vmatpush2.bf16.msra.mxu0 %v2567
        %3888 = vmatprep.subr.bf16.mxu0 %v2564
        %3889 = vmatpush2.bf16.msra.mxu0 %v2563
        %3890 = vmatprep.mubr.bf16.mxu0 %v404
        %3891 = vmatmul.mubr.bf16.gmra.mxu0 %v403
        %v3892 = vpop.f32.mrf.mxu0
        %v3893 = vadd.f32 %v3852, %v3892
        %v3894 = vpop.f32.mrf.mxu0
        %v3895 = vadd.f32 %v3854, %v3894
        %v3896 = vpop.f32.mrf.mxu0
        %v3897 = vpop.f32.mrf.mxu0
        %3898 = vdwg.mxu0
        %3899 = vmatprep.subr.bf16.mxu0 %v2624
        %3900 = vmatpush1.bf16.msra.mxu0 %v2623
        %3901 = vmatprep.subr.bf16.mxu0 %v2620
        %3902 = vmatpush1.bf16.msra.mxu0 %v2619
        %3903 = vmatprep.subr.bf16.mxu0 %v2616
        %3904 = vmatpush1.bf16.msra.mxu0 %v2615
        %3905 = vmatprep.subr.bf16.mxu0 %v2612
        %3906 = vmatpush1.bf16.msra.mxu0 %v2611
        %3907 = vmatprep.subr.bf16.mxu0 %v2608
        %3908 = vmatpush1.bf16.msra.mxu0 %v2607
        %3909 = vmatprep.subr.bf16.mxu0 %v2604
        %3910 = vmatpush1.bf16.msra.mxu0 %v2603
        %3911 = vmatprep.subr.bf16.mxu0 %v2600
        %3912 = vmatpush1.bf16.msra.mxu0 %v2599
        %3913 = vmatprep.subr.bf16.mxu0 %v2596
        %3914 = vmatpush1.bf16.msra.mxu0 %v2595
        %3915 = vmatprep.subr.bf16.mxu0 %v2656
        %3916 = vmatpush2.bf16.msra.mxu0 %v2655
        %3917 = vmatprep.subr.bf16.mxu0 %v2652
        %3918 = vmatpush2.bf16.msra.mxu0 %v2651
        %3919 = vmatprep.subr.bf16.mxu0 %v2648
        %3920 = vmatpush2.bf16.msra.mxu0 %v2647
        %3921 = vmatprep.subr.bf16.mxu0 %v2644
        %3922 = vmatpush2.bf16.msra.mxu0 %v2643
        %3923 = vmatprep.subr.bf16.mxu0 %v2640
        %3924 = vmatpush2.bf16.msra.mxu0 %v2639
        %3925 = vmatprep.subr.bf16.mxu0 %v2636
        %3926 = vmatpush2.bf16.msra.mxu0 %v2635
        %3927 = vmatprep.subr.bf16.mxu0 %v2632
        %3928 = vmatpush2.bf16.msra.mxu0 %v2631
        %3929 = vmatprep.subr.bf16.mxu0 %v2628
        %3930 = vmatpush2.bf16.msra.mxu0 %v2627
        %3931 = vmatprep.mubr.bf16.mxu0 %v406
        %3932 = vmatmul.mubr.bf16.gmra.mxu0 %v405
        %v3933 = vpop.f32.mrf.mxu0
        %v3934 = vadd.f32 %v3893, %v3933
        %v3935 = vpop.f32.mrf.mxu0
        %v3936 = vadd.f32 %v3895, %v3935
        %v3937 = vpop.f32.mrf.mxu0
        %v3938 = vpop.f32.mrf.mxu0
        %3939 = vdwg.mxu0
        %3940 = vmatprep.subr.bf16.mxu0 %v2688
        %3941 = vmatpush1.bf16.msra.mxu0 %v2687
        %3942 = vmatprep.subr.bf16.mxu0 %v2684
        %3943 = vmatpush1.bf16.msra.mxu0 %v2683
        %3944 = vmatprep.subr.bf16.mxu0 %v2680
        %3945 = vmatpush1.bf16.msra.mxu0 %v2679
        %3946 = vmatprep.subr.bf16.mxu0 %v2676
        %3947 = vmatpush1.bf16.msra.mxu0 %v2675
        %3948 = vmatprep.subr.bf16.mxu0 %v2672
        %3949 = vmatpush1.bf16.msra.mxu0 %v2671
        %3950 = vmatprep.subr.bf16.mxu0 %v2668
        %3951 = vmatpush1.bf16.msra.mxu0 %v2667
        %3952 = vmatprep.subr.bf16.mxu0 %v2664
        %3953 = vmatpush1.bf16.msra.mxu0 %v2663
        %3954 = vmatprep.subr.bf16.mxu0 %v2660
        %3955 = vmatpush1.bf16.msra.mxu0 %v2659
        %3956 = vmatprep.subr.bf16.mxu0 %v2720
        %3957 = vmatpush2.bf16.msra.mxu0 %v2719
        %3958 = vmatprep.subr.bf16.mxu0 %v2716
        %3959 = vmatpush2.bf16.msra.mxu0 %v2715
        %3960 = vmatprep.subr.bf16.mxu0 %v2712
        %3961 = vmatpush2.bf16.msra.mxu0 %v2711
        %3962 = vmatprep.subr.bf16.mxu0 %v2708
        %3963 = vmatpush2.bf16.msra.mxu0 %v2707
        %3964 = vmatprep.subr.bf16.mxu0 %v2704
        %3965 = vmatpush2.bf16.msra.mxu0 %v2703
        %3966 = vmatprep.subr.bf16.mxu0 %v2700
        %3967 = vmatpush2.bf16.msra.mxu0 %v2699
        %3968 = vmatprep.subr.bf16.mxu0 %v2696
        %3969 = vmatpush2.bf16.msra.mxu0 %v2695
        %3970 = vmatprep.subr.bf16.mxu0 %v2692
        %3971 = vmatpush2.bf16.msra.mxu0 %v2691
        %3972 = vmatprep.mubr.bf16.mxu0 %v408
        %3973 = vmatmul.mubr.bf16.gmra.mxu0 %v407
        %v3974 = vpop.f32.mrf.mxu0
        %v3975 = vadd.f32 %v3934, %v3974
        %v3976 = vpop.f32.mrf.mxu0
        %v3977 = vadd.f32 %v3936, %v3976
        %v3978 = vpop.f32.mrf.mxu0
        %v3979 = vpop.f32.mrf.mxu0
        %3980 = vdwg.mxu0
        %3981 = vmatprep.subr.bf16.mxu0 %v2752
        %3982 = vmatpush1.bf16.msra.mxu0 %v2751
        %3983 = vmatprep.subr.bf16.mxu0 %v2748
        %3984 = vmatpush1.bf16.msra.mxu0 %v2747
        %3985 = vmatprep.subr.bf16.mxu0 %v2744
        %3986 = vmatpush1.bf16.msra.mxu0 %v2743
        %3987 = vmatprep.subr.bf16.mxu0 %v2740
        %3988 = vmatpush1.bf16.msra.mxu0 %v2739
        %3989 = vmatprep.subr.bf16.mxu0 %v2736
        %3990 = vmatpush1.bf16.msra.mxu0 %v2735
        %3991 = vmatprep.subr.bf16.mxu0 %v2732
        %3992 = vmatpush1.bf16.msra.mxu0 %v2731
        %3993 = vmatprep.subr.bf16.mxu0 %v2728
        %3994 = vmatpush1.bf16.msra.mxu0 %v2727
        %3995 = vmatprep.subr.bf16.mxu0 %v2724
        %3996 = vmatpush1.bf16.msra.mxu0 %v2723
        %3997 = vmatprep.subr.bf16.mxu0 %v2784
        %3998 = vmatpush2.bf16.msra.mxu0 %v2783
        %3999 = vmatprep.subr.bf16.mxu0 %v2780
        %4000 = vmatpush2.bf16.msra.mxu0 %v2779
        %4001 = vmatprep.subr.bf16.mxu0 %v2776
        %4002 = vmatpush2.bf16.msra.mxu0 %v2775
        %4003 = vmatprep.subr.bf16.mxu0 %v2772
        %4004 = vmatpush2.bf16.msra.mxu0 %v2771
        %4005 = vmatprep.subr.bf16.mxu0 %v2768
        %4006 = vmatpush2.bf16.msra.mxu0 %v2767
        %4007 = vmatprep.subr.bf16.mxu0 %v2764
        %4008 = vmatpush2.bf16.msra.mxu0 %v2763
        %4009 = vmatprep.subr.bf16.mxu0 %v2760
        %4010 = vmatpush2.bf16.msra.mxu0 %v2759
        %4011 = vmatprep.subr.bf16.mxu0 %v2756
        %4012 = vmatpush2.bf16.msra.mxu0 %v2755
        %4013 = vmatprep.mubr.bf16.mxu0 %v410
        %4014 = vmatmul.mubr.bf16.gmra.mxu0 %v409
        %v4015 = vpop.f32.mrf.mxu0
        %v4016 = vadd.f32 %v3975, %v4015
        %v4017 = vpop.f32.mrf.mxu0
        %v4018 = vadd.f32 %v3977, %v4017
        %v4019 = vpop.f32.mrf.mxu0
        %v4020 = vpop.f32.mrf.mxu0
        %4021 = vdwg.mxu0
        %4022 = vmatprep.subr.bf16.mxu0 %v2816
        %4023 = vmatpush1.bf16.msra.mxu0 %v2815
        %4024 = vmatprep.subr.bf16.mxu0 %v2812
        %4025 = vmatpush1.bf16.msra.mxu0 %v2811
        %4026 = vmatprep.subr.bf16.mxu0 %v2808
        %4027 = vmatpush1.bf16.msra.mxu0 %v2807
        %4028 = vmatprep.subr.bf16.mxu0 %v2804
        %4029 = vmatpush1.bf16.msra.mxu0 %v2803
        %4030 = vmatprep.subr.bf16.mxu0 %v2800
        %4031 = vmatpush1.bf16.msra.mxu0 %v2799
        %4032 = vmatprep.subr.bf16.mxu0 %v2796
        %4033 = vmatpush1.bf16.msra.mxu0 %v2795
        %4034 = vmatprep.subr.bf16.mxu0 %v2792
        %4035 = vmatpush1.bf16.msra.mxu0 %v2791
        %4036 = vmatprep.subr.bf16.mxu0 %v2788
        %4037 = vmatpush1.bf16.msra.mxu0 %v2787
        %4038 = vmatprep.subr.bf16.mxu0 %v2848
        %4039 = vmatpush2.bf16.msra.mxu0 %v2847
        %4040 = vmatprep.subr.bf16.mxu0 %v2844
        %4041 = vmatpush2.bf16.msra.mxu0 %v2843
        %4042 = vmatprep.subr.bf16.mxu0 %v2840
        %4043 = vmatpush2.bf16.msra.mxu0 %v2839
        %4044 = vmatprep.subr.bf16.mxu0 %v2836
        %4045 = vmatpush2.bf16.msra.mxu0 %v2835
        %4046 = vmatprep.subr.bf16.mxu0 %v2832
        %4047 = vmatpush2.bf16.msra.mxu0 %v2831
        %4048 = vmatprep.subr.bf16.mxu0 %v2828
        %4049 = vmatpush2.bf16.msra.mxu0 %v2827
        %4050 = vmatprep.subr.bf16.mxu0 %v2824
        %4051 = vmatpush2.bf16.msra.mxu0 %v2823
        %4052 = vmatprep.subr.bf16.mxu0 %v2820
        %4053 = vmatpush2.bf16.msra.mxu0 %v2819
        %4054 = vmatprep.mubr.bf16.mxu0 %v412
        %4055 = vmatmul.mubr.bf16.gmra.mxu0 %v411
        %v4056 = vpop.f32.mrf.mxu0
        %v4057 = vadd.f32 %v4016, %v4056
        %v4058 = vpop.f32.mrf.mxu0
        %v4059 = vadd.f32 %v4018, %v4058
        %v4060 = vpop.f32.mrf.mxu0
        %v4061 = vpop.f32.mrf.mxu0
        %4062 = vdwg.mxu0
        %4063 = vmatprep.subr.bf16.mxu0 %v2880
        %4064 = vmatpush1.bf16.msra.mxu0 %v2879
        %4065 = vmatprep.subr.bf16.mxu0 %v2876
        %4066 = vmatpush1.bf16.msra.mxu0 %v2875
        %4067 = vmatprep.subr.bf16.mxu0 %v2872
        %4068 = vmatpush1.bf16.msra.mxu0 %v2871
        %4069 = vmatprep.subr.bf16.mxu0 %v2868
        %4070 = vmatpush1.bf16.msra.mxu0 %v2867
        %4071 = vmatprep.subr.bf16.mxu0 %v2864
        %4072 = vmatpush1.bf16.msra.mxu0 %v2863
        %4073 = vmatprep.subr.bf16.mxu0 %v2860
        %4074 = vmatpush1.bf16.msra.mxu0 %v2859
        %4075 = vmatprep.subr.bf16.mxu0 %v2856
        %4076 = vmatpush1.bf16.msra.mxu0 %v2855
        %4077 = vmatprep.subr.bf16.mxu0 %v2852
        %4078 = vmatpush1.bf16.msra.mxu0 %v2851
        %4079 = vmatprep.subr.bf16.mxu0 %v2912
        %4080 = vmatpush2.bf16.msra.mxu0 %v2911
        %4081 = vmatprep.subr.bf16.mxu0 %v2908
        %4082 = vmatpush2.bf16.msra.mxu0 %v2907
        %4083 = vmatprep.subr.bf16.mxu0 %v2904
        %4084 = vmatpush2.bf16.msra.mxu0 %v2903
        %4085 = vmatprep.subr.bf16.mxu0 %v2900
        %4086 = vmatpush2.bf16.msra.mxu0 %v2899
        %4087 = vmatprep.subr.bf16.mxu0 %v2896
        %4088 = vmatpush2.bf16.msra.mxu0 %v2895
        %4089 = vmatprep.subr.bf16.mxu0 %v2892
        %4090 = vmatpush2.bf16.msra.mxu0 %v2891
        %4091 = vmatprep.subr.bf16.mxu0 %v2888
        %4092 = vmatpush2.bf16.msra.mxu0 %v2887
        %4093 = vmatprep.subr.bf16.mxu0 %v2884
        %4094 = vmatpush2.bf16.msra.mxu0 %v2883
        %4095 = vmatprep.mubr.bf16.mxu0 %v414
        %4096 = vmatmul.mubr.bf16.gmra.mxu0 %v413
        %v4097 = vpop.f32.mrf.mxu0
        %v4098 = vadd.f32 %v4057, %v4097
        %v4099 = vpop.f32.mrf.mxu0
        %v4100 = vadd.f32 %v4059, %v4099
        %v4101 = vpop.f32.mrf.mxu0
        %v4102 = vpop.f32.mrf.mxu0
        %4103 = vdwg.mxu0
        %4104 = vmatprep.subr.bf16.mxu0 %v2944
        %4105 = vmatpush1.bf16.msra.mxu0 %v2943
        %4106 = vmatprep.subr.bf16.mxu0 %v2940
        %4107 = vmatpush1.bf16.msra.mxu0 %v2939
        %4108 = vmatprep.subr.bf16.mxu0 %v2936
        %4109 = vmatpush1.bf16.msra.mxu0 %v2935
        %4110 = vmatprep.subr.bf16.mxu0 %v2932
        %4111 = vmatpush1.bf16.msra.mxu0 %v2931
        %4112 = vmatprep.subr.bf16.mxu0 %v2928
        %4113 = vmatpush1.bf16.msra.mxu0 %v2927
        %4114 = vmatprep.subr.bf16.mxu0 %v2924
        %4115 = vmatpush1.bf16.msra.mxu0 %v2923
        %4116 = vmatprep.subr.bf16.mxu0 %v2920
        %4117 = vmatpush1.bf16.msra.mxu0 %v2919
        %4118 = vmatprep.subr.bf16.mxu0 %v2916
        %4119 = vmatpush1.bf16.msra.mxu0 %v2915
        %4120 = vmatprep.subr.bf16.mxu0 %v2976
        %4121 = vmatpush2.bf16.msra.mxu0 %v2975
        %4122 = vmatprep.subr.bf16.mxu0 %v2972
        %4123 = vmatpush2.bf16.msra.mxu0 %v2971
        %4124 = vmatprep.subr.bf16.mxu0 %v2968
        %4125 = vmatpush2.bf16.msra.mxu0 %v2967
        %4126 = vmatprep.subr.bf16.mxu0 %v2964
        %4127 = vmatpush2.bf16.msra.mxu0 %v2963
        %4128 = vmatprep.subr.bf16.mxu0 %v2960
        %4129 = vmatpush2.bf16.msra.mxu0 %v2959
        %4130 = vmatprep.subr.bf16.mxu0 %v2956
        %4131 = vmatpush2.bf16.msra.mxu0 %v2955
        %4132 = vmatprep.subr.bf16.mxu0 %v2952
        %4133 = vmatpush2.bf16.msra.mxu0 %v2951
        %4134 = vmatprep.subr.bf16.mxu0 %v2948
        %4135 = vmatpush2.bf16.msra.mxu0 %v2947
        %4136 = vmatprep.mubr.bf16.mxu0 %v416
        %4137 = vmatmul.mubr.bf16.gmra.mxu0 %v415
        %v4138 = vpop.f32.mrf.mxu0
        %v4139 = vadd.f32 %v4098, %v4138
        %v4140 = vpop.f32.mrf.mxu0
        %v4141 = vadd.f32 %v4100, %v4140
        %v4142 = vpop.f32.mrf.mxu0
        %v4143 = vpop.f32.mrf.mxu0
        %4144 = vdwg.mxu0
        %v4149 = vcombine.low %v3811, %v3813
        %v4150 = vcombine.low %v4139, %v4141
        %v4152 = vunpack.c.l.s4 1983009808
        %v4153 = vunpack.c.0.s8 %v4152
        %v4154 = vlaneseq
        %v4155 = vshrl.u32 %v4154, 7
        %v4156 = vsub.s32 %v4153, %v4155
        %v4157 = vrot.slane %v4149, %v4156
        %v4159 = vunpack.c.l.s4 1983009808
        %v4160 = vunpack.c.0.s8 %v4159
        %v4161 = vlaneseq
        %v4162 = vshrl.u32 %v4161, 7
        %v4163 = vsub.s32 %v4160, %v4162
        %v4164 = vrot.slane %v4150, %v4163
        %v4165 = vcombine.low %v4157, %v4164
        %v4167 = vadd.f32 %v308, %v4165
        %4168 = vst [vmem:[#allocation2] sm:$0xff] %v4167
        // Predicated region
        $region49: #{tpu_custom_call.1} parent=31 // pred_check
          %p4169 = pneg %p267
        $region50: #{tpu_custom_call.1} parent=31 // pred_check_branch
          %4171 = sbr.rel (%p4169) target = $region52
        $region51: #{tpu_custom_call.1} parent=31 // pred_region
          %v4172 = vld [vmem:[#allocation2] sm:$0xff]
          %4173 = vst [vmem:[%s261] sm:$0xff] %v4172
        $region52: #{tpu_custom_call.1} parent=31 // pred_fallthru
          _
        %s4174 = sand.u32 %s121, 1
        %s4175 = scalar_lea.sflag [#allocation5], %s4174
        %s4176 = sand.u32 %s121, 1
        %s4177 = smul.addr %s4176, 8
        %s4178 = scalar_lea.vmem [#allocation9], %s4177
        // Predicated region
        $region53: #{tpu_custom_call.1} parent=31 // pred_check
          %p4179 = pneg %p131
        $region54: #{tpu_custom_call.1} parent=31 // pred_check_branch
          %4181 = sbr.rel (%p4179) target = $region56
        $region55: #{tpu_custom_call.1} parent=31 // pred_region
          %s4182 = smul.u32 4, %s25
          %s4184 = ssub.s32 128, 128
          %4185 = vsyncadd %s4175, %s4184
          %s4186 = smul.addr %s4182, 32
          %s4187 = scalar_lea.hbm %s3, %s4186
          %s4189 = sshll.u32 %s4178, 4
          %s4190 = int_to_ptr.vmem [resolvable:$true] %s4189
          %4192 = dma.vmem_to_hbm [thread:$0]  %s4190, 128, %s4187, %s4175
        $region56: #{tpu_custom_call.1} parent=31 // pred_fallthru
          _
      $region32: #{tpu_custom_call.1} parent=5 // pred_fallthru
        _
      %p4193 = scmp.le.s32.totalorder 2, %s16
      // Predicated region
      $region57: #{tpu_custom_call.1} parent=5 // pred_check
        %p4194 = pneg %p4193
      $region58: #{tpu_custom_call.1} parent=5 // pred_check_branch
        %4196 = sbr.rel (%p4194) target = $region60
      $region59: #{tpu_custom_call.1} parent=5 // pred_region
        %s4197 = ssub.s32 %s16, 2
        // Predicated region
        $region61: #{tpu_custom_call.1} parent=59 // pred_check
          %p4198 = pneg %p137
        $region62: #{tpu_custom_call.1} parent=59 // pred_check_branch
          %4200 = sbr.rel (%p4198) target = $region64
        $region63: #{tpu_custom_call.1} parent=59 // pred_region
          %s4201 = sand.u32 %s122, 1
          %s4202 = scalar_lea.sflag [#allocation5], %s4201
          %s4203 = sand.u32 %s122, 1
          %s4204 = smul.addr %s4203, 8
          %s4205 = scalar_lea.vmem [#allocation9], %s4204
          %4206 = dma.done %s4202, 128
        $region64: #{tpu_custom_call.1} parent=59 // pred_fallthru
          _
      $region60: #{tpu_custom_call.1} parent=5 // pred_fallthru
        _
    $region6: #{tpu_custom_call.1} parent=1 // loop_footer
      %s20 = sadd.s32 1, %s16
    $region7: #{tpu_custom_call.1} parent=1 // loop_footer_branch
      %15 = sbr.rel target = $region3
    $region8: #{tpu_custom_call.1} parent=1 // loop_exit
      _
    %4207 = vsyncpa [#allocation4], 1
    %s4208 = scalar_lea.sflag [#allocation4], 1
    %4209 = vsyncpa %s4208, 1
    %4210 = vsyncpa [#allocation7], 1
    %s4211 = scalar_lea.sflag [#allocation7], 1
    %4212 = vsyncpa %s4211, 1
    %4213 = vsyncpa [#allocation5], 1
    %s4214 = scalar_lea.sflag [#allocation5], 1
    %4215 = vsyncpa %s4214, 1

</llo_original>
